<compile_context>
chip_gen: v7x
topology: tpu7x:2x2x1
jax: 0.10.0
libtpu: 0.0.40
codegen_flags: <defaults>
</compile_context>

<pallas_src>
import functools

import jax
import jax.numpy as jnp
from jax import lax
from jax.experimental import pallas as pl
from jax.experimental.pallas import tpu as pltpu

EPS = 1e-5


# --------------------------------------------------------------------------
# generation-aware VMEM budget
# --------------------------------------------------------------------------
def _vmem_capacity_bytes():
    try:
        info = pltpu.get_tpu_info()
        cap = int(getattr(info, "vmem_capacity_bytes", 0))
        if cap > 0:
            return cap
    except Exception:
        pass
    return 64 * 1024 * 1024          # conservative (v7x-sized) fallback


_VMEM_CAP = _vmem_capacity_bytes()
# <= ~48 MiB on v7x (64 MiB physical), 96 MiB on v5e/v6e (128 MiB physical).
VMEM_LIMIT = max(32 * 1024 * 1024, min((3 * _VMEM_CAP) // 4, 96 * 1024 * 1024))
# per-block HBM<->VMEM byte target: big enough to sit near the DMA roofline,
# small enough to leave room for double buffering of several operands.
BLK_TARGET = (4 << 20) if _VMEM_CAP >= (96 << 20) else (2 << 20)


def _cparams(*sem):
    return pltpu.CompilerParams(dimension_semantics=sem,
                                vmem_limit_bytes=VMEM_LIMIT)


def _pick_rows(n, row_bytes, target_bytes=None):
    """Row tile for a (rows, ...) block: divides n, is a multiple of 8 (or the
    full extent), respects a per-block byte target, and leaves >=2 grid steps
    whenever an 8-aligned divisor exists (megacore / v7x dual-TC)."""
    if target_bytes is None:
        target_bytes = BLK_TARGET
    if n <= 8:
        return n
    cap = max(8, target_bytes // max(int(row_bytes), 1))
    cands = [t for t in range(8, n, 8) if n % t == 0]
    fit = [t for t in cands if t <= cap]
    if fit:
        return max(fit)
    if cands:
        return min(cands)
    return n                      # no 8-aligned divisor: full extent is legal


def _pick_th(Hi, Wi, C, Cout, target_bytes=None):
    """Row tile for the 3x3 conv band: divides Hi, keeps TH*Wi sublane-aligned
    (or TH == Hi), and keeps the per-step working set under the byte target."""
    if target_bytes is None:
        target_bytes = BLK_TARGET

    def step_bytes(th):
        slab = (th + 2) * (Wi + 2) * C * 4             # f32 VMEM slab
        outb = th * Wi * Cout * 4
        pat = 9 * th * Wi * C * 4 if C % 128 == 0 else 3 * slab
        return th * Wi * C * 4 + slab + outb + pat

    cands = [t for t in range(Hi, 0, -1)
             if Hi % t == 0 and (t == Hi or (t * Wi) % 8 == 0)]
    for t in cands:
        if step_bytes(t) <= target_bytes:
            return t
    return cands[-1]


# --------------------------------------------------------------------------
# Pallas kernels
# --------------------------------------------------------------------------
def _conv1_ds_kernel(x_ref, w1_ref, b1_ref, wd_ref,
                     h_ref, sc_ref, hst_ref, sst_ref):
    # 1x1x1 conv (+bias) and 1x1x1 downsample conv (no bias) over one row tile,
    # plus per-tile per-channel [sum, sumsq] side outputs for the BNs.
    x = x_ref[...].astype(w1_ref.dtype)
    h = jnp.dot(x, w1_ref[...], preferred_element_type=jnp.float32) + b1_ref[0:1, :]
    s = jnp.dot(x, wd_ref[...], preferred_element_type=jnp.float32)
    h_ref[...] = h.astype(h_ref.dtype)
    sc_ref[...] = s.astype(sc_ref.dtype)
    hst_ref[0, 0:1, :] = jnp.sum(h, axis=0, keepdims=True)
    hst_ref[0, 1:2, :] = jnp.sum(h * h, axis=0, keepdims=True)
    sst_ref[0, 0:1, :] = jnp.sum(s, axis=0, keepdims=True)
    sst_ref[0, 1:2, :] = jnp.sum(s * s, axis=0, keepdims=True)


def _conv1_kernel(x_ref, w1_ref, b1_ref, h_ref, hst_ref):
    x = x_ref[...].astype(w1_ref.dtype)
    h = jnp.dot(x, w1_ref[...], preferred_element_type=jnp.float32) + b1_ref[0:1, :]
    h_ref[...] = h.astype(h_ref.dtype)
    hst_ref[0, 0:1, :] = jnp.sum(h, axis=0, keepdims=True)
    hst_ref[0, 1:2, :] = jnp.sum(h * h, axis=0, keepdims=True)


def _branch_conv_kernel(top_ref, band_ref, bot_ref, bn_ref, w9_ref, b_ref,
                        o_ref, st_ref, slab_ref):
    # 3x3 'same' conv over one (batch, row-band) of a channels-last 2D view.
    # bn1-affine + ReLU is applied to the input on the fly.  The row halo comes
    # from two clamped single-row BlockSpecs; 'same' padding along both axes is
    # realised by the zero border of the width-padded VMEM slab.
    t = pl.program_id(1)
    nth = pl.num_programs(1)
    _, TH, Wi, C = band_ref.shape
    Cout = o_ref.shape[-1]
    mdt = w9_ref.dtype                          # MXU operand dtype (f32 / bf16)
    s1 = bn_ref[0:1, :].reshape(1, 1, C)
    t1 = bn_ref[1:2, :].reshape(1, 1, C)

    def bnrelu(v):
        return jnp.maximum(v.astype(jnp.float32) * s1 + t1, 0.0)

    # Zero border (row + column 'same' padding), then fill the interior.
    # TODO(synk): the slab stays f32 (robust sublane-offset addressing); MXU
    #             operands are cast to bf16 at the dot instead.
    slab_ref[...] = jnp.zeros_like(slab_ref)
    slab_ref[1:TH + 1, 1:Wi + 1, :] = bnrelu(band_ref[0])

    @pl.when(t > 0)                 # skip discarded halo work at the grid edges
    def _():
        slab_ref[0:1, 1:Wi + 1, :] = bnrelu(top_ref[0])

    @pl.when(t < nth - 1)
    def _():
        slab_ref[TH + 1:TH + 2, 1:Wi + 1, :] = bnrelu(bot_ref[0])

    slab = slab_ref[...]                                  # (TH+2, Wi+2, C) f32
    if C % 128 == 0:
        # Single K=9*C im2col matmul (lane concat is layout-free when C%128==0).
        taps = [slab[ky:ky + TH, kx:kx + Wi, :].astype(mdt)
                for ky in range(3) for kx in range(3)]
        patches = jnp.concatenate(taps, axis=-1).reshape(TH * Wi, 9 * C)
        y = jnp.dot(patches, w9_ref[...], preferred_element_type=jnp.float32)
    else:
        # Narrow-channel fallback: 9 accumulated K=C taps.
        y = jnp.zeros((TH * Wi, Cout), jnp.float32)
        for ky in range(3):
            for kx in range(3):
                win = slab[ky:ky + TH, kx:kx + Wi, :].reshape(TH * Wi, C)
                wk = w9_ref[(ky * 3 + kx) * C:(ky * 3 + kx + 1) * C, :]
                y = y + jnp.dot(win.astype(mdt), wk,
                                preferred_element_type=jnp.float32)
    y = y + b_ref[0:1, :]
    o_ref[0] = y.astype(o_ref.dtype)
    # Per-tile moments + extrema: BN2d stats and attention max-pool inputs.
    st_ref[0, 0, 0:1, :] = jnp.sum(y, axis=0, keepdims=True)
    st_ref[0, 0, 1:2, :] = jnp.sum(y * y, axis=0, keepdims=True)
    st_ref[0, 0, 2:3, :] = jnp.max(y, axis=0, keepdims=True)
    st_ref[0, 0, 3:4, :] = jnp.min(y, axis=0, keepdims=True)


def _combine_conv2_kernel(o1_ref, o2_ref, o3_ref, bn_ref, a_ref, w2_ref, b2_ref,
                          y_ref, st_ref):
    # Fused: per-branch bn2d-affine + ReLU, attention weighting, 1x1x1 conv
    # (C -> 4C), plus per-tile [sum, sumsq] for bn2.
    def branch(o_ref, i):
        v = (o_ref[0].astype(jnp.float32) * bn_ref[2 * i:2 * i + 1, :]
             + bn_ref[2 * i + 1:2 * i + 2, :])
        return jnp.maximum(v, 0.0) * a_ref[0, i:i + 1, :]

    xc = branch(o1_ref, 0) + branch(o2_ref, 1) + branch(o3_ref, 2)     # (TS, C)
    y = jnp.dot(xc.astype(w2_ref.dtype), w2_ref[...],
                preferred_element_type=jnp.float32) + b2_ref[0:1, :]
    y_ref[0] = y.astype(y_ref.dtype)
    st_ref[0, 0, 0:1, :] = jnp.sum(y, axis=0, keepdims=True)
    st_ref[0, 0, 1:2, :] = jnp.sum(y * y, axis=0, keepdims=True)


def _bn_add_relu_kernel(x_ref, r_ref, p_ref, o_ref):
    # p rows: [scale_x, shift_x, scale_r, shift_r]  (lane-dense / pre-tiled)
    y = (x_ref[...].astype(jnp.float32) * p_ref[0:1, :] + p_ref[1:2, :]
         + r_ref[...].astype(jnp.float32) * p_ref[2:3, :] + p_ref[3:4, :])
    o_ref[...] = jnp.maximum(y, 0.0).astype(o_ref.dtype)


# --------------------------------------------------------------------------
# pallas_call wrappers
# --------------------------------------------------------------------------
def conv1_and_downsample(x_flat, w1, b1, wd, store_dtype):
    M, Cin = x_flat.shape
    C = w1.shape[-1]
    C4 = wd.shape[-1]
    sb = jnp.dtype(store_dtype).itemsize
    TM = _pick_rows(M, Cin * x_flat.dtype.itemsize + (C + C4) * sb)
    nt = M // TM
    return pl.pallas_call(
        _conv1_ds_kernel,
        grid=(nt,),
        in_specs=[pl.BlockSpec((TM, Cin), lambda i: (i, 0)),
                  pl.BlockSpec((Cin, C), lambda i: (0, 0)),
                  pl.BlockSpec((1, C), lambda i: (0, 0)),
                  pl.BlockSpec((Cin, C4), lambda i: (0, 0))],
        out_specs=[pl.BlockSpec((TM, C), lambda i: (i, 0)),
                   pl.BlockSpec((TM, C4), lambda i: (i, 0)),
                   pl.BlockSpec((1, 2, C), lambda i: (i, 0, 0)),
                   pl.BlockSpec((1, 2, C4), lambda i: (i, 0, 0))],
        out_shape=[jax.ShapeDtypeStruct((M, C), store_dtype),
                   jax.ShapeDtypeStruct((M, C4), store_dtype),
                   jax.ShapeDtypeStruct((nt, 2, C), jnp.float32),
                   jax.ShapeDtypeStruct((nt, 2, C4), jnp.float32)],
        compiler_params=_cparams("parallel"),
    )(x_flat, w1, b1.reshape(1, C), wd)


def conv1_only(x_flat, w1, b1, store_dtype):
    M, Cin = x_flat.shape
    C = w1.shape[-1]
    sb = jnp.dtype(store_dtype).itemsize
    TM = _pick_rows(M, Cin * x_flat.dtype.itemsize + C * sb)
    nt = M // TM
    return pl.pallas_call(
        _conv1_kernel,
        grid=(nt,),
        in_specs=[pl.BlockSpec((TM, Cin), lambda i: (i, 0)),
                  pl.BlockSpec((Cin, C), lambda i: (0, 0)),
                  pl.BlockSpec((1, C), lambda i: (0, 0))],
        out_specs=[pl.BlockSpec((TM, C), lambda i: (i, 0)),
                   pl.BlockSpec((1, 2, C), lambda i: (i, 0, 0))],
        out_shape=[jax.ShapeDtypeStruct((M, C), store_dtype),
                   jax.ShapeDtypeStruct((nt, 2, C), jnp.float32)],
        compiler_params=_cparams("parallel"),
    )(x_flat, w1, b1.reshape(1, C))


def branch_conv3x3(img, bn1_rows, w9, bias, store_dtype):
    """3x3 'same' conv over a channels-last 2D view (B, Hi, Wi, C)."""
    B, Hi, Wi, C = img.shape
    Cout = w9.shape[-1]
    TH = _pick_th(Hi, Wi, C, Cout)
    nth = Hi // TH

    halo_top = pl.BlockSpec(
        (1, 1, Wi, C), lambda b, t: (b, jnp.maximum(t * TH - 1, 0), 0, 0))
    band = pl.BlockSpec((1, TH, Wi, C), lambda b, t: (b, t, 0, 0))
    halo_bot = pl.BlockSpec(
        (1, 1, Wi, C), lambda b, t: (b, jnp.minimum(t * TH + TH, Hi - 1), 0, 0))

    return pl.pallas_call(
        _branch_conv_kernel,
        grid=(B, nth),
        in_specs=[halo_top, band, halo_bot,
                  pl.BlockSpec((2, C), lambda b, t: (0, 0)),
                  pl.BlockSpec((9 * C, Cout), lambda b, t: (0, 0)),
                  pl.BlockSpec((1, Cout), lambda b, t: (0, 0))],
        out_specs=[pl.BlockSpec((1, TH * Wi, Cout), lambda b, t: (b, t, 0)),
                   pl.BlockSpec((1, 1, 4, Cout), lambda b, t: (b, t, 0, 0))],
        out_shape=[jax.ShapeDtypeStruct((B, Hi * Wi, Cout), store_dtype),
                   jax.ShapeDtypeStruct((B, nth, 4, Cout), jnp.float32)],
        scratch_shapes=[pltpu.VMEM((TH + 2, Wi + 2, C), jnp.float32)],
        compiler_params=_cparams("parallel", "parallel"),
        # the same array backs the halo-top / band / halo-bottom specs
    )(img, img, img, bn1_rows, w9, bias.reshape(1, Cout))


def combine_conv2(o1, o2, o3, bn2d_rows, a_all, w2, b2, store_dtype):
    B, S, C = o1.shape
    C4 = w2.shape[-1]
    sb = jnp.dtype(store_dtype).itemsize
    TS = _pick_rows(S, 3 * C * o1.dtype.itemsize + C4 * sb)
    ns = S // TS
    o_spec = pl.BlockSpec((1, TS, C), lambda b, s: (b, s, 0))
    return pl.pallas_call(
        _combine_conv2_kernel,
        grid=(B, ns),
        in_specs=[o_spec, o_spec, o_spec,
                  pl.BlockSpec((6, C), lambda b, s: (0, 0)),
                  pl.BlockSpec((1, 3, C), lambda b, s: (b, 0, 0)),
                  pl.BlockSpec((C, C4), lambda b, s: (0, 0)),
                  pl.BlockSpec((1, C4), lambda b, s: (0, 0))],
        out_specs=[pl.BlockSpec((1, TS, C4), lambda b, s: (b, s, 0)),
                   pl.BlockSpec((1, 1, 2, C4), lambda b, s: (b, s, 0, 0))],
        out_shape=[jax.ShapeDtypeStruct((B, S, C4), store_dtype),
                   jax.ShapeDtypeStruct((B, ns, 2, C4), jnp.float32)],
        compiler_params=_cparams("parallel", "parallel"),
    )(o1, o2, o3, bn2d_rows, a_all, w2, b2.reshape(1, C4))


def bn_add_relu(x, sx, tx, r, sr, tr):
    """relu(x*sx+tx + r*sr+tr); reshaped to a lane-dense (rows, 128) layout when
    the channel count is narrower than a vreg lane (unmasked stores)."""
    M, Cc = x.shape
    k = 1
    if Cc < 128 and 128 % Cc == 0 and M % (128 // Cc) == 0:
        k = 128 // Cc
    Mr, L = M // k, Cc * k
    rows = jnp.stack([jnp.tile(sx, k), jnp.tile(tx, k),
                      jnp.tile(sr, k), jnp.tile(tr, k)], axis=0)       # (4, L)
    TM = _pick_rows(Mr, L * (x.dtype.itemsize + r.dtype.itemsize + 4))
    out = pl.pallas_call(
        _bn_add_relu_kernel,
        grid=(Mr // TM,),
        in_specs=[pl.BlockSpec((TM, L), lambda i: (i, 0)),
                  pl.BlockSpec((TM, L), lambda i: (i, 0)),
                  pl.BlockSpec((4, L), lambda i: (0, 0))],
        out_specs=pl.BlockSpec((TM, L), lambda i: (i, 0)),
        out_shape=jax.ShapeDtypeStruct((Mr, L), jnp.float32),
        compiler_params=_cparams("parallel"),
    )(x.reshape(Mr, L), r.reshape(Mr, L), rows)
    return out.reshape(M, Cc)


# --------------------------------------------------------------------------
# glue helpers
# --------------------------------------------------------------------------
def _affine_from_stats(ssum, ssq, count, gamma, beta):
    # TODO(synk): one-pass sumsq/N - mean^2 can cancel for very large counts;
    #             a shifted two-pass combine would be more robust.
    mean = ssum / count
    var = jnp.maximum(ssq / count - mean * mean, 0.0)   # biased batch var
    scale = gamma / jnp.sqrt(var + EPS)
    shift = beta - mean * scale
    return scale, shift


def init_params(key, in_channel, channel):
    C, C4 = channel, 4 * channel
    ks = jax.random.split(key, 11)
    nrm = lambda k, shp, s: jax.random.normal(k, shp, jnp.float32) * s
    lin = lambda a, b, n: jnp.linspace(a, b, n).astype(jnp.float32)
    return dict(
        conv1_w=nrm(ks[0], (in_channel, C), 0.3), conv1_b=nrm(ks[1], (C,), 0.1),
        conv_w=nrm(ks[2], (3, 3, C, C), 0.2),     conv_b=nrm(ks[3], (C,), 0.1),
        conv2_w=nrm(ks[4], (C, C4), 0.2),         conv2_b=nrm(ks[5], (C4,), 0.1),
        ds_w=nrm(ks[6], (in_channel, C4), 0.2),
        att_conv_w=nrm(ks[7], (C, C), 0.3),       att_conv_b=nrm(ks[8], (C,), 0.1),
        att_lin_w=nrm(ks[9], (3 * C, 3 * C), 0.2),
        att_lin_b=nrm(ks[10], (3 * C,), 0.1),
        bn1_g=lin(0.8, 1.2, C),   bn1_b=lin(-0.1, 0.1, C),
        bn2d_g=lin(0.9, 1.1, C),  bn2d_b=lin(-0.05, 0.05, C),
        bn2_g=lin(0.8, 1.2, C4),  bn2_b=lin(-0.1, 0.1, C4),
        ds_bn_g=lin(0.9, 1.1, C4), ds_bn_b=lin(-0.05, 0.05, C4),
    )


# --------------------------------------------------------------------------
# costblock forward (Pallas path)
# --------------------------------------------------------------------------
def costblock_forward(params, x, channel, stride=1, mxu_dtype=jnp.float32):
    assert stride == 1, "only stride=1 implemented"
    B, Cin, D, H, W = x.shape
    C, C4 = channel, 4 * channel
    S = D * H * W
    M = B * S

    mxu_dtype = jnp.dtype(mxu_dtype)
    store_dtype = jnp.bfloat16 if mxu_dtype == jnp.bfloat16 else jnp.float32
    cast = lambda w: w.astype(mxu_dtype)
    x_cl = jnp.transpose(x, (0, 2, 3, 4, 1)).reshape(M, Cin)

    # --- conv1 (1x1x1) + downsample (1x1x1, no bias), fused, with BN stats ---
    need_ds = (Cin != C4) or (stride != 1)
    if need_ds:
        h, sc, hst, sst = conv1_and_downsample(
            x_cl, cast(params["conv1_w"]), params["conv1_b"], cast(params["ds_w"]),
            store_dtype)
        ssc, tsc = _affine_from_stats(sst[:, 0].sum(0), sst[:, 1].sum(0), M,
                                      params["ds_bn_g"], params["ds_bn_b"])
    else:
        h, hst = conv1_only(x_cl, cast(params["conv1_w"]), params["conv1_b"],
                            store_dtype)
        sc = x_cl
        ssc = jnp.ones((C4,), jnp.float32)
        tsc = jnp.zeros((C4,), jnp.float32)
    s1, t1 = _affine_from_stats(hst[:, 0].sum(0), hst[:, 1].sum(0), M,
                                params["bn1_g"], params["bn1_b"])
    bn1_rows = jnp.stack([s1, t1], axis=0)                              # (2, C)

    # --- three 2D "views" of the raw feature map; bn1+relu happens inside the
    #     conv kernel so raw h is read once per branch.
    h5 = h.reshape(B, D, H, W, C)
    img1 = h.reshape(B, D, H * W, C)
    # TODO(synk): fetch view-2 / view-3 bands straight from h5 with view-specific
    #             BlockSpecs + an in-kernel relabel instead of these two HBM
    #             transposes; the view-3 permutation moves the sublane axis
    #             (risky relayout), so it stays on the XLA side for now.
    img2 = jnp.transpose(h5, (0, 2, 1, 3, 4)).reshape(B, H, D * W, C)
    img3 = jnp.transpose(h5, (0, 3, 2, 1, 4)).reshape(B, W, H * D, C)

    w9 = cast(params["conv_w"].reshape(9 * C, C))
    outs, stats = [], []
    for img in (img1, img2, img3):
        y, st = branch_conv3x3(img, bn1_rows, w9, params["conv_b"], store_dtype)
        outs.append(y)                 # (B, S, C): matches PyTorch's .view re-label
        stats.append(st)

    # --- per-branch BatchNorm2d affine + attention max-pool from conv stats ---
    bn_rows, pooled = [], []
    for st in stats:
        s_b, t_b = _affine_from_stats(st[:, :, 0].sum((0, 1)),
                                      st[:, :, 1].sum((0, 1)), M,
                                      params["bn2d_g"], params["bn2d_b"])
        bn_rows += [s_b, t_b]
        mx = st[:, :, 2].max(axis=1)                      # (B, C)
        mn = st[:, :, 3].min(axis=1)
        ext = jnp.where(s_b >= 0, s_b * mx, s_b * mn) + t_b
        pooled.append(jnp.maximum(ext, 0.0))              # AdaptiveMaxPool3d(1)
    bn2d_rows = jnp.stack(bn_rows, axis=0)                # (6, C)

    # --- attention block: a few KFLOPs -> plain XLA (no extra kernel launches) ---
    p = jnp.concatenate(pooled, axis=0)                                  # (3B, C)
    q = p @ params["att_conv_w"] + params["att_conv_b"]
    a = jnp.concatenate([q[:B], q[B:2 * B], q[2 * B:]], axis=1)          # (B, 3C)
    a = a @ params["att_lin_w"] + params["att_lin_b"]
    a = jax.nn.softmax(a, axis=0)               # softmax over the batch dimension
    a_all = jnp.stack([a[:, :C], a[:, C:2 * C], a[:, 2 * C:]], axis=1)   # (B,3,C)

    # --- per-branch bn+relu + attention weighting + conv2 (C->4C), fused ---
    y2, y2st = combine_conv2(outs[0], outs[1], outs[2], bn2d_rows, a_all,
                             cast(params["conv2_w"]), params["conv2_b"],
                             store_dtype)
    s2, t2 = _affine_from_stats(y2st[:, :, 0].sum((0, 1)),
                                y2st[:, :, 1].sum((0, 1)), M,
                                params["bn2_g"], params["bn2_b"])

    # --- bn2 + shortcut-BN + residual add + relu (lane-dense elementwise) ---
    out2d = bn_add_relu(y2.reshape(M, C4), s2, t2, sc, ssc, tsc)
    return jnp.transpose(out2d.reshape(B, D, H, W, C4), (0, 4, 1, 2, 3))


# --------------------------------------------------------------------------
# Pure-JAX reference (mirrors the PyTorch forward, NCDHW) for verification
# --------------------------------------------------------------------------
def costblock_reference(params, x, channel, stride=1):
    B, Cin, D, H, W = x.shape
    C, C4 = channel, 4 * channel

    def bn_train(v, g, b, axes):
        mean = jnp.mean(v, axis=axes, keepdims=True)
        var = jnp.var(v, axis=axes, keepdims=True)
        shp = [1] * v.ndim
        shp[1] = -1
        return (v - mean) / jnp.sqrt(var + EPS) * g.reshape(shp) + b.reshape(shp)

    def conv1x1x1(v, w, b=None):
        y = jnp.einsum('bidhw,io->bodhw', v, w)
        return y if b is None else y + b.reshape(1, -1, 1, 1, 1)

    def conv2d_3x3(v, w, b):
        y = lax.conv_general_dilated(v, w, (1, 1), ((1, 1), (1, 1)),
                                     dimension_numbers=('NCHW', 'HWIO', 'NCHW'))
        return y + b.reshape(1, -1, 1, 1)

    if Cin != C4 or stride != 1:
        sc = bn_train(conv1x1x1(x, params["ds_w"]),
                      params["ds_bn_g"], params["ds_bn_b"], (0, 2, 3, 4))
    else:
        sc = x

    h = conv1x1x1(x, params["conv1_w"], params["conv1_b"])
    h = jnp.maximum(bn_train(h, params["bn1_g"], params["bn1_b"], (0, 2, 3, 4)), 0.)

    x1 = h.reshape(B, C, D, H * W)
    x2 = jnp.transpose(h, (0, 1, 3, 2, 4)).reshape(B, C, H, D * W)
    x3 = jnp.transpose(h, (0, 1, 4, 3, 2)).reshape(B, C, W, H * D)

    outs = []
    for xi in (x1, x2, x3):
        yi = conv2d_3x3(xi, params["conv_w"], params["conv_b"])
        yi = jnp.maximum(bn_train(yi, params["bn2d_g"], params["bn2d_b"],
                                  (0, 2, 3)), 0.)
        outs.append(yi.reshape(B, C, D, H, W))
    out1, out2, out3 = outs

    def att_branch(o):
        p = jnp.max(o, axis=(2, 3, 4))
        return p @ params["att_conv_w"] + params["att_conv_b"]

    a = jnp.concatenate([att_branch(out1), att_branch(out2), att_branch(out3)], 1)
    a = a @ params["att_lin_w"] + params["att_lin_b"]
    a = jax.nn.softmax(a, axis=0)
    a1, a2, a3 = a[:, :C], a[:, C:2 * C], a[:, 2 * C:]

    comb = (out1 * a1[:, :, None, None, None]
            + out2 * a2[:, :, None, None, None]
            + out3 * a3[:, :, None, None, None])
    y = conv1x1x1(comb, params["conv2_w"], params["conv2_b"])
    y = bn_train(y, params["bn2_g"], params["bn2_b"], (0, 2, 3, 4))
    return jnp.maximum(y + sc, 0.)


# --------------------------------------------------------------------------
if __name__ == "__main__":
    key = jax.random.PRNGKey(0)
    kx, kp = jax.random.split(key)

    B, Cin, D, H, W = 2, 8, 4, 4, 4
    channel = 4                       # C4 = 16 != Cin -> downsample path active
    x = jax.random.normal(kx, (B, Cin, D, H, W), jnp.float32)
    params = init_params(kp, Cin, channel)

    fwd32 = jax.jit(functools.partial(costblock_forward, channel=channel))
    out = jax.block_until_ready(fwd32(params, x))
    assert out.shape == (B, 4 * channel, D, H, W)
    assert bool(jnp.all(jnp.isfinite(out)))

    ref = costblock_reference(params, x, channel)
    scale = float(jnp.max(jnp.abs(ref))) + 1e-6
    err = float(jnp.max(jnp.abs(out - ref)))
    assert err < 5e-3 + 1e-3 * scale, f"mismatch vs reference: {err}"

    # bf16 MXU operands + bf16 HBM intermediates; elementwise math / stats stay fp32.
    fwd16 = jax.jit(functools.partial(costblock_forward, channel=channel,
                                      mxu_dtype=jnp.bfloat16))
    out_bf16 = jax.block_until_ready(fwd16(params, x))
    assert bool(jnp.all(jnp.isfinite(out_bf16)))
    err_bf16 = float(jnp.max(jnp.abs(out_bf16 - ref)))
    assert err_bf16 < 0.1 * scale + 0.2, f"bf16 path diverged: {err_bf16}"

    print("KERNEL_OK")
</pallas_src>

<mosaic_0001>
module attributes {stable_mosaic.version = 11 : i64} {
  func.func @_conv1_ds_kernel(%arg0: i32, %arg1: memref<64x8xf32, #tpu.memory_space<vmem>>, %arg2: memref<8x4xf32, #tpu.memory_space<vmem>>, %arg3: memref<1x4xf32, #tpu.memory_space<vmem>>, %arg4: memref<8x16xf32, #tpu.memory_space<vmem>>, %arg5: memref<64x4xf32, #tpu.memory_space<vmem>>, %arg6: memref<64x16xf32, #tpu.memory_space<vmem>>, %arg7: memref<1x2x4xf32, #tpu.memory_space<vmem>>, %arg8: memref<1x2x16xf32, #tpu.memory_space<vmem>>) attributes {dimension_semantics = [#tpu.dimension_semantics<parallel>], iteration_bounds = array<i64: 2>, scalar_prefetch = 0 : i64, scratch_operands = 0 : i64, tpu.core_type = #tpu.core_type<tc>, window_params = [{transform_indices = @transform_0, window_bounds = array<i64: 64, 8>}, {pipeline_mode = #tpu.pipeline_mode<synchronous>, transform_indices = @transform_1, window_bounds = array<i64: 8, 4>}, {pipeline_mode = #tpu.pipeline_mode<synchronous>, transform_indices = @transform_2, window_bounds = array<i64: 1, 4>}, {pipeline_mode = #tpu.pipeline_mode<synchronous>, transform_indices = @transform_3, window_bounds = array<i64: 8, 16>}, {transform_indices = @transform_4, window_bounds = array<i64: 64, 4>}, {transform_indices = @transform_5, window_bounds = array<i64: 64, 16>}, {transform_indices = @transform_6, window_bounds = array<i64: 1, 2, 4>}, {transform_indices = @transform_7, window_bounds = array<i64: 1, 2, 16>}]} {
    %c0 = arith.constant 0 : index
    %c0_0 = arith.constant 0 : index
    %0 = vector.load %arg1[%c0, %c0_0] : memref<64x8xf32, #tpu.memory_space<vmem>>, vector<64x8xf32>
    %c0_1 = arith.constant 0 : index
    %c0_2 = arith.constant 0 : index
    %1 = vector.load %arg2[%c0_1, %c0_2] : memref<8x4xf32, #tpu.memory_space<vmem>>, vector<8x4xf32>
    %cst = arith.constant dense<0.000000e+00> : vector<64x4xf32>
    %2 = tpu.matmul %0, %1, %cst {dimension_numbers = #tpu.dot_dimension_numbers<[1], [0], [0], [1], [0, 0, 1, 1], [], []>} : vector<64x8xf32>, vector<8x4xf32>, vector<64x4xf32> -> vector<64x4xf32>
    %c0_3 = arith.constant 0 : index
    %c0_4 = arith.constant 0 : index
    %3 = vector.load %arg3[%c0_3, %c0_4] : memref<1x4xf32, #tpu.memory_space<vmem>>, vector<1x4xf32>
    %4 = vector.broadcast %3 : vector<1x4xf32> to vector<64x4xf32>
    %5 = arith.addf %2, %4 : vector<64x4xf32>
    %c0_5 = arith.constant 0 : index
    %c0_6 = arith.constant 0 : index
    %6 = vector.load %arg4[%c0_5, %c0_6] : memref<8x16xf32, #tpu.memory_space<vmem>>, vector<8x16xf32>
    %cst_7 = arith.constant dense<0.000000e+00> : vector<64x16xf32>
    %7 = tpu.matmul %0, %6, %cst_7 {dimension_numbers = #tpu.dot_dimension_numbers<[1], [0], [0], [1], [0, 0, 1, 1], [], []>} : vector<64x8xf32>, vector<8x16xf32>, vector<64x16xf32> -> vector<64x16xf32>
    %c0_8 = arith.constant 0 : index
    %c0_9 = arith.constant 0 : index
    %8 = vector.load %arg5[%c0_8, %c0_9] : memref<64x4xf32, #tpu.memory_space<vmem>>, vector<64x4xf32>
    tpu.vector_store %arg5[%c0_8, %c0_9], %5 {strides = array<i32>} : memref<64x4xf32, #tpu.memory_space<vmem>>, vector<64x4xf32>,
    %c0_10 = arith.constant 0 : index
    %c0_11 = arith.constant 0 : index
    %9 = vector.load %arg6[%c0_10, %c0_11] : memref<64x16xf32, #tpu.memory_space<vmem>>, vector<64x16xf32>
    tpu.vector_store %arg6[%c0_10, %c0_11], %7 {strides = array<i32>} : memref<64x16xf32, #tpu.memory_space<vmem>>, vector<64x16xf32>,
    %cst_12 = arith.constant dense<0.000000e+00> : vector<4xf32>
    %10 = vector.multi_reduction <add>, %5, %cst_12 [0] : vector<64x4xf32> to vector<4xf32>
    %11 = vector.shape_cast %10 : vector<4xf32> to vector<1x4xf32>
    %c0_13 = arith.constant 0 : index
    %c0_14 = arith.constant 0 : index
    %c0_15 = arith.constant 0 : index
    %12 = vector.load %arg7[%c0_13, %c0_14, %c0_15] : memref<1x2x4xf32, #tpu.memory_space<vmem>>, vector<1x1x4xf32>
    %13 = vector.shape_cast %12 : vector<1x1x4xf32> to vector<1x4xf32>
    %14 = vector.shape_cast %11 : vector<1x4xf32> to vector<1x1x4xf32>
    tpu.vector_store %arg7[%c0_13, %c0_14, %c0_15], %14 {strides = array<i32>} : memref<1x2x4xf32, #tpu.memory_space<vmem>>, vector<1x1x4xf32>,
    %15 = arith.mulf %5, %5 : vector<64x4xf32>
    %cst_16 = arith.constant dense<0.000000e+00> : vector<4xf32>
    %16 = vector.multi_reduction <add>, %15, %cst_16 [0] : vector<64x4xf32> to vector<4xf32>
    %17 = vector.shape_cast %16 : vector<4xf32> to vector<1x4xf32>
    %c0_17 = arith.constant 0 : index
    %c1 = arith.constant 1 : index
    %c0_18 = arith.constant 0 : index
    %18 = vector.load %arg7[%c0_17, %c1, %c0_18] : memref<1x2x4xf32, #tpu.memory_space<vmem>>, vector<1x1x4xf32>
    %19 = vector.shape_cast %18 : vector<1x1x4xf32> to vector<1x4xf32>
    %20 = vector.shape_cast %17 : vector<1x4xf32> to vector<1x1x4xf32>
    tpu.vector_store %arg7[%c0_17, %c1, %c0_18], %20 {strides = array<i32>} : memref<1x2x4xf32, #tpu.memory_space<vmem>>, vector<1x1x4xf32>,
    %cst_19 = arith.constant dense<0.000000e+00> : vector<16xf32>
    %21 = vector.multi_reduction <add>, %7, %cst_19 [0] : vector<64x16xf32> to vector<16xf32>
    %22 = vector.shape_cast %21 : vector<16xf32> to vector<1x16xf32>
    %c0_20 = arith.constant 0 : index
    %c0_21 = arith.constant 0 : index
    %c0_22 = arith.constant 0 : index
    %23 = vector.load %arg8[%c0_20, %c0_21, %c0_22] : memref<1x2x16xf32, #tpu.memory_space<vmem>>, vector<1x1x16xf32>
    %24 = vector.shape_cast %23 : vector<1x1x16xf32> to vector<1x16xf32>
    %25 = vector.shape_cast %22 : vector<1x16xf32> to vector<1x1x16xf32>
    tpu.vector_store %arg8[%c0_20, %c0_21, %c0_22], %25 {strides = array<i32>} : memref<1x2x16xf32, #tpu.memory_space<vmem>>, vector<1x1x16xf32>,
    %26 = arith.mulf %7, %7 : vector<64x16xf32>
    %cst_23 = arith.constant dense<0.000000e+00> : vector<16xf32>
    %27 = vector.multi_reduction <add>, %26, %cst_23 [0] : vector<64x16xf32> to vector<16xf32>
    %28 = vector.shape_cast %27 : vector<16xf32> to vector<1x16xf32>
    %c0_24 = arith.constant 0 : index
    %c1_25 = arith.constant 1 : index
    %c0_26 = arith.constant 0 : index
    %29 = vector.load %arg8[%c0_24, %c1_25, %c0_26] : memref<1x2x16xf32, #tpu.memory_space<vmem>>, vector<1x1x16xf32>
    %30 = vector.shape_cast %29 : vector<1x1x16xf32> to vector<1x16xf32>
    %31 = vector.shape_cast %28 : vector<1x16xf32> to vector<1x1x16xf32>
    tpu.vector_store %arg8[%c0_24, %c1_25, %c0_26], %31 {strides = array<i32>} : memref<1x2x16xf32, #tpu.memory_space<vmem>>, vector<1x1x16xf32>,
    return
  }
  func.func @transform_0(%arg0: i32) -> (i32, i32) {
    %c0_i32 = arith.constant 0 : i32
    %c0_i32_0 = arith.constant 0 : i32
    return %arg0, %c0_i32 : i32, i32
  }
  func.func @transform_1(%arg0: i32) -> (i32, i32) {
    %c0_i32 = arith.constant 0 : i32
    %c0_i32_0 = arith.constant 0 : i32
    %c0_i32_1 = arith.constant 0 : i32
    return %c0_i32, %c0_i32_0 : i32, i32
  }
  func.func @transform_2(%arg0: i32) -> (i32, i32) {
    %c0_i32 = arith.constant 0 : i32
    %c0_i32_0 = arith.constant 0 : i32
    %c0_i32_1 = arith.constant 0 : i32
    return %c0_i32, %c0_i32_0 : i32, i32
  }
  func.func @transform_3(%arg0: i32) -> (i32, i32) {
    %c0_i32 = arith.constant 0 : i32
    %c0_i32_0 = arith.constant 0 : i32
    %c0_i32_1 = arith.constant 0 : i32
    return %c0_i32, %c0_i32_0 : i32, i32
  }
  func.func @transform_4(%arg0: i32) -> (i32, i32) {
    %c0_i32 = arith.constant 0 : i32
    %c0_i32_0 = arith.constant 0 : i32
    return %arg0, %c0_i32 : i32, i32
  }
  func.func @transform_5(%arg0: i32) -> (i32, i32) {
    %c0_i32 = arith.constant 0 : i32
    %c0_i32_0 = arith.constant 0 : i32
    return %arg0, %c0_i32 : i32, i32
  }
  func.func @transform_6(%arg0: i32) -> (i32, i32, i32) {
    %c0_i32 = arith.constant 0 : i32
    %c0_i32_0 = arith.constant 0 : i32
    %c0_i32_1 = arith.constant 0 : i32
    return %arg0, %c0_i32, %c0_i32_0 : i32, i32, i32
  }
  func.func @transform_7(%arg0: i32) -> (i32, i32, i32) {
    %c0_i32 = arith.constant 0 : i32
    %c0_i32_0 = arith.constant 0 : i32
    %c0_i32_1 = arith.constant 0 : i32
    return %arg0, %c0_i32, %c0_i32_0 : i32, i32, i32
  }
}

module attributes {stable_mosaic.version = 11 : i64} {
  func.func @_branch_conv_kernel(%arg0: i32, %arg1: i32, %arg2: memref<1x1x16x4xf32, #tpu.memory_space<vmem>>, %arg3: memref<1x4x16x4xf32, #tpu.memory_space<vmem>>, %arg4: memref<1x1x16x4xf32, #tpu.memory_space<vmem>>, %arg5: memref<2x4xf32, #tpu.memory_space<vmem>>, %arg6: memref<36x4xf32, #tpu.memory_space<vmem>>, %arg7: memref<1x4xf32, #tpu.memory_space<vmem>>, %arg8: memref<1x64x4xf32, #tpu.memory_space<vmem>>, %arg9: memref<1x1x4x4xf32, #tpu.memory_space<vmem>>, %arg10: memref<6x18x4xf32, #tpu.memory_space<vmem>>) attributes {dimension_semantics = [#tpu.dimension_semantics<parallel>, #tpu.dimension_semantics<parallel>], iteration_bounds = array<i64: 2, 1>, scalar_prefetch = 0 : i64, scratch_operands = 1 : i64, tpu.core_type = #tpu.core_type<tc>, window_params = [{transform_indices = @transform_0, window_bounds = array<i64: 1, 1, 16, 4>}, {transform_indices = @transform_1, window_bounds = array<i64: 1, 4, 16, 4>}, {transform_indices = @transform_2, window_bounds = array<i64: 1, 1, 16, 4>}, {pipeline_mode = #tpu.pipeline_mode<synchronous>, transform_indices = @transform_3, window_bounds = array<i64: 2, 4>}, {pipeline_mode = #tpu.pipeline_mode<synchronous>, transform_indices = @transform_4, window_bounds = array<i64: 36, 4>}, {pipeline_mode = #tpu.pipeline_mode<synchronous>, transform_indices = @transform_5, window_bounds = array<i64: 1, 4>}, {transform_indices = @transform_6, window_bounds = array<i64: 1, 64, 4>}, {transform_indices = @transform_7, window_bounds = array<i64: 1, 1, 4, 4>}]} {
    %c0 = arith.constant 0 : index
    %c0_0 = arith.constant 0 : index
    %0 = vector.load %arg5[%c0, %c0_0] : memref<2x4xf32, #tpu.memory_space<vmem>>, vector<1x4xf32>
    %1 = vector.shape_cast %0 : vector<1x4xf32> to vector<1x1x4xf32>
    %c1 = arith.constant 1 : index
    %c0_1 = arith.constant 0 : index
    %2 = vector.load %arg5[%c1, %c0_1] : memref<2x4xf32, #tpu.memory_space<vmem>>, vector<1x4xf32>
    %3 = vector.shape_cast %2 : vector<1x4xf32> to vector<1x1x4xf32>
    %cst = arith.constant 0.000000e+00 : f32
    %4 = vector.broadcast %cst : f32 to vector<6x18x4xf32>
    %c0_2 = arith.constant 0 : index
    %c0_3 = arith.constant 0 : index
    %c0_4 = arith.constant 0 : index
    %5 = vector.load %arg10[%c0_2, %c0_3, %c0_4] : memref<6x18x4xf32, #tpu.memory_space<vmem>>, vector<6x18x4xf32>
    tpu.vector_store %arg10[%c0_2, %c0_3, %c0_4], %4 {strides = array<i32>} : memref<6x18x4xf32, #tpu.memory_space<vmem>>, vector<6x18x4xf32>,
    %c0_5 = arith.constant 0 : index
    %c0_6 = arith.constant 0 : index
    %c0_7 = arith.constant 0 : index
    %c0_8 = arith.constant 0 : index
    %6 = vector.load %arg3[%c0_5, %c0_6, %c0_7, %c0_8] : memref<1x4x16x4xf32, #tpu.memory_space<vmem>>, vector<1x4x16x4xf32>
    %7 = vector.shape_cast %6 : vector<1x4x16x4xf32> to vector<4x16x4xf32>
    %8 = vector.broadcast %1 : vector<1x1x4xf32> to vector<4x16x4xf32>
    %9 = arith.mulf %7, %8 : vector<4x16x4xf32>
    %10 = vector.broadcast %3 : vector<1x1x4xf32> to vector<4x16x4xf32>
    %11 = arith.addf %9, %10 : vector<4x16x4xf32>
    %cst_9 = arith.constant 0.000000e+00 : f32
    %12 = vector.broadcast %cst_9 : f32 to vector<4x16x4xf32>
    %13 = arith.maximumf %11, %12 : vector<4x16x4xf32>
    %c1_10 = arith.constant 1 : index
    %c1_11 = arith.constant 1 : index
    %c0_12 = arith.constant 0 : index
    %14 = vector.load %arg10[%c1_10, %c1_11, %c0_12] : memref<6x18x4xf32, #tpu.memory_space<vmem>>, vector<4x16x4xf32>
    tpu.vector_store %arg10[%c1_10, %c1_11, %c0_12], %13 {strides = array<i32>} : memref<6x18x4xf32, #tpu.memory_space<vmem>>, vector<4x16x4xf32>,
    %c0_i32 = arith.constant 0 : i32
    %15 = arith.cmpi sgt, %arg1, %c0_i32 : i32
    %16 = arith.extui %15 : i1 to i32
    %c0_i32_13 = arith.constant 0 : i32
    %17 = arith.cmpi ne, %16, %c0_i32_13 : i32
    scf.if %17 {
      %c0_62 = arith.constant 0 : index
      %c0_63 = arith.constant 0 : index
      %c0_64 = arith.constant 0 : index
      %c0_65 = arith.constant 0 : index
      %95 = vector.load %arg2[%c0_62, %c0_63, %c0_64, %c0_65] : memref<1x1x16x4xf32, #tpu.memory_space<vmem>>, vector<1x1x16x4xf32>
      %96 = vector.shape_cast %95 : vector<1x1x16x4xf32> to vector<1x16x4xf32>
      %97 = vector.broadcast %1 : vector<1x1x4xf32> to vector<1x16x4xf32>
      %98 = arith.mulf %96, %97 : vector<1x16x4xf32>
      %99 = vector.broadcast %3 : vector<1x1x4xf32> to vector<1x16x4xf32>
      %100 = arith.addf %98, %99 : vector<1x16x4xf32>
      %cst_66 = arith.constant 0.000000e+00 : f32
      %101 = vector.broadcast %cst_66 : f32 to vector<1x16x4xf32>
      %102 = arith.maximumf %100, %101 : vector<1x16x4xf32>
      %c0_67 = arith.constant 0 : index
      %c1_68 = arith.constant 1 : index
      %c0_69 = arith.constant 0 : index
      %103 = vector.load %arg10[%c0_67, %c1_68, %c0_69] : memref<6x18x4xf32, #tpu.memory_space<vmem>>, vector<1x16x4xf32>
      tpu.vector_store %arg10[%c0_67, %c1_68, %c0_69], %102 {strides = array<i32>} : memref<6x18x4xf32, #tpu.memory_space<vmem>>, vector<1x16x4xf32>,
    } else {
    }
    %c0_i32_14 = arith.constant 0 : i32
    %18 = arith.cmpi slt, %arg1, %c0_i32_14 : i32
    %19 = arith.extui %18 : i1 to i32
    %c0_i32_15 = arith.constant 0 : i32
    %20 = arith.cmpi ne, %19, %c0_i32_15 : i32
    scf.if %20 {
      %c0_62 = arith.constant 0 : index
      %c0_63 = arith.constant 0 : index
      %c0_64 = arith.constant 0 : index
      %c0_65 = arith.constant 0 : index
      %95 = vector.load %arg4[%c0_62, %c0_63, %c0_64, %c0_65] : memref<1x1x16x4xf32, #tpu.memory_space<vmem>>, vector<1x1x16x4xf32>
      %96 = vector.shape_cast %95 : vector<1x1x16x4xf32> to vector<1x16x4xf32>
      %97 = vector.broadcast %1 : vector<1x1x4xf32> to vector<1x16x4xf32>
      %98 = arith.mulf %96, %97 : vector<1x16x4xf32>
      %99 = vector.broadcast %3 : vector<1x1x4xf32> to vector<1x16x4xf32>
      %100 = arith.addf %98, %99 : vector<1x16x4xf32>
      %cst_66 = arith.constant 0.000000e+00 : f32
      %101 = vector.broadcast %cst_66 : f32 to vector<1x16x4xf32>
      %102 = arith.maximumf %100, %101 : vector<1x16x4xf32>
      %c5 = arith.constant 5 : index
      %c1_67 = arith.constant 1 : index
      %c0_68 = arith.constant 0 : index
      %103 = vector.load %arg10[%c5, %c1_67, %c0_68] : memref<6x18x4xf32, #tpu.memory_space<vmem>>, vector<1x16x4xf32>
      tpu.vector_store %arg10[%c5, %c1_67, %c0_68], %102 {strides = array<i32>} : memref<6x18x4xf32, #tpu.memory_space<vmem>>, vector<1x16x4xf32>,
    } else {
    }
    %c0_16 = arith.constant 0 : index
    %c0_17 = arith.constant 0 : index
    %c0_18 = arith.constant 0 : index
    %21 = vector.load %arg10[%c0_16, %c0_17, %c0_18] : memref<6x18x4xf32, #tpu.memory_space<vmem>>, vector<6x18x4xf32>
    %cst_19 = arith.constant 0.000000e+00 : f32
    %22 = vector.broadcast %cst_19 : f32 to vector<64x4xf32>
    %23 = vector.extract_strided_slice %21 {offsets = [0, 0, 0], sizes = [4, 16, 4], strides = [1, 1, 1]} : vector<6x18x4xf32> to vector<4x16x4xf32>
    %24 = vector.shape_cast %23 : vector<4x16x4xf32> to vector<64x4xf32>
    %c0_20 = arith.constant 0 : index
    %c0_21 = arith.constant 0 : index
    %25 = vector.load %arg6[%c0_20, %c0_21] : memref<36x4xf32, #tpu.memory_space<vmem>>, vector<4x4xf32>
    %cst_22 = arith.constant dense<0.000000e+00> : vector<64x4xf32>
    %26 = tpu.matmul %24, %25, %cst_22 {dimension_numbers = #tpu.dot_dimension_numbers<[1], [0], [0], [1], [0, 0, 1, 1], [], []>} : vector<64x4xf32>, vector<4x4xf32>, vector<64x4xf32> -> vector<64x4xf32>
    %27 = arith.addf %22, %26 : vector<64x4xf32>
    %28 = vector.extract_strided_slice %21 {offsets = [0, 1, 0], sizes = [4, 16, 4], strides = [1, 1, 1]} : vector<6x18x4xf32> to vector<4x16x4xf32>
    %29 = vector.shape_cast %28 : vector<4x16x4xf32> to vector<64x4xf32>
    %c4 = arith.constant 4 : index
    %c0_23 = arith.constant 0 : index
    %30 = vector.load %arg6[%c4, %c0_23] : memref<36x4xf32, #tpu.memory_space<vmem>>, vector<4x4xf32>
    %cst_24 = arith.constant dense<0.000000e+00> : vector<64x4xf32>
    %31 = tpu.matmul %29, %30, %cst_24 {dimension_numbers = #tpu.dot_dimension_numbers<[1], [0], [0], [1], [0, 0, 1, 1], [], []>} : vector<64x4xf32>, vector<4x4xf32>, vector<64x4xf32> -> vector<64x4xf32>
    %32 = arith.addf %27, %31 : vector<64x4xf32>
    %33 = vector.extract_strided_slice %21 {offsets = [0, 2, 0], sizes = [4, 16, 4], strides = [1, 1, 1]} : vector<6x18x4xf32> to vector<4x16x4xf32>
    %34 = vector.shape_cast %33 : vector<4x16x4xf32> to vector<64x4xf32>
    %c8 = arith.constant 8 : index
    %c0_25 = arith.constant 0 : index
    %35 = vector.load %arg6[%c8, %c0_25] : memref<36x4xf32, #tpu.memory_space<vmem>>, vector<4x4xf32>
    %cst_26 = arith.constant dense<0.000000e+00> : vector<64x4xf32>
    %36 = tpu.matmul %34, %35, %cst_26 {dimension_numbers = #tpu.dot_dimension_numbers<[1], [0], [0], [1], [0, 0, 1, 1], [], []>} : vector<64x4xf32>, vector<4x4xf32>, vector<64x4xf32> -> vector<64x4xf32>
    %37 = arith.addf %32, %36 : vector<64x4xf32>
    %38 = vector.extract_strided_slice %21 {offsets = [1, 0, 0], sizes = [4, 16, 4], strides = [1, 1, 1]} : vector<6x18x4xf32> to vector<4x16x4xf32>
    %39 = vector.shape_cast %38 : vector<4x16x4xf32> to vector<64x4xf32>
    %c12 = arith.constant 12 : index
    %c0_27 = arith.constant 0 : index
    %40 = vector.load %arg6[%c12, %c0_27] : memref<36x4xf32, #tpu.memory_space<vmem>>, vector<4x4xf32>
    %cst_28 = arith.constant dense<0.000000e+00> : vector<64x4xf32>
    %41 = tpu.matmul %39, %40, %cst_28 {dimension_numbers = #tpu.dot_dimension_numbers<[1], [0], [0], [1], [0, 0, 1, 1], [], []>} : vector<64x4xf32>, vector<4x4xf32>, vector<64x4xf32> -> vector<64x4xf32>
    %42 = arith.addf %37, %41 : vector<64x4xf32>
    %43 = vector.extract_strided_slice %21 {offsets = [1, 1, 0], sizes = [4, 16, 4], strides = [1, 1, 1]} : vector<6x18x4xf32> to vector<4x16x4xf32>
    %44 = vector.shape_cast %43 : vector<4x16x4xf32> to vector<64x4xf32>
    %c16 = arith.constant 16 : index
    %c0_29 = arith.constant 0 : index
    %45 = vector.load %arg6[%c16, %c0_29] : memref<36x4xf32, #tpu.memory_space<vmem>>, vector<4x4xf32>
    %cst_30 = arith.constant dense<0.000000e+00> : vector<64x4xf32>
    %46 = tpu.matmul %44, %45, %cst_30 {dimension_numbers = #tpu.dot_dimension_numbers<[1], [0], [0], [1], [0, 0, 1, 1], [], []>} : vector<64x4xf32>, vector<4x4xf32>, vector<64x4xf32> -> vector<64x4xf32>
    %47 = arith.addf %42, %46 : vector<64x4xf32>
    %48 = vector.extract_strided_slice %21 {offsets = [1, 2, 0], sizes = [4, 16, 4], strides = [1, 1, 1]} : vector<6x18x4xf32> to vector<4x16x4xf32>
    %49 = vector.shape_cast %48 : vector<4x16x4xf32> to vector<64x4xf32>
    %c20 = arith.constant 20 : index
    %c0_31 = arith.constant 0 : index
    %50 = vector.load %arg6[%c20, %c0_31] : memref<36x4xf32, #tpu.memory_space<vmem>>, vector<4x4xf32>
    %cst_32 = arith.constant dense<0.000000e+00> : vector<64x4xf32>
    %51 = tpu.matmul %49, %50, %cst_32 {dimension_numbers = #tpu.dot_dimension_numbers<[1], [0], [0], [1], [0, 0, 1, 1], [], []>} : vector<64x4xf32>, vector<4x4xf32>, vector<64x4xf32> -> vector<64x4xf32>
    %52 = arith.addf %47, %51 : vector<64x4xf32>
    %53 = vector.extract_strided_slice %21 {offsets = [2, 0, 0], sizes = [4, 16, 4], strides = [1, 1, 1]} : vector<6x18x4xf32> to vector<4x16x4xf32>
    %54 = vector.shape_cast %53 : vector<4x16x4xf32> to vector<64x4xf32>
    %c24 = arith.constant 24 : index
    %c0_33 = arith.constant 0 : index
    %55 = vector.load %arg6[%c24, %c0_33] : memref<36x4xf32, #tpu.memory_space<vmem>>, vector<4x4xf32>
    %cst_34 = arith.constant dense<0.000000e+00> : vector<64x4xf32>
    %56 = tpu.matmul %54, %55, %cst_34 {dimension_numbers = #tpu.dot_dimension_numbers<[1], [0], [0], [1], [0, 0, 1, 1], [], []>} : vector<64x4xf32>, vector<4x4xf32>, vector<64x4xf32> -> vector<64x4xf32>
    %57 = arith.addf %52, %56 : vector<64x4xf32>
    %58 = vector.extract_strided_slice %21 {offsets = [2, 1, 0], sizes = [4, 16, 4], strides = [1, 1, 1]} : vector<6x18x4xf32> to vector<4x16x4xf32>
    %59 = vector.shape_cast %58 : vector<4x16x4xf32> to vector<64x4xf32>
    %c28 = arith.constant 28 : index
    %c0_35 = arith.constant 0 : index
    %60 = vector.load %arg6[%c28, %c0_35] : memref<36x4xf32, #tpu.memory_space<vmem>>, vector<4x4xf32>
    %cst_36 = arith.constant dense<0.000000e+00> : vector<64x4xf32>
    %61 = tpu.matmul %59, %60, %cst_36 {dimension_numbers = #tpu.dot_dimension_numbers<[1], [0], [0], [1], [0, 0, 1, 1], [], []>} : vector<64x4xf32>, vector<4x4xf32>, vector<64x4xf32> -> vector<64x4xf32>
    %62 = arith.addf %57, %61 : vector<64x4xf32>
    %63 = vector.extract_strided_slice %21 {offsets = [2, 2, 0], sizes = [4, 16, 4], strides = [1, 1, 1]} : vector<6x18x4xf32> to vector<4x16x4xf32>
    %64 = vector.shape_cast %63 : vector<4x16x4xf32> to vector<64x4xf32>
    %c32 = arith.constant 32 : index
    %c0_37 = arith.constant 0 : index
    %65 = vector.load %arg6[%c32, %c0_37] : memref<36x4xf32, #tpu.memory_space<vmem>>, vector<4x4xf32>
    %cst_38 = arith.constant dense<0.000000e+00> : vector<64x4xf32>
    %66 = tpu.matmul %64, %65, %cst_38 {dimension_numbers = #tpu.dot_dimension_numbers<[1], [0], [0], [1], [0, 0, 1, 1], [], []>} : vector<64x4xf32>, vector<4x4xf32>, vector<64x4xf32> -> vector<64x4xf32>
    %67 = arith.addf %62, %66 : vector<64x4xf32>
    %c0_39 = arith.constant 0 : index
    %c0_40 = arith.constant 0 : index
    %68 = vector.load %arg7[%c0_39, %c0_40] : memref<1x4xf32, #tpu.memory_space<vmem>>, vector<1x4xf32>
    %69 = vector.broadcast %68 : vector<1x4xf32> to vector<64x4xf32>
    %70 = arith.addf %67, %69 : vector<64x4xf32>
    %c0_41 = arith.constant 0 : index
    %c0_42 = arith.constant 0 : index
    %c0_43 = arith.constant 0 : index
    %71 = vector.load %arg8[%c0_41, %c0_42, %c0_43] : memref<1x64x4xf32, #tpu.memory_space<vmem>>, vector<1x64x4xf32>
    %72 = vector.shape_cast %71 : vector<1x64x4xf32> to vector<64x4xf32>
    %73 = vector.shape_cast %70 : vector<64x4xf32> to vector<1x64x4xf32>
    tpu.vector_store %arg8[%c0_41, %c0_42, %c0_43], %73 {strides = array<i32>} : memref<1x64x4xf32, #tpu.memory_space<vmem>>, vector<1x64x4xf32>,
    %cst_44 = arith.constant dense<0.000000e+00> : vector<4xf32>
    %74 = vector.multi_reduction <add>, %70, %cst_44 [0] : vector<64x4xf32> to vector<4xf32>
    %75 = vector.shape_cast %74 : vector<4xf32> to vector<1x4xf32>
    %c0_45 = arith.constant 0 : index
    %c0_46 = arith.constant 0 : index
    %c0_47 = arith.constant 0 : index
    %c0_48 = arith.constant 0 : index
    %76 = vector.load %arg9[%c0_45, %c0_46, %c0_47, %c0_48] : memref<1x1x4x4xf32, #tpu.memory_space<vmem>>, vector<1x1x1x4xf32>
    %77 = vector.shape_cast %76 : vector<1x1x1x4xf32> to vector<1x4xf32>
    %78 = vector.shape_cast %75 : vector<1x4xf32> to vector<1x1x1x4xf32>
    tpu.vector_store %arg9[%c0_45, %c0_46, %c0_47, %c0_48], %78 {strides = array<i32>} : memref<1x1x4x4xf32, #tpu.memory_space<vmem>>, vector<1x1x1x4xf32>,
    %79 = arith.mulf %70, %70 : vector<64x4xf32>
    %cst_49 = arith.constant dense<0.000000e+00> : vector<4xf32>
    %80 = vector.multi_reduction <add>, %79, %cst_49 [0] : vector<64x4xf32> to vector<4xf32>
    %81 = vector.shape_cast %80 : vector<4xf32> to vector<1x4xf32>
    %c0_50 = arith.constant 0 : index
    %c0_51 = arith.constant 0 : index
    %c1_52 = arith.constant 1 : index
    %c0_53 = arith.constant 0 : index
    %82 = vector.load %arg9[%c0_50, %c0_51, %c1_52, %c0_53] : memref<1x1x4x4xf32, #tpu.memory_space<vmem>>, vector<1x1x1x4xf32>
    %83 = vector.shape_cast %82 : vector<1x1x1x4xf32> to vector<1x4xf32>
    %84 = vector.shape_cast %81 : vector<1x4xf32> to vector<1x1x1x4xf32>
    tpu.vector_store %arg9[%c0_50, %c0_51, %c1_52, %c0_53], %84 {strides = array<i32>} : memref<1x1x4x4xf32, #tpu.memory_space<vmem>>, vector<1x1x1x4xf32>,
    %cst_54 = arith.constant dense<0xFF800000> : vector<4xf32>
    %85 = vector.multi_reduction <maximumf>, %70, %cst_54 [0] : vector<64x4xf32> to vector<4xf32>
    %86 = vector.shape_cast %85 : vector<4xf32> to vector<1x4xf32>
    %c0_55 = arith.constant 0 : index
    %c0_56 = arith.constant 0 : index
    %c2 = arith.constant 2 : index
    %c0_57 = arith.constant 0 : index
    %87 = vector.load %arg9[%c0_55, %c0_56, %c2, %c0_57] : memref<1x1x4x4xf32, #tpu.memory_space<vmem>>, vector<1x1x1x4xf32>
    %88 = vector.shape_cast %87 : vector<1x1x1x4xf32> to vector<1x4xf32>
    %89 = vector.shape_cast %86 : vector<1x4xf32> to vector<1x1x1x4xf32>
    tpu.vector_store %arg9[%c0_55, %c0_56, %c2, %c0_57], %89 {strides = array<i32>} : memref<1x1x4x4xf32, #tpu.memory_space<vmem>>, vector<1x1x1x4xf32>,
    %cst_58 = arith.constant dense<0x7F800000> : vector<4xf32>
    %90 = vector.multi_reduction <minimumf>, %70, %cst_58 [0] : vector<64x4xf32> to vector<4xf32>
    %91 = vector.shape_cast %90 : vector<4xf32> to vector<1x4xf32>
    %c0_59 = arith.constant 0 : index
    %c0_60 = arith.constant 0 : index
    %c3 = arith.constant 3 : index
    %c0_61 = arith.constant 0 : index
    %92 = vector.load %arg9[%c0_59, %c0_60, %c3, %c0_61] : memref<1x1x4x4xf32, #tpu.memory_space<vmem>>, vector<1x1x1x4xf32>
    %93 = vector.shape_cast %92 : vector<1x1x1x4xf32> to vector<1x4xf32>
    %94 = vector.shape_cast %91 : vector<1x4xf32> to vector<1x1x1x4xf32>
    tpu.vector_store %arg9[%c0_59, %c0_60, %c3, %c0_61], %94 {strides = array<i32>} : memref<1x1x4x4xf32, #tpu.memory_space<vmem>>, vector<1x1x1x4xf32>,
    return
  }
  func.func @transform_0(%arg0: i32, %arg1: i32) -> (i32, i32, i32, i32) {
    %c4_i32 = arith.constant 4 : i32
    %0 = arith.muli %arg1, %c4_i32 : i32
    %c1_i32 = arith.constant 1 : i32
    %1 = arith.subi %0, %c1_i32 : i32
    %c0_i32 = arith.constant 0 : i32
    %2 = arith.maxsi %1, %c0_i32 : i32
    %c0_i32_0 = arith.constant 0 : i32
    %c0_i32_1 = arith.constant 0 : i32
    %c0_i32_2 = arith.constant 0 : i32
    return %arg0, %2, %c0_i32_0, %c0_i32_1 : i32, i32, i32, i32
  }
  func.func @transform_1(%arg0: i32, %arg1: i32) -> (i32, i32, i32, i32) {
    %c0_i32 = arith.constant 0 : i32
    %c0_i32_0 = arith.constant 0 : i32
    %c0_i32_1 = arith.constant 0 : i32
    return %arg0, %arg1, %c0_i32, %c0_i32_0 : i32, i32, i32, i32
  }
  func.func @transform_2(%arg0: i32, %arg1: i32) -> (i32, i32, i32, i32) {
    %c4_i32 = arith.constant 4 : i32
    %0 = arith.muli %arg1, %c4_i32 : i32
    %c4_i32_0 = arith.constant 4 : i32
    %1 = arith.addi %0, %c4_i32_0 : i32
    %c3_i32 = arith.constant 3 : i32
    %2 = arith.minsi %1, %c3_i32 : i32
    %c0_i32 = arith.constant 0 : i32
    %c0_i32_1 = arith.constant 0 : i32
    %c0_i32_2 = arith.constant 0 : i32
    return %arg0, %2, %c0_i32, %c0_i32_1 : i32, i32, i32, i32
  }
  func.func @transform_3(%arg0: i32, %arg1: i32) -> (i32, i32) {
    %c0_i32 = arith.constant 0 : i32
    %c0_i32_0 = arith.constant 0 : i32
    %c0_i32_1 = arith.constant 0 : i32
    return %c0_i32, %c0_i32_0 : i32, i32
  }
  func.func @transform_4(%arg0: i32, %arg1: i32) -> (i32, i32) {
    %c0_i32 = arith.constant 0 : i32
    %c0_i32_0 = arith.constant 0 : i32
    %c0_i32_1 = arith.constant 0 : i32
    return %c0_i32, %c0_i32_0 : i32, i32
  }
  func.func @transform_5(%arg0: i32, %arg1: i32) -> (i32, i32) {
    %c0_i32 = arith.constant 0 : i32
    %c0_i32_0 = arith.constant 0 : i32
    %c0_i32_1 = arith.constant 0 : i32
    return %c0_i32, %c0_i32_0 : i32, i32
  }
  func.func @transform_6(%arg0: i32, %arg1: i32) -> (i32, i32, i32) {
    %c0_i32 = arith.constant 0 : i32
    %c0_i32_0 = arith.constant 0 : i32
    return %arg0, %arg1, %c0_i32 : i32, i32, i32
  }
  func.func @transform_7(%arg0: i32, %arg1: i32) -> (i32, i32, i32, i32) {
    %c0_i32 = arith.constant 0 : i32
    %c0_i32_0 = arith.constant 0 : i32
    %c0_i32_1 = arith.constant 0 : i32
    return %arg0, %arg1, %c0_i32, %c0_i32_0 : i32, i32, i32, i32
  }
}

module attributes {stable_mosaic.version = 11 : i64} {
  func.func @_combine_conv2_kernel(%arg0: i32, %arg1: i32, %arg2: memref<1x32x4xf32, #tpu.memory_space<vmem>>, %arg3: memref<1x32x4xf32, #tpu.memory_space<vmem>>, %arg4: memref<1x32x4xf32, #tpu.memory_space<vmem>>, %arg5: memref<6x4xf32, #tpu.memory_space<vmem>>, %arg6: memref<1x3x4xf32, #tpu.memory_space<vmem>>, %arg7: memref<4x16xf32, #tpu.memory_space<vmem>>, %arg8: memref<1x16xf32, #tpu.memory_space<vmem>>, %arg9: memref<1x32x16xf32, #tpu.memory_space<vmem>>, %arg10: memref<1x1x2x16xf32, #tpu.memory_space<vmem>>) attributes {dimension_semantics = [#tpu.dimension_semantics<parallel>, #tpu.dimension_semantics<parallel>], iteration_bounds = array<i64: 2, 2>, scalar_prefetch = 0 : i64, scratch_operands = 0 : i64, tpu.core_type = #tpu.core_type<tc>, window_params = [{transform_indices = @transform_0, window_bounds = array<i64: 1, 32, 4>}, {transform_indices = @transform_1, window_bounds = array<i64: 1, 32, 4>}, {transform_indices = @transform_2, window_bounds = array<i64: 1, 32, 4>}, {pipeline_mode = #tpu.pipeline_mode<synchronous>, transform_indices = @transform_3, window_bounds = array<i64: 6, 4>}, {transform_indices = @transform_4, window_bounds = array<i64: 1, 3, 4>}, {pipeline_mode = #tpu.pipeline_mode<synchronous>, transform_indices = @transform_5, window_bounds = array<i64: 4, 16>}, {pipeline_mode = #tpu.pipeline_mode<synchronous>, transform_indices = @transform_6, window_bounds = array<i64: 1, 16>}, {transform_indices = @transform_7, window_bounds = array<i64: 1, 32, 16>}, {transform_indices = @transform_8, window_bounds = array<i64: 1, 1, 2, 16>}]} {
    %c0 = arith.constant 0 : index
    %c0_0 = arith.constant 0 : index
    %c0_1 = arith.constant 0 : index
    %0 = vector.load %arg2[%c0, %c0_0, %c0_1] : memref<1x32x4xf32, #tpu.memory_space<vmem>>, vector<1x32x4xf32>
    %1 = vector.shape_cast %0 : vector<1x32x4xf32> to vector<32x4xf32>
    %c0_2 = arith.constant 0 : index
    %c0_3 = arith.constant 0 : index
    %2 = vector.load %arg5[%c0_2, %c0_3] : memref<6x4xf32, #tpu.memory_space<vmem>>, vector<1x4xf32>
    %3 = vector.broadcast %2 : vector<1x4xf32> to vector<32x4xf32>
    %4 = arith.mulf %1, %3 : vector<32x4xf32>
    %c1 = arith.constant 1 : index
    %c0_4 = arith.constant 0 : index
    %5 = vector.load %arg5[%c1, %c0_4] : memref<6x4xf32, #tpu.memory_space<vmem>>, vector<1x4xf32>
    %6 = vector.broadcast %5 : vector<1x4xf32> to vector<32x4xf32>
    %7 = arith.addf %4, %6 : vector<32x4xf32>
    %cst = arith.constant 0.000000e+00 : f32
    %8 = vector.broadcast %cst : f32 to vector<32x4xf32>
    %9 = arith.maximumf %7, %8 : vector<32x4xf32>
    %c0_5 = arith.constant 0 : index
    %c0_6 = arith.constant 0 : index
    %c0_7 = arith.constant 0 : index
    %10 = vector.load %arg6[%c0_5, %c0_6, %c0_7] : memref<1x3x4xf32, #tpu.memory_space<vmem>>, vector<1x1x4xf32>
    %11 = vector.shape_cast %10 : vector<1x1x4xf32> to vector<1x4xf32>
    %12 = vector.broadcast %11 : vector<1x4xf32> to vector<32x4xf32>
    %13 = arith.mulf %9, %12 : vector<32x4xf32>
    %c0_8 = arith.constant 0 : index
    %c0_9 = arith.constant 0 : index
    %c0_10 = arith.constant 0 : index
    %14 = vector.load %arg3[%c0_8, %c0_9, %c0_10] : memref<1x32x4xf32, #tpu.memory_space<vmem>>, vector<1x32x4xf32>
    %15 = vector.shape_cast %14 : vector<1x32x4xf32> to vector<32x4xf32>
    %c2 = arith.constant 2 : index
    %c0_11 = arith.constant 0 : index
    %16 = vector.load %arg5[%c2, %c0_11] : memref<6x4xf32, #tpu.memory_space<vmem>>, vector<1x4xf32>
    %17 = vector.broadcast %16 : vector<1x4xf32> to vector<32x4xf32>
    %18 = arith.mulf %15, %17 : vector<32x4xf32>
    %c3 = arith.constant 3 : index
    %c0_12 = arith.constant 0 : index
    %19 = vector.load %arg5[%c3, %c0_12] : memref<6x4xf32, #tpu.memory_space<vmem>>, vector<1x4xf32>
    %20 = vector.broadcast %19 : vector<1x4xf32> to vector<32x4xf32>
    %21 = arith.addf %18, %20 : vector<32x4xf32>
    %cst_13 = arith.constant 0.000000e+00 : f32
    %22 = vector.broadcast %cst_13 : f32 to vector<32x4xf32>
    %23 = arith.maximumf %21, %22 : vector<32x4xf32>
    %c0_14 = arith.constant 0 : index
    %c1_15 = arith.constant 1 : index
    %c0_16 = arith.constant 0 : index
    %24 = vector.load %arg6[%c0_14, %c1_15, %c0_16] : memref<1x3x4xf32, #tpu.memory_space<vmem>>, vector<1x1x4xf32>
    %25 = vector.shape_cast %24 : vector<1x1x4xf32> to vector<1x4xf32>
    %26 = vector.broadcast %25 : vector<1x4xf32> to vector<32x4xf32>
    %27 = arith.mulf %23, %26 : vector<32x4xf32>
    %28 = arith.addf %13, %27 : vector<32x4xf32>
    %c0_17 = arith.constant 0 : index
    %c0_18 = arith.constant 0 : index
    %c0_19 = arith.constant 0 : index
    %29 = vector.load %arg4[%c0_17, %c0_18, %c0_19] : memref<1x32x4xf32, #tpu.memory_space<vmem>>, vector<1x32x4xf32>
    %30 = vector.shape_cast %29 : vector<1x32x4xf32> to vector<32x4xf32>
    %c4 = arith.constant 4 : index
    %c0_20 = arith.constant 0 : index
    %31 = vector.load %arg5[%c4, %c0_20] : memref<6x4xf32, #tpu.memory_space<vmem>>, vector<1x4xf32>
    %32 = vector.broadcast %31 : vector<1x4xf32> to vector<32x4xf32>
    %33 = arith.mulf %30, %32 : vector<32x4xf32>
    %c5 = arith.constant 5 : index
    %c0_21 = arith.constant 0 : index
    %34 = vector.load %arg5[%c5, %c0_21] : memref<6x4xf32, #tpu.memory_space<vmem>>, vector<1x4xf32>
    %35 = vector.broadcast %34 : vector<1x4xf32> to vector<32x4xf32>
    %36 = arith.addf %33, %35 : vector<32x4xf32>
    %cst_22 = arith.constant 0.000000e+00 : f32
    %37 = vector.broadcast %cst_22 : f32 to vector<32x4xf32>
    %38 = arith.maximumf %36, %37 : vector<32x4xf32>
    %c0_23 = arith.constant 0 : index
    %c2_24 = arith.constant 2 : index
    %c0_25 = arith.constant 0 : index
    %39 = vector.load %arg6[%c0_23, %c2_24, %c0_25] : memref<1x3x4xf32, #tpu.memory_space<vmem>>, vector<1x1x4xf32>
    %40 = vector.shape_cast %39 : vector<1x1x4xf32> to vector<1x4xf32>
    %41 = vector.broadcast %40 : vector<1x4xf32> to vector<32x4xf32>
    %42 = arith.mulf %38, %41 : vector<32x4xf32>
    %43 = arith.addf %28, %42 : vector<32x4xf32>
    %c0_26 = arith.constant 0 : index
    %c0_27 = arith.constant 0 : index
    %44 = vector.load %arg7[%c0_26, %c0_27] : memref<4x16xf32, #tpu.memory_space<vmem>>, vector<4x16xf32>
    %cst_28 = arith.constant dense<0.000000e+00> : vector<32x16xf32>
    %45 = tpu.matmul %43, %44, %cst_28 {dimension_numbers = #tpu.dot_dimension_numbers<[1], [0], [0], [1], [0, 0, 1, 1], [], []>} : vector<32x4xf32>, vector<4x16xf32>, vector<32x16xf32> -> vector<32x16xf32>
    %c0_29 = arith.constant 0 : index
    %c0_30 = arith.constant 0 : index
    %46 = vector.load %arg8[%c0_29, %c0_30] : memref<1x16xf32, #tpu.memory_space<vmem>>, vector<1x16xf32>
    %47 = vector.broadcast %46 : vector<1x16xf32> to vector<32x16xf32>
    %48 = arith.addf %45, %47 : vector<32x16xf32>
    %c0_31 = arith.constant 0 : index
    %c0_32 = arith.constant 0 : index
    %c0_33 = arith.constant 0 : index
    %49 = vector.load %arg9[%c0_31, %c0_32, %c0_33] : memref<1x32x16xf32, #tpu.memory_space<vmem>>, vector<1x32x16xf32>
    %50 = vector.shape_cast %49 : vector<1x32x16xf32> to vector<32x16xf32>
    %51 = vector.shape_cast %48 : vector<32x16xf32> to vector<1x32x16xf32>
    tpu.vector_store %arg9[%c0_31, %c0_32, %c0_33], %51 {strides = array<i32>} : memref<1x32x16xf32, #tpu.memory_space<vmem>>, vector<1x32x16xf32>,
    %cst_34 = arith.constant dense<0.000000e+00> : vector<16xf32>
    %52 = vector.multi_reduction <add>, %48, %cst_34 [0] : vector<32x16xf32> to vector<16xf32>
    %53 = vector.shape_cast %52 : vector<16xf32> to vector<1x16xf32>
    %c0_35 = arith.constant 0 : index
    %c0_36 = arith.constant 0 : index
    %c0_37 = arith.constant 0 : index
    %c0_38 = arith.constant 0 : index
    %54 = vector.load %arg10[%c0_35, %c0_36, %c0_37, %c0_38] : memref<1x1x2x16xf32, #tpu.memory_space<vmem>>, vector<1x1x1x16xf32>
    %55 = vector.shape_cast %54 : vector<1x1x1x16xf32> to vector<1x16xf32>
    %56 = vector.shape_cast %53 : vector<1x16xf32> to vector<1x1x1x16xf32>
    tpu.vector_store %arg10[%c0_35, %c0_36, %c0_37, %c0_38], %56 {strides = array<i32>} : memref<1x1x2x16xf32, #tpu.memory_space<vmem>>, vector<1x1x1x16xf32>,
    %57 = arith.mulf %48, %48 : vector<32x16xf32>
    %cst_39 = arith.constant dense<0.000000e+00> : vector<16xf32>
    %58 = vector.multi_reduction <add>, %57, %cst_39 [0] : vector<32x16xf32> to vector<16xf32>
    %59 = vector.shape_cast %58 : vector<16xf32> to vector<1x16xf32>
    %c0_40 = arith.constant 0 : index
    %c0_41 = arith.constant 0 : index
    %c1_42 = arith.constant 1 : index
    %c0_43 = arith.constant 0 : index
    %60 = vector.load %arg10[%c0_40, %c0_41, %c1_42, %c0_43] : memref<1x1x2x16xf32, #tpu.memory_space<vmem>>, vector<1x1x1x16xf32>
    %61 = vector.shape_cast %60 : vector<1x1x1x16xf32> to vector<1x16xf32>
    %62 = vector.shape_cast %59 : vector<1x16xf32> to vector<1x1x1x16xf32>
    tpu.vector_store %arg10[%c0_40, %c0_41, %c1_42, %c0_43], %62 {strides = array<i32>} : memref<1x1x2x16xf32, #tpu.memory_space<vmem>>, vector<1x1x1x16xf32>,
    return
  }
  func.func @transform_0(%arg0: i32, %arg1: i32) -> (i32, i32, i32) {
    %c0_i32 = arith.constant 0 : i32
    %c0_i32_0 = arith.constant 0 : i32
    return %arg0, %arg1, %c0_i32 : i32, i32, i32
  }
  func.func @transform_1(%arg0: i32, %arg1: i32) -> (i32, i32, i32) {
    %c0_i32 = arith.constant 0 : i32
    %c0_i32_0 = arith.constant 0 : i32
    return %arg0, %arg1, %c0_i32 : i32, i32, i32
  }
  func.func @transform_2(%arg0: i32, %arg1: i32) -> (i32, i32, i32) {
    %c0_i32 = arith.constant 0 : i32
    %c0_i32_0 = arith.constant 0 : i32
    return %arg0, %arg1, %c0_i32 : i32, i32, i32
  }
  func.func @transform_3(%arg0: i32, %arg1: i32) -> (i32, i32) {
    %c0_i32 = arith.constant 0 : i32
    %c0_i32_0 = arith.constant 0 : i32
    %c0_i32_1 = arith.constant 0 : i32
    return %c0_i32, %c0_i32_0 : i32, i32
  }
  func.func @transform_4(%arg0: i32, %arg1: i32) -> (i32, i32, i32) {
    %c0_i32 = arith.constant 0 : i32
    %c0_i32_0 = arith.constant 0 : i32
    %c0_i32_1 = arith.constant 0 : i32
    return %arg0, %c0_i32, %c0_i32_0 : i32, i32, i32
  }
  func.func @transform_5(%arg0: i32, %arg1: i32) -> (i32, i32) {
    %c0_i32 = arith.constant 0 : i32
    %c0_i32_0 = arith.constant 0 : i32
    %c0_i32_1 = arith.constant 0 : i32
    return %c0_i32, %c0_i32_0 : i32, i32
  }
  func.func @transform_6(%arg0: i32, %arg1: i32) -> (i32, i32) {
    %c0_i32 = arith.constant 0 : i32
    %c0_i32_0 = arith.constant 0 : i32
    %c0_i32_1 = arith.constant 0 : i32
    return %c0_i32, %c0_i32_0 : i32, i32
  }
  func.func @transform_7(%arg0: i32, %arg1: i32) -> (i32, i32, i32) {
    %c0_i32 = arith.constant 0 : i32
    %c0_i32_0 = arith.constant 0 : i32
    return %arg0, %arg1, %c0_i32 : i32, i32, i32
  }
  func.func @transform_8(%arg0: i32, %arg1: i32) -> (i32, i32, i32, i32) {
    %c0_i32 = arith.constant 0 : i32
    %c0_i32_0 = arith.constant 0 : i32
    %c0_i32_1 = arith.constant 0 : i32
    return %arg0, %arg1, %c0_i32, %c0_i32_0 : i32, i32, i32, i32
  }
}

module attributes {stable_mosaic.version = 11 : i64} {
  func.func @_bn_add_relu_kernel(%arg0: i32, %arg1: memref<8x128xf32, #tpu.memory_space<vmem>>, %arg2: memref<8x128xf32, #tpu.memory_space<vmem>>, %arg3: memref<4x128xf32, #tpu.memory_space<vmem>>, %arg4: memref<8x128xf32, #tpu.memory_space<vmem>>) attributes {dimension_semantics = [#tpu.dimension_semantics<parallel>], iteration_bounds = array<i64: 2>, scalar_prefetch = 0 : i64, scratch_operands = 0 : i64, tpu.core_type = #tpu.core_type<tc>, window_params = [{transform_indices = @transform_0, window_bounds = array<i64: 8, 128>}, {transform_indices = @transform_1, window_bounds = array<i64: 8, 128>}, {pipeline_mode = #tpu.pipeline_mode<synchronous>, transform_indices = @transform_2, window_bounds = array<i64: 4, 128>}, {transform_indices = @transform_3, window_bounds = array<i64: 8, 128>}]} {
    %c0 = arith.constant 0 : index
    %c0_0 = arith.constant 0 : index
    %0 = vector.load %arg1[%c0, %c0_0] : memref<8x128xf32, #tpu.memory_space<vmem>>, vector<8x128xf32>
    %c0_1 = arith.constant 0 : index
    %c0_2 = arith.constant 0 : index
    %1 = vector.load %arg3[%c0_1, %c0_2] : memref<4x128xf32, #tpu.memory_space<vmem>>, vector<1x128xf32>
    %2 = vector.broadcast %1 : vector<1x128xf32> to vector<8x128xf32>
    %3 = arith.mulf %0, %2 : vector<8x128xf32>
    %c1 = arith.constant 1 : index
    %c0_3 = arith.constant 0 : index
    %4 = vector.load %arg3[%c1, %c0_3] : memref<4x128xf32, #tpu.memory_space<vmem>>, vector<1x128xf32>
    %5 = vector.broadcast %4 : vector<1x128xf32> to vector<8x128xf32>
    %6 = arith.addf %3, %5 : vector<8x128xf32>
    %c0_4 = arith.constant 0 : index
    %c0_5 = arith.constant 0 : index
    %7 = vector.load %arg2[%c0_4, %c0_5] : memref<8x128xf32, #tpu.memory_space<vmem>>, vector<8x128xf32>
    %c2 = arith.constant 2 : index
    %c0_6 = arith.constant 0 : index
    %8 = vector.load %arg3[%c2, %c0_6] : memref<4x128xf32, #tpu.memory_space<vmem>>, vector<1x128xf32>
    %9 = vector.broadcast %8 : vector<1x128xf32> to vector<8x128xf32>
    %10 = arith.mulf %7, %9 : vector<8x128xf32>
    %11 = arith.addf %6, %10 : vector<8x128xf32>
    %c3 = arith.constant 3 : index
    %c0_7 = arith.constant 0 : index
    %12 = vector.load %arg3[%c3, %c0_7] : memref<4x128xf32, #tpu.memory_space<vmem>>, vector<1x128xf32>
    %13 = vector.broadcast %12 : vector<1x128xf32> to vector<8x128xf32>
    %14 = arith.addf %11, %13 : vector<8x128xf32>
    %cst = arith.constant 0.000000e+00 : f32
    %15 = vector.broadcast %cst : f32 to vector<8x128xf32>
    %16 = arith.maximumf %14, %15 : vector<8x128xf32>
    %c0_8 = arith.constant 0 : index
    %c0_9 = arith.constant 0 : index
    %17 = vector.load %arg4[%c0_8, %c0_9] : memref<8x128xf32, #tpu.memory_space<vmem>>, vector<8x128xf32>
    tpu.vector_store %arg4[%c0_8, %c0_9], %16 {strides = array<i32>} : memref<8x128xf32, #tpu.memory_space<vmem>>, vector<8x128xf32>,
    return
  }
  func.func @transform_0(%arg0: i32) -> (i32, i32) {
    %c0_i32 = arith.constant 0 : i32
    %c0_i32_0 = arith.constant 0 : i32
    return %arg0, %c0_i32 : i32, i32
  }
  func.func @transform_1(%arg0: i32) -> (i32, i32) {
    %c0_i32 = arith.constant 0 : i32
    %c0_i32_0 = arith.constant 0 : i32
    return %arg0, %c0_i32 : i32, i32
  }
  func.func @transform_2(%arg0: i32) -> (i32, i32) {
    %c0_i32 = arith.constant 0 : i32
    %c0_i32_0 = arith.constant 0 : i32
    %c0_i32_1 = arith.constant 0 : i32
    return %c0_i32, %c0_i32_0 : i32, i32
  }
  func.func @transform_3(%arg0: i32) -> (i32, i32) {
    %c0_i32 = arith.constant 0 : i32
    %c0_i32_0 = arith.constant 0 : i32
    return %arg0, %c0_i32 : i32, i32
  }
}

</mosaic_0001>

<llo_original>
// kernel: tile.35
$region0: #{tile.35}
  #allocation0 [shape = 's32[1]{0}', space=sflag, size = 0x4, scoped, tag = 'scoped memory for tile.35']
  %s0 = inlined_call_operand.vmem [shape: f32[16], index: 0, kind: input, shape index: {}]
  %s1 = inlined_call_operand.vmem [shape: f32[8,16], index: 1, kind: output, shape index: {}]
  // Predicated region
  $region2: #{tile.35} parent=0 // pred_check
    _
  $region3: #{tile.35} parent=0 // pred_check_branch
    %3 = sbr.rel (0) target = $region5
  $region4: #{tile.35} parent=0 // pred_region
    _
  $region5: #{tile.35} parent=0 // pred_fallthru
    _
  %v4 = vld [vmem:[%s0] ss:$0 sm:$0xff]
  %5 = vst [vmem:[%s1] sm:$0xff] %v4

// kernel: tile.39
$region0: #{tile.39}
  %s0 = inlined_call_operand.vmem [shape: f32[8,16], index: 0, kind: input, shape index: {}]
  %s1 = inlined_call_operand.vmem [shape: f32[1,128], index: 1, kind: output, shape index: {}]
  $region1: #{tile.39} parent=0
    #allocation0 [shape = 'u8[4096]{0}', space=vmem, size = 0x1000, scoped, tag = 'scoped mem for output reshape']
    %v2 = vld [vmem:[%s0] sm:$0x1]
    %vm3 = vcmask 130048
    %4 = vst.msk [vmem:[#allocation0] sm:$0x1] %vm3, %v2
    %s5 = scalar_lea.vmem %s0, 7
    %v6 = vld [vmem:[%s5] sm:$0x1]
    %7 = vrot.lane.b32.xlu0 %v6, 112
    %v8 = vpop.permute.xlu0 %7
    %vm9 = vcmask 1048448
    %10 = vst.msk [vmem:[#allocation0] sm:$0x1] %vm9, %v8
    %s11 = scalar_lea.vmem %s0, 6
    %v12 = vld [vmem:[%s11] sm:$0x1]
    %13 = vrot.lane.b32.xlu0 %v12, 96
    %v14 = vpop.permute.xlu0 %13
    %vm15 = vcmask 917248
    %16 = vst.msk [vmem:[#allocation0] sm:$0x1] %vm15, %v14
    %s17 = scalar_lea.vmem %s0, 5
    %v18 = vld [vmem:[%s17] sm:$0x1]
    %19 = vrot.lane.b32.xlu0 %v18, 80
    %v20 = vpop.permute.xlu0 %19
    %vm21 = vcmask 786048
    %22 = vst.msk [vmem:[#allocation0] sm:$0x1] %vm21, %v20
    %s23 = scalar_lea.vmem %s0, 4
    %v24 = vld [vmem:[%s23] sm:$0x1]
    %25 = vrot.lane.b32.xlu0 %v24, 64
    %v26 = vpop.permute.xlu0 %25
    %vm27 = vcmask 654848
    %28 = vst.msk [vmem:[#allocation0] sm:$0x1] %vm27, %v26
    %s29 = scalar_lea.vmem %s0, 3
    %v30 = vld [vmem:[%s29] sm:$0x1]
    %31 = vrot.lane.b32.xlu0 %v30, 48
    %v32 = vpop.permute.xlu0 %31
    %vm33 = vcmask 523648
    %34 = vst.msk [vmem:[#allocation0] sm:$0x1] %vm33, %v32
    %s35 = scalar_lea.vmem %s0, 2
    %v36 = vld [vmem:[%s35] sm:$0x1]
    %37 = vrot.lane.b32.xlu0 %v36, 32
    %v38 = vpop.permute.xlu0 %37
    %vm39 = vcmask 392448
    %40 = vst.msk [vmem:[#allocation0] sm:$0x1] %vm39, %v38
    %s41 = scalar_lea.vmem %s0, 1
    %v42 = vld [vmem:[%s41] sm:$0x1]
    %43 = vrot.lane.b32.xlu0 %v42, 16
    %v44 = vpop.permute.xlu0 %43
    %vm45 = vcmask 261248
    %46 = vst.msk [vmem:[#allocation0] sm:$0x1] %vm45, %v44
    %s48 = sshllo.u32 0, 1
    %v50 = vld [vmem:[#allocation0] sm:%s48]
    %s51 = sshllo.u32 0, 1
    %52 = vst [vmem:[%s1] sm:%s51] %v50

// kernel: costblock_forward.6
$region0: #{costblock_forward.6}
  #allocation0 [shape = 'u32[]', space=smem, size = 0x4, offset = 0x4, fixed_abs, tag = 'smem constant byte address 0x4 - core index']
  #allocation1 [shape = 'u32[144,128]{1,0:T(1,128)}', space=vmem, size = 0x12000, scoped, tag = 'internal scratch']
  %s0 = inlined_call_operand.vmem [shape: f32[128,8], index: 0, kind: input, shape index: {}]
  %s1 = inlined_call_operand.vmem [shape: f32[8,4], index: 1, kind: input, shape index: {}]
  %s2 = inlined_call_operand.vmem [shape: f32[1,4], index: 2, kind: input, shape index: {}]
  %s3 = inlined_call_operand.vmem [shape: f32[8,16], index: 3, kind: input, shape index: {}]
  %s4 = inlined_call_operand.vmem [shape: f32[128,4], index: 4, kind: output, shape index: {0}]
  %s5 = inlined_call_operand.vmem [shape: f32[128,16], index: 5, kind: output, shape index: {1}]
  %s6 = inlined_call_operand.vmem [shape: f32[2,2,4], index: 6, kind: output, shape index: {2}]
  %s7 = inlined_call_operand.vmem [shape: f32[2,2,16], index: 7, kind: output, shape index: {3}]
  %8 = xla_tuple %s4, %s5, %s6, %s7
  %s9 = sld [smem:[#allocation0]]
  $region73: #{costblock_forward.6} parent=0
    _
  %s11 = ssub.s32 1, %s9
  %s12 = scalar_select 0, %s11, %s9
  loop: start=0, step=1, limit=4
  $region2: #{costblock_forward.6} parent=0 // loop_pre_header
    _
  $region3: #{costblock_forward.6} parent=0 // loop_header
    %s14 = sphi 0, %s18
    %p15 = scmp.ge.s32.totalorder %s14, 4
    %s24 = sphi 0, %s26
    %s27 = sphi 0, %s24
    %s28 = sphi 0, %s27
    %s44 = sphi 0, %s28
    %s48 = sphi 0, %s48
    %s50 = sphi 0, %s48
    %s51 = sphi 0, %s50
    %s65 = sphi 0, %s51
    %s69 = sphi 0, %s69
    %s71 = sphi 0, %s69
    %s72 = sphi 0, %s71
    %s86 = sphi 0, %s72
    %s90 = sphi 0, %s90
    %s92 = sphi 0, %s90
    %s93 = sphi 0, %s92
    %s107 = sphi 0, %s93
    %s113 = sphi 0, %s115
    %s116 = sphi 0, %s113
    %s117 = sphi 0, %s116
    %s133 = sphi 0, %s117
    %s139 = sphi 0, %s141
    %s142 = sphi 0, %s139
    %s143 = sphi 0, %s142
    %s159 = sphi 0, %s143
    %s165 = sphi 0, %s167
    %s168 = sphi 0, %s165
    %s169 = sphi 0, %s168
    %s185 = sphi 0, %s169
    %s191 = sphi 0, %s193
    %s194 = sphi 0, %s191
    %s195 = sphi 0, %s194
    %s211 = sphi 0, %s195
  $region4: #{costblock_forward.6} parent=0 // loop_header_branch
    %17 = sbr.rel (%p15) target = $region8
  $region5: #{costblock_forward.6} parent=0 // loop_body
    %s19 = ssub.s32 %s14, 1
    %s20 = ssub.s32 %s14, 2
    %s21 = sadd.s32 %s14, 1
    %s22 = ssub.s32 %s14, %s21
    %p23 = scmp.eq.s32.totalorder %s22, 0
    %s25 = sadd.s32 %s24, 1
    %s26 = scalar_select %p23, %s24, %s25
    %p29 = pneg %p23
    %p30 = scmp.eq.s32.totalorder %s14, 1
    %p31 = por %p29, %p30
    %p32 = scmp.ne.s32.totalorder %s24, %s27
    %p33 = scmp.eq.s32.totalorder %s14, 0
    %p34 = por %p32, %p33
    %p35 = scmp.ne.s32.totalorder %s24, %s27
    %p36 = scmp.eq.s32.totalorder %s19, 1
    %p37 = por %p35, %p36
    %p38 = scmp.ne.s32.totalorder %s27, %s28
    %p39 = scmp.eq.s32.totalorder %s19, 0
    %p40 = por %p38, %p39
    %p41 = scmp.ne.s32.totalorder %s27, %s28
    %p42 = scmp.eq.s32.totalorder %s20, 1
    %p43 = por %p41, %p42
    %p45 = scmp.ne.s32.totalorder %s28, %s44
    %p46 = scmp.eq.s32.totalorder %s20, 0
    %p47 = por %p45, %p46
    %s49 = sadd.s32 %s48, 1
    %p52 = scmp.eq.s32.totalorder %s14, 1
    %p53 = scmp.ne.s32.totalorder %s48, %s50
    %p54 = scmp.eq.s32.totalorder %s14, 0
    %p55 = por %p53, %p54
    %p56 = scmp.ne.s32.totalorder %s48, %s50
    %p57 = scmp.eq.s32.totalorder %s19, 1
    %p58 = por %p56, %p57
    %p59 = scmp.ne.s32.totalorder %s50, %s51
    %p60 = scmp.eq.s32.totalorder %s19, 0
    %p61 = por %p59, %p60
    %p62 = scmp.ne.s32.totalorder %s50, %s51
    %p63 = scmp.eq.s32.totalorder %s20, 1
    %p64 = por %p62, %p63
    %p66 = scmp.ne.s32.totalorder %s51, %s65
    %p67 = scmp.eq.s32.totalorder %s20, 0
    %p68 = por %p66, %p67
    %s70 = sadd.s32 %s69, 1
    %p73 = scmp.eq.s32.totalorder %s14, 1
    %p74 = scmp.ne.s32.totalorder %s69, %s71
    %p75 = scmp.eq.s32.totalorder %s14, 0
    %p76 = por %p74, %p75
    %p77 = scmp.ne.s32.totalorder %s69, %s71
    %p78 = scmp.eq.s32.totalorder %s19, 1
    %p79 = por %p77, %p78
    %p80 = scmp.ne.s32.totalorder %s71, %s72
    %p81 = scmp.eq.s32.totalorder %s19, 0
    %p82 = por %p80, %p81
    %p83 = scmp.ne.s32.totalorder %s71, %s72
    %p84 = scmp.eq.s32.totalorder %s20, 1
    %p85 = por %p83, %p84
    %p87 = scmp.ne.s32.totalorder %s72, %s86
    %p88 = scmp.eq.s32.totalorder %s20, 0
    %p89 = por %p87, %p88
    %s91 = sadd.s32 %s90, 1
    %p94 = scmp.eq.s32.totalorder %s14, 1
    %p95 = scmp.ne.s32.totalorder %s90, %s92
    %p96 = scmp.eq.s32.totalorder %s14, 0
    %p97 = por %p95, %p96
    %p98 = scmp.ne.s32.totalorder %s90, %s92
    %p99 = scmp.eq.s32.totalorder %s19, 1
    %p100 = por %p98, %p99
    %p101 = scmp.ne.s32.totalorder %s92, %s93
    %p102 = scmp.eq.s32.totalorder %s19, 0
    %p103 = por %p101, %p102
    %p104 = scmp.ne.s32.totalorder %s92, %s93
    %p105 = scmp.eq.s32.totalorder %s20, 1
    %p106 = por %p104, %p105
    %p108 = scmp.ne.s32.totalorder %s93, %s107
    %p109 = scmp.eq.s32.totalorder %s20, 0
    %p110 = por %p108, %p109
    %s111 = ssub.s32 %s14, %s21
    %p112 = scmp.eq.s32.totalorder %s111, 0
    %s114 = sadd.s32 %s113, 1
    %s115 = scalar_select %p112, %s113, %s114
    %p118 = pneg %p112
    %p119 = scmp.eq.s32.totalorder %s14, 1
    %p120 = por %p118, %p119
    %p121 = scmp.ne.s32.totalorder %s113, %s116
    %p122 = scmp.eq.s32.totalorder %s14, 0
    %p123 = por %p121, %p122
    %p124 = scmp.ne.s32.totalorder %s113, %s116
    %p125 = scmp.eq.s32.totalorder %s19, 1
    %p126 = por %p124, %p125
    %p127 = scmp.ne.s32.totalorder %s116, %s117
    %p128 = scmp.eq.s32.totalorder %s19, 0
    %p129 = por %p127, %p128
    %p130 = scmp.ne.s32.totalorder %s116, %s117
    %p131 = scmp.eq.s32.totalorder %s20, 1
    %p132 = por %p130, %p131
    %p134 = scmp.ne.s32.totalorder %s117, %s133
    %p135 = scmp.eq.s32.totalorder %s20, 0
    %p136 = por %p134, %p135
    %s137 = ssub.s32 %s14, %s21
    %p138 = scmp.eq.s32.totalorder %s137, 0
    %s140 = sadd.s32 %s139, 1
    %s141 = scalar_select %p138, %s139, %s140
    %p144 = pneg %p138
    %p145 = scmp.eq.s32.totalorder %s14, 1
    %p146 = por %p144, %p145
    %p147 = scmp.ne.s32.totalorder %s139, %s142
    %p148 = scmp.eq.s32.totalorder %s14, 0
    %p149 = por %p147, %p148
    %p150 = scmp.ne.s32.totalorder %s139, %s142
    %p151 = scmp.eq.s32.totalorder %s19, 1
    %p152 = por %p150, %p151
    %p153 = scmp.ne.s32.totalorder %s142, %s143
    %p154 = scmp.eq.s32.totalorder %s19, 0
    %p155 = por %p153, %p154
    %p156 = scmp.ne.s32.totalorder %s142, %s143
    %p157 = scmp.eq.s32.totalorder %s20, 1
    %p158 = por %p156, %p157
    %p160 = scmp.ne.s32.totalorder %s143, %s159
    %p161 = scmp.eq.s32.totalorder %s20, 0
    %p162 = por %p160, %p161
    %s163 = ssub.s32 %s14, %s21
    %p164 = scmp.eq.s32.totalorder %s163, 0
    %s166 = sadd.s32 %s165, 1
    %s167 = scalar_select %p164, %s165, %s166
    %p170 = pneg %p164
    %p171 = scmp.eq.s32.totalorder %s14, 1
    %p172 = por %p170, %p171
    %p173 = scmp.ne.s32.totalorder %s165, %s168
    %p174 = scmp.eq.s32.totalorder %s14, 0
    %p175 = por %p173, %p174
    %p176 = scmp.ne.s32.totalorder %s165, %s168
    %p177 = scmp.eq.s32.totalorder %s19, 1
    %p178 = por %p176, %p177
    %p179 = scmp.ne.s32.totalorder %s168, %s169
    %p180 = scmp.eq.s32.totalorder %s19, 0
    %p181 = por %p179, %p180
    %p182 = scmp.ne.s32.totalorder %s168, %s169
    %p183 = scmp.eq.s32.totalorder %s20, 1
    %p184 = por %p182, %p183
    %p186 = scmp.ne.s32.totalorder %s169, %s185
    %p187 = scmp.eq.s32.totalorder %s20, 0
    %p188 = por %p186, %p187
    %s189 = ssub.s32 %s14, %s21
    %p190 = scmp.eq.s32.totalorder %s189, 0
    %s192 = sadd.s32 %s191, 1
    %s193 = scalar_select %p190, %s191, %s192
    %p196 = pneg %p190
    %p197 = scmp.eq.s32.totalorder %s14, 1
    %p198 = por %p196, %p197
    %p199 = scmp.ne.s32.totalorder %s191, %s194
    %p200 = scmp.eq.s32.totalorder %s14, 0
    %p201 = por %p199, %p200
    %p202 = scmp.ne.s32.totalorder %s191, %s194
    %p203 = scmp.eq.s32.totalorder %s19, 1
    %p204 = por %p202, %p203
    %p205 = scmp.ne.s32.totalorder %s194, %s195
    %p206 = scmp.eq.s32.totalorder %s19, 0
    %p207 = por %p205, %p206
    %p208 = scmp.ne.s32.totalorder %s194, %s195
    %p209 = scmp.eq.s32.totalorder %s20, 1
    %p210 = por %p208, %p209
    %p212 = scmp.ne.s32.totalorder %s195, %s211
    %p213 = scmp.eq.s32.totalorder %s20, 0
    %p214 = por %p212, %p213
    %p215 = scmp.le.s32.totalorder 1, %s14
    %p216 = scmp.lt.s32.totalorder %s14, 3
    %p217 = pnand %p215, %p216
    %p218 = pneg %p217
    // Predicated region
    $region9: #{costblock_forward.6} parent=5 // pred_check
      _
    $region10: #{costblock_forward.6} parent=5 // pred_check_branch
      %220 = sbr.rel (%p217) target = $region12
    $region11: #{costblock_forward.6} parent=5 // pred_region
      %s221 = ssub.s32 %s14, 1
      // Predicated region
      $region13: #{costblock_forward.6} parent=11 // pred_check
        %p222 = pneg %p61
      $region14: #{costblock_forward.6} parent=11 // pred_check_branch
        %224 = sbr.rel (%p222) target = $region16
      $region15: #{costblock_forward.6} parent=11 // pred_region
        _
      $region16: #{costblock_forward.6} parent=11 // pred_fallthru
        _
      // Predicated region
      $region17: #{costblock_forward.6} parent=11 // pred_check
        %p225 = pneg %p82
      $region18: #{costblock_forward.6} parent=11 // pred_check_branch
        %227 = sbr.rel (%p225) target = $region20
      $region19: #{costblock_forward.6} parent=11 // pred_region
        _
      $region20: #{costblock_forward.6} parent=11 // pred_fallthru
        _
      // Predicated region
      $region21: #{costblock_forward.6} parent=11 // pred_check
        %p228 = pneg %p103
      $region22: #{costblock_forward.6} parent=11 // pred_check_branch
        %230 = sbr.rel (%p228) target = $region24
      $region23: #{costblock_forward.6} parent=11 // pred_region
        _
      $region24: #{costblock_forward.6} parent=11 // pred_fallthru
        _
    $region12: #{costblock_forward.6} parent=5 // pred_fallthru
      _
    %p231 = scmp.lt.s32.totalorder %s14, 2
    // Predicated region
    $region25: #{costblock_forward.6} parent=5 // pred_check
      %p232 = pneg %p231
    $region26: #{costblock_forward.6} parent=5 // pred_check_branch
      %234 = sbr.rel (%p232) target = $region28
    $region27: #{costblock_forward.6} parent=5 // pred_region
      // Predicated region
      $region29: #{costblock_forward.6} parent=27 // pred_check
        %p235 = pneg %p34
      $region30: #{costblock_forward.6} parent=27 // pred_check_branch
        %237 = sbr.rel (%p235) target = $region32
      $region31: #{costblock_forward.6} parent=27 // pred_region
        %s238 = smul.u32 8, %s14
        %p239 = scmp.lt.s32.totalorder %s238, 15
        %s240 = scalar_select %p239, %s238, 15
        %s241 = smul.addr %s240, 8
        %s242 = scalar_lea.vmem %s0, %s241
        %s243 = smul.u32 8, %s14
      $region32: #{costblock_forward.6} parent=27 // pred_fallthru
        _
    $region28: #{costblock_forward.6} parent=5 // pred_fallthru
      _
    %p244 = scmp.le.s32.totalorder 1, %s14
    %p245 = scmp.lt.s32.totalorder %s14, 3
    %p246 = pnand %p244, %p245
    %p247 = pneg %p246
    // Predicated region
    $region33: #{costblock_forward.6} parent=5 // pred_check
      _
    $region34: #{costblock_forward.6} parent=5 // pred_check_branch
      %249 = sbr.rel (%p246) target = $region36
    $region35: #{costblock_forward.6} parent=5 // pred_region
      %s250 = ssub.s32 %s14, 1
      %s251 = smul.u32 8, %s19
      %p252 = scmp.lt.s32.totalorder %s251, 15
      %s253 = scalar_select %p252, %s251, 15
      %s254 = smul.addr %s253, 8
      %s255 = scalar_lea.vmem %s0, %s254
      %p256 = pneg %p40
      %p257 = pneg %p37
      %p258 = pneg %p61
      %p259 = pneg %p58
      %p260 = pneg %p82
      %p261 = pneg %p79
      %p262 = pneg %p103
      %p263 = pneg %p100
      %p264 = pneg %p129
      %p265 = pneg %p126
      %s266 = smul.u32 8, %s19
      %p267 = scmp.lt.s32.totalorder %s266, 15
      %s268 = scalar_select %p267, %s266, 15
      %s269 = smul.addr %s268, 8
      %s270 = scalar_lea.vmem %s4, %s269
      %p271 = pneg %p155
      %p272 = pneg %p152
      %s273 = smul.u32 8, %s19
      %p274 = scmp.lt.s32.totalorder %s273, 15
      %s275 = scalar_select %p274, %s273, 15
      %s276 = smul.addr %s275, 8
      %s277 = scalar_lea.vmem %s5, %s276
      %p278 = pneg %p181
      %p279 = pneg %p178
      %p280 = scmp.lt.s32.totalorder %s19, 1
      %s281 = scalar_select %p280, %s19, 1
      %s282 = smul.addr %s281, 2
      %s283 = scalar_lea.vmem %s6, %s282
      %p284 = pneg %p207
      %p285 = pneg %p204
      %p286 = scmp.lt.s32.totalorder %s19, 1
      %s287 = scalar_select %p286, %s19, 1
      %s288 = smul.addr %s287, 2
      %s289 = scalar_lea.vmem %s7, %s288
      %s290 = smul.u32 8, %s19
      %p291 = scmp.lt.s32.totalorder %s290, 15
      %s292 = scalar_select %p291, %s290, 15
      %s293 = smul.addr %s292, 8
      %s294 = scalar_lea.vmem %s0, %s293
      %s295 = smul.u32 8, %s19
      %s296 = smul.u32 8, %s19
      %p297 = scmp.lt.s32.totalorder %s296, 15
      %s298 = scalar_select %p297, %s296, 15
      %s299 = smul.addr %s298, 8
      %s300 = scalar_lea.vmem %s4, %s299
      %s301 = smul.u32 8, %s19
      %s302 = smul.u32 8, %s19
      %p303 = scmp.lt.s32.totalorder %s302, 15
      %s304 = scalar_select %p303, %s302, 15
      %s305 = smul.addr %s304, 8
      %s306 = scalar_lea.vmem %s5, %s305
      %s307 = smul.u32 8, %s19
      %p308 = scmp.lt.s32.totalorder %s19, 1
      %s309 = scalar_select %p308, %s19, 1
      %s310 = smul.addr %s309, 2
      %s311 = scalar_lea.vmem %s6, %s310
      %p312 = scmp.lt.s32.totalorder %s19, 1
      %s313 = scalar_select %p312, %s19, 1
      %s314 = smul.addr %s313, 2
      %s315 = scalar_lea.vmem %s7, %s314
      %v316 = vld [vmem:[%s294] sm:$0xff]
      %v317 = vld [vmem:[%s294 + $0x8] sm:$0xff]
      %v318 = vld [vmem:[%s294 + $0x10] sm:$0xff]
      %v319 = vld [vmem:[%s294 + $0x18] sm:$0xff]
      %v320 = vld [vmem:[%s294 + $0x20] sm:$0xff]
      %v321 = vld [vmem:[%s294 + $0x28] sm:$0xff]
      %v322 = vld [vmem:[%s294 + $0x30] sm:$0xff]
      %v323 = vld [vmem:[%s294 + $0x38] sm:$0xff]
      %v324 = vld [vmem:[%s1] sm:$0xff]
      %v325 = vld [vmem:[%s2] sm:$0x1]
      %v327 = vlaneseq
      %v328 = vshrl.u32 %v327, 7
      %v329 = vsub.s32 0, %v328
      %v330 = vrot.slane %v325, %v329
      %vm332 = vcmask 64512
      %v334 = vsel %vm332, %v316, 0
      %v337 = vsel %vm332, %v317, 0
      %v340 = vsel %vm332, %v318, 0
      %v343 = vsel %vm332, %v319, 0
      %v346 = vsel %vm332, %v320, 0
      %v349 = vsel %vm332, %v321, 0
      %v352 = vsel %vm332, %v322, 0
      %v355 = vsel %vm332, %v323, 0
      %357 = vmatprep.subr.mxu0 0.0
      %358 = vmatpush1.msra.mxu0 %v324
      %359 = vmatprep.subr.mxu0 0.0
      %360 = vmatpush1.msra.mxu0 0.0
      %361 = vmatprep.subr.mxu0 0.0
      %362 = vmatpush1.msra.mxu0 0.0
      %363 = vmatprep.subr.mxu0 0.0
      %364 = vmatpush1.msra.mxu0 0.0
      %365 = vmatprep.subr.mxu0 0.0
      %366 = vmatpush1.msra.mxu0 0.0
      %367 = vmatprep.subr.mxu0 0.0
      %368 = vmatpush1.msra.mxu0 0.0
      %369 = vmatprep.subr.mxu0 0.0
      %370 = vmatpush1.msra.mxu0 0.0
      %371 = vmatprep.subr.mxu0 0.0
      %372 = vmatpush1.msra.mxu0 0.0
      %373 = vmatprep.subr.mxu0 0.0
      %374 = vmatpush1.msra.mxu0 0.0
      %375 = vmatprep.subr.mxu0 0.0
      %376 = vmatpush1.msra.mxu0 0.0
      %377 = vmatprep.subr.mxu0 0.0
      %378 = vmatpush1.msra.mxu0 0.0
      %379 = vmatprep.subr.mxu0 0.0
      %380 = vmatpush1.msra.mxu0 0.0
      %381 = vmatprep.subr.mxu0 0.0
      %382 = vmatpush1.msra.mxu0 0.0
      %383 = vmatprep.subr.mxu0 0.0
      %384 = vmatpush1.msra.mxu0 0.0
      %385 = vmatprep.subr.mxu0 0.0
      %386 = vmatpush1.msra.mxu0 0.0
      %387 = vmatprep.subr.mxu0 0.0
      %388 = vmatpush1.msra.mxu0 0.0
      %389 = vmatprep.subr.mxu0 0.0
      %390 = vmatpush1.msra.mxu0 0.0
      %391 = vmatprep.subr.mxu0 0.0
      %392 = vmatpush1.msra.mxu0 0.0
      %393 = vmatprep.subr.mxu0 0.0
      %394 = vmatpush1.msra.mxu0 0.0
      %395 = vmatprep.subr.mxu0 0.0
      %396 = vmatpush1.msra.mxu0 0.0
      %397 = vmatprep.subr.mxu0 0.0
      %398 = vmatpush1.msra.mxu0 0.0
      %399 = vmatprep.subr.mxu0 0.0
      %400 = vmatpush1.msra.mxu0 0.0
      %401 = vmatprep.subr.mxu0 0.0
      %402 = vmatpush1.msra.mxu0 0.0
      %403 = vmatprep.subr.mxu0 0.0
      %404 = vmatpush1.msra.mxu0 0.0
      %405 = vmatprep.subr.mxu0 0.0
      %406 = vmatpush1.msra.mxu0 0.0
      %407 = vmatprep.subr.mxu0 0.0
      %408 = vmatpush1.msra.mxu0 0.0
      %409 = vmatprep.subr.mxu0 0.0
      %410 = vmatpush1.msra.mxu0 0.0
      %411 = vmatprep.subr.mxu0 0.0
      %412 = vmatpush1.msra.mxu0 0.0
      %413 = vmatprep.subr.mxu0 0.0
      %414 = vmatpush1.msra.mxu0 0.0
      %415 = vmatprep.subr.mxu0 0.0
      %416 = vmatpush1.msra.mxu0 0.0
      %417 = vmatprep.subr.mxu0 0.0
      %418 = vmatpush1.msra.mxu0 0.0
      %419 = vmatprep.subr.mxu0 0.0
      %420 = vmatpush1.msra.mxu0 0.0
      %421 = vmatprep.mubr.f32.mxu0 0.0
      %422 = vmatmul.mubr.f32.gmra.mrb[0].mxu0 %v334
      %v423 = vpop.f32.mrb[0].mxu0
      %v424 = vadd.f32 %v330, %v423
      %v425 = vpop.f32.mrb[0].mxu0
      %426 = vmatprep.mubr.f32.mxu0 0.0
      %427 = vmatmul.mubr.f32.gmra.mrb[0].mxu0 %v337
      %v428 = vpop.f32.mrb[0].mxu0
      %v429 = vadd.f32 %v330, %v428
      %v430 = vpop.f32.mrb[0].mxu0
      %431 = vmatprep.mubr.f32.mxu0 0.0
      %432 = vmatmul.mubr.f32.gmra.mrb[0].mxu0 %v340
      %v433 = vpop.f32.mrb[0].mxu0
      %v434 = vadd.f32 %v330, %v433
      %v435 = vpop.f32.mrb[0].mxu0
      %436 = vmatprep.mubr.f32.mxu0 0.0
      %437 = vmatmul.mubr.f32.gmra.mrb[0].mxu0 %v343
      %v438 = vpop.f32.mrb[0].mxu0
      %v439 = vadd.f32 %v330, %v438
      %v440 = vpop.f32.mrb[0].mxu0
      %441 = vmatprep.mubr.f32.mxu0 0.0
      %442 = vmatmul.mubr.f32.gmra.mrb[0].mxu0 %v346
      %v443 = vpop.f32.mrb[0].mxu0
      %v444 = vadd.f32 %v330, %v443
      %v445 = vpop.f32.mrb[0].mxu0
      %446 = vmatprep.mubr.f32.mxu0 0.0
      %447 = vmatmul.mubr.f32.gmra.mrb[0].mxu0 %v349
      %v448 = vpop.f32.mrb[0].mxu0
      %v449 = vadd.f32 %v330, %v448
      %v450 = vpop.f32.mrb[0].mxu0
      %451 = vmatprep.mubr.f32.mxu0 0.0
      %452 = vmatmul.mubr.f32.gmra.mrb[0].mxu0 %v352
      %v453 = vpop.f32.mrb[0].mxu0
      %v454 = vadd.f32 %v330, %v453
      %v455 = vpop.f32.mrb[0].mxu0
      %456 = vmatprep.mubr.f32.mxu0 0.0
      %457 = vmatmul.mubr.f32.gmra.mrb[0].mxu0 %v355
      %v458 = vpop.f32.mrb[0].mxu0
      %v459 = vadd.f32 %v330, %v458
      %v460 = vpop.f32.mrb[0].mxu0
      %461 = vdwg.mxu0
      %v462 = vld [vmem:[%s3] sm:$0xff]
      %463 = vmatprep.subr.mxu0 0.0
      %464 = vmatpush1.msra.mxu0 %v462
      %465 = vmatprep.subr.mxu0 0.0
      %466 = vmatpush1.msra.mxu0 0.0
      %467 = vmatprep.subr.mxu0 0.0
      %468 = vmatpush1.msra.mxu0 0.0
      %469 = vmatprep.subr.mxu0 0.0
      %470 = vmatpush1.msra.mxu0 0.0
      %471 = vmatprep.subr.mxu0 0.0
      %472 = vmatpush1.msra.mxu0 0.0
      %473 = vmatprep.subr.mxu0 0.0
      %474 = vmatpush1.msra.mxu0 0.0
      %475 = vmatprep.subr.mxu0 0.0
      %476 = vmatpush1.msra.mxu0 0.0
      %477 = vmatprep.subr.mxu0 0.0
      %478 = vmatpush1.msra.mxu0 0.0
      %479 = vmatprep.subr.mxu0 0.0
      %480 = vmatpush1.msra.mxu0 0.0
      %481 = vmatprep.subr.mxu0 0.0
      %482 = vmatpush1.msra.mxu0 0.0
      %483 = vmatprep.subr.mxu0 0.0
      %484 = vmatpush1.msra.mxu0 0.0
      %485 = vmatprep.subr.mxu0 0.0
      %486 = vmatpush1.msra.mxu0 0.0
      %487 = vmatprep.subr.mxu0 0.0
      %488 = vmatpush1.msra.mxu0 0.0
      %489 = vmatprep.subr.mxu0 0.0
      %490 = vmatpush1.msra.mxu0 0.0
      %491 = vmatprep.subr.mxu0 0.0
      %492 = vmatpush1.msra.mxu0 0.0
      %493 = vmatprep.subr.mxu0 0.0
      %494 = vmatpush1.msra.mxu0 0.0
      %495 = vmatprep.subr.mxu0 0.0
      %496 = vmatpush1.msra.mxu0 0.0
      %497 = vmatprep.subr.mxu0 0.0
      %498 = vmatpush1.msra.mxu0 0.0
      %499 = vmatprep.subr.mxu0 0.0
      %500 = vmatpush1.msra.mxu0 0.0
      %501 = vmatprep.subr.mxu0 0.0
      %502 = vmatpush1.msra.mxu0 0.0
      %503 = vmatprep.subr.mxu0 0.0
      %504 = vmatpush1.msra.mxu0 0.0
      %505 = vmatprep.subr.mxu0 0.0
      %506 = vmatpush1.msra.mxu0 0.0
      %507 = vmatprep.subr.mxu0 0.0
      %508 = vmatpush1.msra.mxu0 0.0
      %509 = vmatprep.subr.mxu0 0.0
      %510 = vmatpush1.msra.mxu0 0.0
      %511 = vmatprep.subr.mxu0 0.0
      %512 = vmatpush1.msra.mxu0 0.0
      %513 = vmatprep.subr.mxu0 0.0
      %514 = vmatpush1.msra.mxu0 0.0
      %515 = vmatprep.subr.mxu0 0.0
      %516 = vmatpush1.msra.mxu0 0.0
      %517 = vmatprep.subr.mxu0 0.0
      %518 = vmatpush1.msra.mxu0 0.0
      %519 = vmatprep.subr.mxu0 0.0
      %520 = vmatpush1.msra.mxu0 0.0
      %521 = vmatprep.subr.mxu0 0.0
      %522 = vmatpush1.msra.mxu0 0.0
      %523 = vmatprep.subr.mxu0 0.0
      %524 = vmatpush1.msra.mxu0 0.0
      %525 = vmatprep.subr.mxu0 0.0
      %526 = vmatpush1.msra.mxu0 0.0
      %527 = vmatprep.mubr.f32.mxu0 0.0
      %528 = vmatmul.mubr.f32.gmra.mrb[0].mxu0 %v334
      %v529 = vpop.f32.mrb[0].mxu0
      %v530 = vadd.f32 0.0, %v529
      %v531 = vpop.f32.mrb[0].mxu0
      %532 = vmatprep.mubr.f32.mxu0 0.0
      %533 = vmatmul.mubr.f32.gmra.mrb[0].mxu0 %v337
      %v534 = vpop.f32.mrb[0].mxu0
      %v535 = vadd.f32 0.0, %v534
      %v536 = vpop.f32.mrb[0].mxu0
      %537 = vmatprep.mubr.f32.mxu0 0.0
      %538 = vmatmul.mubr.f32.gmra.mrb[0].mxu0 %v340
      %v539 = vpop.f32.mrb[0].mxu0
      %v540 = vadd.f32 0.0, %v539
      %v541 = vpop.f32.mrb[0].mxu0
      %542 = vmatprep.mubr.f32.mxu0 0.0
      %543 = vmatmul.mubr.f32.gmra.mrb[0].mxu0 %v343
      %v544 = vpop.f32.mrb[0].mxu0
      %v545 = vadd.f32 0.0, %v544
      %v546 = vpop.f32.mrb[0].mxu0
      %547 = vmatprep.mubr.f32.mxu0 0.0
      %548 = vmatmul.mubr.f32.gmra.mrb[0].mxu0 %v346
      %v549 = vpop.f32.mrb[0].mxu0
      %v550 = vadd.f32 0.0, %v549
      %v551 = vpop.f32.mrb[0].mxu0
      %552 = vmatprep.mubr.f32.mxu0 0.0
      %553 = vmatmul.mubr.f32.gmra.mrb[0].mxu0 %v349
      %v554 = vpop.f32.mrb[0].mxu0
      %v555 = vadd.f32 0.0, %v554
      %v556 = vpop.f32.mrb[0].mxu0
      %557 = vmatprep.mubr.f32.mxu0 0.0
      %558 = vmatmul.mubr.f32.gmra.mrb[0].mxu0 %v352
      %v559 = vpop.f32.mrb[0].mxu0
      %v560 = vadd.f32 0.0, %v559
      %v561 = vpop.f32.mrb[0].mxu0
      %562 = vmatprep.mubr.f32.mxu0 0.0
      %563 = vmatmul.mubr.f32.gmra.mrb[0].mxu0 %v355
      %v564 = vpop.f32.mrb[0].mxu0
      %v565 = vadd.f32 0.0, %v564
      %v566 = vpop.f32.mrb[0].mxu0
      %567 = vdwg.mxu0
      %vm568 = vcmask 31744
      %569 = vst.msk [vmem:[%s300] sm:$0xff] %vm568, %v424
      %570 = vst.msk [vmem:[%s300 + $0x8] sm:$0xff] %vm568, %v429
      %571 = vst.msk [vmem:[%s300 + $0x10] sm:$0xff] %vm568, %v434
      %572 = vst.msk [vmem:[%s300 + $0x18] sm:$0xff] %vm568, %v439
      %573 = vst.msk [vmem:[%s300 + $0x20] sm:$0xff] %vm568, %v444
      %574 = vst.msk [vmem:[%s300 + $0x28] sm:$0xff] %vm568, %v449
      %575 = vst.msk [vmem:[%s300 + $0x30] sm:$0xff] %vm568, %v454
      %576 = vst.msk [vmem:[%s300 + $0x38] sm:$0xff] %vm568, %v459
      %vm577 = vcmask 130048
      %578 = vst.msk [vmem:[%s306] sm:$0xff] %vm577, %v530
      %579 = vst.msk [vmem:[%s306 + $0x8] sm:$0xff] %vm577, %v535
      %580 = vst.msk [vmem:[%s306 + $0x10] sm:$0xff] %vm577, %v540
      %581 = vst.msk [vmem:[%s306 + $0x18] sm:$0xff] %vm577, %v545
      %582 = vst.msk [vmem:[%s306 + $0x20] sm:$0xff] %vm577, %v550
      %583 = vst.msk [vmem:[%s306 + $0x28] sm:$0xff] %vm577, %v555
      %584 = vst.msk [vmem:[%s306 + $0x30] sm:$0xff] %vm577, %v560
      %585 = vst.msk [vmem:[%s306 + $0x38] sm:$0xff] %vm577, %v565
      %v586 = vsel %vm568, %v424, 0.0
      %v587 = vsel %vm568, %v429, 0.0
      %v588 = vadd.f32 %v586, %v587
      %v589 = vsel %vm568, %v434, 0.0
      %v590 = vadd.f32 %v588, %v589
      %v591 = vsel %vm568, %v439, 0.0
      %v592 = vadd.f32 %v590, %v591
      %v593 = vsel %vm568, %v444, 0.0
      %v594 = vadd.f32 %v592, %v593
      %v595 = vsel %vm568, %v449, 0.0
      %v596 = vadd.f32 %v594, %v595
      %v597 = vsel %vm568, %v454, 0.0
      %v598 = vadd.f32 %v596, %v597
      %v599 = vsel %vm568, %v459, 0.0
      %v600 = vadd.f32 %v598, %v599
      %v601 = vrot.slane %v600, 4
      %v602 = vadd.f32 %v600, %v601
      %v603 = vrot.slane %v602, 2
      %v604 = vadd.f32 %v602, %v603
      %v605 = vrot.slane %v604, 1
      %v606 = vadd.f32 %v604, %v605
      %vm607 = vcmask 24576
      %608 = vst.msk [vmem:[%s311] sm:$0x1] %vm607, %v606
      %v609 = vmul.f32 %v424, %v424
      %v610 = vmul.f32 %v429, %v429
      %v611 = vmul.f32 %v434, %v434
      %v612 = vmul.f32 %v439, %v439
      %v613 = vmul.f32 %v444, %v444
      %v614 = vmul.f32 %v449, %v449
      %v615 = vmul.f32 %v454, %v454
      %v616 = vmul.f32 %v459, %v459
      %v617 = vsel %vm568, %v609, 0.0
      %v618 = vsel %vm568, %v610, 0.0
      %v619 = vadd.f32 %v617, %v618
      %v620 = vsel %vm568, %v611, 0.0
      %v621 = vadd.f32 %v619, %v620
      %v622 = vsel %vm568, %v612, 0.0
      %v623 = vadd.f32 %v621, %v622
      %v624 = vsel %vm568, %v613, 0.0
      %v625 = vadd.f32 %v623, %v624
      %v626 = vsel %vm568, %v614, 0.0
      %v627 = vadd.f32 %v625, %v626
      %v628 = vsel %vm568, %v615, 0.0
      %v629 = vadd.f32 %v627, %v628
      %v630 = vsel %vm568, %v616, 0.0
      %v631 = vadd.f32 %v629, %v630
      %v632 = vrot.slane %v631, 4
      %v633 = vadd.f32 %v631, %v632
      %v634 = vrot.slane %v633, 2
      %v635 = vadd.f32 %v633, %v634
      %v636 = vrot.slane %v635, 1
      %v637 = vadd.f32 %v635, %v636
      %638 = vst.msk [vmem:[%s311 + $0x1] sm:$0x1] %vm607, %v637
      %v639 = vsel %vm577, %v530, 0.0
      %v640 = vsel %vm577, %v535, 0.0
      %v641 = vadd.f32 %v639, %v640
      %v642 = vsel %vm577, %v540, 0.0
      %v643 = vadd.f32 %v641, %v642
      %v644 = vsel %vm577, %v545, 0.0
      %v645 = vadd.f32 %v643, %v644
      %v646 = vsel %vm577, %v550, 0.0
      %v647 = vadd.f32 %v645, %v646
      %v648 = vsel %vm577, %v555, 0.0
      %v649 = vadd.f32 %v647, %v648
      %v650 = vsel %vm577, %v560, 0.0
      %v651 = vadd.f32 %v649, %v650
      %v652 = vsel %vm577, %v565, 0.0
      %v653 = vadd.f32 %v651, %v652
      %v654 = vrot.slane %v653, 4
      %v655 = vadd.f32 %v653, %v654
      %v656 = vrot.slane %v655, 2
      %v657 = vadd.f32 %v655, %v656
      %v658 = vrot.slane %v657, 1
      %v659 = vadd.f32 %v657, %v658
      %vm660 = vcmask 122880
      %661 = vst.msk [vmem:[%s315] sm:$0x1] %vm660, %v659
      %v662 = vmul.f32 %v530, %v530
      %v663 = vmul.f32 %v535, %v535
      %v664 = vmul.f32 %v540, %v540
      %v665 = vmul.f32 %v545, %v545
      %v666 = vmul.f32 %v550, %v550
      %v667 = vmul.f32 %v555, %v555
      %v668 = vmul.f32 %v560, %v560
      %v669 = vmul.f32 %v565, %v565
      %v670 = vsel %vm577, %v662, 0.0
      %v671 = vsel %vm577, %v663, 0.0
      %v672 = vadd.f32 %v670, %v671
      %v673 = vsel %vm577, %v664, 0.0
      %v674 = vadd.f32 %v672, %v673
      %v675 = vsel %vm577, %v665, 0.0
      %v676 = vadd.f32 %v674, %v675
      %v677 = vsel %vm577, %v666, 0.0
      %v678 = vadd.f32 %v676, %v677
      %v679 = vsel %vm577, %v667, 0.0
      %v680 = vadd.f32 %v678, %v679
      %v681 = vsel %vm577, %v668, 0.0
      %v682 = vadd.f32 %v680, %v681
      %v683 = vsel %vm577, %v669, 0.0
      %v684 = vadd.f32 %v682, %v683
      %v685 = vrot.slane %v684, 4
      %v686 = vadd.f32 %v684, %v685
      %v687 = vrot.slane %v686, 2
      %v688 = vadd.f32 %v686, %v687
      %v689 = vrot.slane %v688, 1
      %v690 = vadd.f32 %v688, %v689
      %691 = vst.msk [vmem:[%s315 + $0x1] sm:$0x1] %vm660, %v690
      %s692 = smul.u32 8, %s19
      %p693 = scmp.lt.s32.totalorder %s692, 15
      %s694 = scalar_select %p693, %s692, 15
      %s695 = smul.addr %s694, 8
      %s696 = scalar_lea.vmem %s4, %s695
      %s697 = smul.u32 8, %s19
      %p698 = scmp.lt.s32.totalorder %s697, 15
      %s699 = scalar_select %p698, %s697, 15
      %s700 = smul.addr %s699, 8
      %s701 = scalar_lea.vmem %s5, %s700
      %p702 = scmp.lt.s32.totalorder %s19, 1
      %s703 = scalar_select %p702, %s19, 1
      %s704 = smul.addr %s703, 2
      %s705 = scalar_lea.vmem %s6, %s704
      %p706 = scmp.lt.s32.totalorder %s19, 1
      %s707 = scalar_select %p706, %s19, 1
      %s708 = smul.addr %s707, 2
      %s709 = scalar_lea.vmem %s7, %s708
      // Predicated region
      $region37: #{costblock_forward.6} parent=35 // pred_check
        %p710 = pneg %p126
      $region38: #{costblock_forward.6} parent=35 // pred_check_branch
        %712 = sbr.rel (%p710) target = $region40
      $region39: #{costblock_forward.6} parent=35 // pred_region
        %s713 = smul.u32 8, %s19
      $region40: #{costblock_forward.6} parent=35 // pred_fallthru
        _
      // Predicated region
      $region41: #{costblock_forward.6} parent=35 // pred_check
        %p714 = pneg %p152
      $region42: #{costblock_forward.6} parent=35 // pred_check_branch
        %716 = sbr.rel (%p714) target = $region44
      $region43: #{costblock_forward.6} parent=35 // pred_region
        %s717 = smul.u32 8, %s19
      $region44: #{costblock_forward.6} parent=35 // pred_fallthru
        _
      // Predicated region
      $region45: #{costblock_forward.6} parent=35 // pred_check
        %p718 = pneg %p178
      $region46: #{costblock_forward.6} parent=35 // pred_check_branch
        %720 = sbr.rel (%p718) target = $region48
      $region47: #{costblock_forward.6} parent=35 // pred_region
        _
      $region48: #{costblock_forward.6} parent=35 // pred_fallthru
        _
      // Predicated region
      $region49: #{costblock_forward.6} parent=35 // pred_check
        %p721 = pneg %p204
      $region50: #{costblock_forward.6} parent=35 // pred_check_branch
        %723 = sbr.rel (%p721) target = $region52
      $region51: #{costblock_forward.6} parent=35 // pred_region
        _
      $region52: #{costblock_forward.6} parent=35 // pred_fallthru
        _
    $region36: #{costblock_forward.6} parent=5 // pred_fallthru
      _
    %p724 = scmp.le.s32.totalorder 2, %s14
    // Predicated region
    $region53: #{costblock_forward.6} parent=5 // pred_check
      %p725 = pneg %p724
    $region54: #{costblock_forward.6} parent=5 // pred_check_branch
      %727 = sbr.rel (%p725) target = $region56
    $region55: #{costblock_forward.6} parent=5 // pred_region
      %s728 = ssub.s32 %s14, 2
      // Predicated region
      $region57: #{costblock_forward.6} parent=55 // pred_check
        %p729 = pneg %p132
      $region58: #{costblock_forward.6} parent=55 // pred_check_branch
        %731 = sbr.rel (%p729) target = $region60
      $region59: #{costblock_forward.6} parent=55 // pred_region
        %s732 = smul.u32 8, %s20
        %p733 = scmp.lt.s32.totalorder %s732, 15
        %s734 = scalar_select %p733, %s732, 15
        %s735 = smul.addr %s734, 8
        %s736 = scalar_lea.vmem %s4, %s735
      $region60: #{costblock_forward.6} parent=55 // pred_fallthru
        _
      // Predicated region
      $region61: #{costblock_forward.6} parent=55 // pred_check
        %p737 = pneg %p158
      $region62: #{costblock_forward.6} parent=55 // pred_check_branch
        %739 = sbr.rel (%p737) target = $region64
      $region63: #{costblock_forward.6} parent=55 // pred_region
        %s740 = smul.u32 8, %s20
        %p741 = scmp.lt.s32.totalorder %s740, 15
        %s742 = scalar_select %p741, %s740, 15
        %s743 = smul.addr %s742, 8
        %s744 = scalar_lea.vmem %s5, %s743
      $region64: #{costblock_forward.6} parent=55 // pred_fallthru
        _
      // Predicated region
      $region65: #{costblock_forward.6} parent=55 // pred_check
        %p745 = pneg %p184
      $region66: #{costblock_forward.6} parent=55 // pred_check_branch
        %747 = sbr.rel (%p745) target = $region68
      $region67: #{costblock_forward.6} parent=55 // pred_region
        %p748 = scmp.lt.s32.totalorder %s20, 1
        %s749 = scalar_select %p748, %s20, 1
        %s750 = smul.addr %s749, 2
        %s751 = scalar_lea.vmem %s6, %s750
      $region68: #{costblock_forward.6} parent=55 // pred_fallthru
        _
      // Predicated region
      $region69: #{costblock_forward.6} parent=55 // pred_check
        %p752 = pneg %p210
      $region70: #{costblock_forward.6} parent=55 // pred_check_branch
        %754 = sbr.rel (%p752) target = $region72
      $region71: #{costblock_forward.6} parent=55 // pred_region
        %p755 = scmp.lt.s32.totalorder %s20, 1
        %s756 = scalar_select %p755, %s20, 1
        %s757 = smul.addr %s756, 2
        %s758 = scalar_lea.vmem %s7, %s757
      $region72: #{costblock_forward.6} parent=55 // pred_fallthru
        _
    $region56: #{costblock_forward.6} parent=5 // pred_fallthru
      _
  $region6: #{costblock_forward.6} parent=0 // loop_footer
    %s18 = sadd.s32 1, %s14
  $region7: #{costblock_forward.6} parent=0 // loop_footer_branch
    %13 = sbr.rel target = $region3
  $region8: #{costblock_forward.6} parent=0 // loop_exit
    _

// kernel: costblock_forward.11
$region0: #{costblock_forward.11}
  #allocation0 [shape = 'u32[]', space=smem, size = 0x4, offset = 0x4, fixed_abs, tag = 'smem constant byte address 0x4 - core index']
  #allocation1 [shape = 'u32[144,128]{1,0:T(1,128)}', space=vmem, size = 0x12000, scoped, tag = 'internal scratch']
  %s0 = inlined_call_operand.vmem [shape: f32[16,128], index: 0, kind: input, shape index: {}]
  %s1 = inlined_call_operand.vmem [shape: f32[16,128], index: 1, kind: input, shape index: {}]
  %s2 = inlined_call_operand.vmem [shape: f32[4,128], index: 2, kind: input, shape index: {}]
  %s3 = inlined_call_operand.vmem [shape: f32[16,128], index: 3, kind: output, shape index: {}]
  %s4 = sld [smem:[#allocation0]]
  $region45: #{costblock_forward.11} parent=0
    _
  %s6 = ssub.s32 1, %s4
  %s7 = scalar_select 0, %s6, %s4
  loop: start=0, step=1, limit=4
  $region2: #{costblock_forward.11} parent=0 // loop_pre_header
    _
  $region3: #{costblock_forward.11} parent=0 // loop_header
    %s9 = sphi 0, %s13
    %p10 = scmp.ge.s32.totalorder %s9, 4
    %s19 = sphi 0, %s21
    %s22 = sphi 0, %s19
    %s23 = sphi 0, %s22
    %s39 = sphi 0, %s23
    %s45 = sphi 0, %s47
    %s48 = sphi 0, %s45
    %s49 = sphi 0, %s48
    %s65 = sphi 0, %s49
    %s69 = sphi 0, %s69
    %s71 = sphi 0, %s69
    %s72 = sphi 0, %s71
    %s86 = sphi 0, %s72
    %s92 = sphi 0, %s94
    %s95 = sphi 0, %s92
    %s96 = sphi 0, %s95
    %s112 = sphi 0, %s96
  $region4: #{costblock_forward.11} parent=0 // loop_header_branch
    %12 = sbr.rel (%p10) target = $region8
  $region5: #{costblock_forward.11} parent=0 // loop_body
    %s14 = ssub.s32 %s9, 1
    %s15 = ssub.s32 %s9, 2
    %s16 = sadd.s32 %s9, 1
    %s17 = ssub.s32 %s9, %s16
    %p18 = scmp.eq.s32.totalorder %s17, 0
    %s20 = sadd.s32 %s19, 1
    %s21 = scalar_select %p18, %s19, %s20
    %p24 = pneg %p18
    %p25 = scmp.eq.s32.totalorder %s9, 1
    %p26 = por %p24, %p25
    %p27 = scmp.ne.s32.totalorder %s19, %s22
    %p28 = scmp.eq.s32.totalorder %s9, 0
    %p29 = por %p27, %p28
    %p30 = scmp.ne.s32.totalorder %s19, %s22
    %p31 = scmp.eq.s32.totalorder %s14, 1
    %p32 = por %p30, %p31
    %p33 = scmp.ne.s32.totalorder %s22, %s23
    %p34 = scmp.eq.s32.totalorder %s14, 0
    %p35 = por %p33, %p34
    %p36 = scmp.ne.s32.totalorder %s22, %s23
    %p37 = scmp.eq.s32.totalorder %s15, 1
    %p38 = por %p36, %p37
    %p40 = scmp.ne.s32.totalorder %s23, %s39
    %p41 = scmp.eq.s32.totalorder %s15, 0
    %p42 = por %p40, %p41
    %s43 = ssub.s32 %s9, %s16
    %p44 = scmp.eq.s32.totalorder %s43, 0
    %s46 = sadd.s32 %s45, 1
    %s47 = scalar_select %p44, %s45, %s46
    %p50 = pneg %p44
    %p51 = scmp.eq.s32.totalorder %s9, 1
    %p52 = por %p50, %p51
    %p53 = scmp.ne.s32.totalorder %s45, %s48
    %p54 = scmp.eq.s32.totalorder %s9, 0
    %p55 = por %p53, %p54
    %p56 = scmp.ne.s32.totalorder %s45, %s48
    %p57 = scmp.eq.s32.totalorder %s14, 1
    %p58 = por %p56, %p57
    %p59 = scmp.ne.s32.totalorder %s48, %s49
    %p60 = scmp.eq.s32.totalorder %s14, 0
    %p61 = por %p59, %p60
    %p62 = scmp.ne.s32.totalorder %s48, %s49
    %p63 = scmp.eq.s32.totalorder %s15, 1
    %p64 = por %p62, %p63
    %p66 = scmp.ne.s32.totalorder %s49, %s65
    %p67 = scmp.eq.s32.totalorder %s15, 0
    %p68 = por %p66, %p67
    %s70 = sadd.s32 %s69, 1
    %p73 = scmp.eq.s32.totalorder %s9, 1
    %p74 = scmp.ne.s32.totalorder %s69, %s71
    %p75 = scmp.eq.s32.totalorder %s9, 0
    %p76 = por %p74, %p75
    %p77 = scmp.ne.s32.totalorder %s69, %s71
    %p78 = scmp.eq.s32.totalorder %s14, 1
    %p79 = por %p77, %p78
    %p80 = scmp.ne.s32.totalorder %s71, %s72
    %p81 = scmp.eq.s32.totalorder %s14, 0
    %p82 = por %p80, %p81
    %p83 = scmp.ne.s32.totalorder %s71, %s72
    %p84 = scmp.eq.s32.totalorder %s15, 1
    %p85 = por %p83, %p84
    %p87 = scmp.ne.s32.totalorder %s72, %s86
    %p88 = scmp.eq.s32.totalorder %s15, 0
    %p89 = por %p87, %p88
    %s90 = ssub.s32 %s9, %s16
    %p91 = scmp.eq.s32.totalorder %s90, 0
    %s93 = sadd.s32 %s92, 1
    %s94 = scalar_select %p91, %s92, %s93
    %p97 = pneg %p91
    %p98 = scmp.eq.s32.totalorder %s9, 1
    %p99 = por %p97, %p98
    %p100 = scmp.ne.s32.totalorder %s92, %s95
    %p101 = scmp.eq.s32.totalorder %s9, 0
    %p102 = por %p100, %p101
    %p103 = scmp.ne.s32.totalorder %s92, %s95
    %p104 = scmp.eq.s32.totalorder %s14, 1
    %p105 = por %p103, %p104
    %p106 = scmp.ne.s32.totalorder %s95, %s96
    %p107 = scmp.eq.s32.totalorder %s14, 0
    %p108 = por %p106, %p107
    %p109 = scmp.ne.s32.totalorder %s95, %s96
    %p110 = scmp.eq.s32.totalorder %s15, 1
    %p111 = por %p109, %p110
    %p113 = scmp.ne.s32.totalorder %s96, %s112
    %p114 = scmp.eq.s32.totalorder %s15, 0
    %p115 = por %p113, %p114
    %p116 = scmp.le.s32.totalorder 1, %s9
    %p117 = scmp.lt.s32.totalorder %s9, 3
    %p118 = pnand %p116, %p117
    %p119 = pneg %p118
    // Predicated region
    $region9: #{costblock_forward.11} parent=5 // pred_check
      _
    $region10: #{costblock_forward.11} parent=5 // pred_check_branch
      %121 = sbr.rel (%p118) target = $region12
    $region11: #{costblock_forward.11} parent=5 // pred_region
      %s122 = ssub.s32 %s9, 1
      // Predicated region
      $region13: #{costblock_forward.11} parent=11 // pred_check
        %p123 = pneg %p82
      $region14: #{costblock_forward.11} parent=11 // pred_check_branch
        %125 = sbr.rel (%p123) target = $region16
      $region15: #{costblock_forward.11} parent=11 // pred_region
        _
      $region16: #{costblock_forward.11} parent=11 // pred_fallthru
        _
    $region12: #{costblock_forward.11} parent=5 // pred_fallthru
      _
    %p126 = scmp.lt.s32.totalorder %s9, 2
    // Predicated region
    $region17: #{costblock_forward.11} parent=5 // pred_check
      %p127 = pneg %p126
    $region18: #{costblock_forward.11} parent=5 // pred_check_branch
      %129 = sbr.rel (%p127) target = $region20
    $region19: #{costblock_forward.11} parent=5 // pred_region
      // Predicated region
      $region21: #{costblock_forward.11} parent=19 // pred_check
        %p130 = pneg %p29
      $region22: #{costblock_forward.11} parent=19 // pred_check_branch
        %132 = sbr.rel (%p130) target = $region24
      $region23: #{costblock_forward.11} parent=19 // pred_region
        %p133 = scmp.lt.s32.totalorder %s9, 1
        %s134 = scalar_select %p133, %s9, 1
        %s135 = smul.addr %s134, 8
        %s136 = scalar_lea.vmem %s0, %s135
      $region24: #{costblock_forward.11} parent=19 // pred_fallthru
        _
      // Predicated region
      $region25: #{costblock_forward.11} parent=19 // pred_check
        %p137 = pneg %p55
      $region26: #{costblock_forward.11} parent=19 // pred_check_branch
        %139 = sbr.rel (%p137) target = $region28
      $region27: #{costblock_forward.11} parent=19 // pred_region
        %p140 = scmp.lt.s32.totalorder %s9, 1
        %s141 = scalar_select %p140, %s9, 1
        %s142 = smul.addr %s141, 8
        %s143 = scalar_lea.vmem %s1, %s142
      $region28: #{costblock_forward.11} parent=19 // pred_fallthru
        _
    $region20: #{costblock_forward.11} parent=5 // pred_fallthru
      _
    %p144 = scmp.le.s32.totalorder 1, %s9
    %p145 = scmp.lt.s32.totalorder %s9, 3
    %p146 = pnand %p144, %p145
    %p147 = pneg %p146
    // Predicated region
    $region29: #{costblock_forward.11} parent=5 // pred_check
      _
    $region30: #{costblock_forward.11} parent=5 // pred_check_branch
      %149 = sbr.rel (%p146) target = $region32
    $region31: #{costblock_forward.11} parent=5 // pred_region
      %s150 = ssub.s32 %s9, 1
      %p151 = scmp.lt.s32.totalorder %s14, 1
      %s152 = scalar_select %p151, %s14, 1
      %s153 = smul.addr %s152, 8
      %s154 = scalar_lea.vmem %s0, %s153
      %p155 = pneg %p35
      %p156 = pneg %p32
      %p157 = scmp.lt.s32.totalorder %s14, 1
      %s158 = scalar_select %p157, %s14, 1
      %s159 = smul.addr %s158, 8
      %s160 = scalar_lea.vmem %s1, %s159
      %p161 = pneg %p61
      %p162 = pneg %p58
      %p163 = pneg %p82
      %p164 = pneg %p79
      %p165 = pneg %p108
      %p166 = pneg %p105
      %p167 = scmp.lt.s32.totalorder %s14, 1
      %s168 = scalar_select %p167, %s14, 1
      %s169 = smul.addr %s168, 8
      %s170 = scalar_lea.vmem %s3, %s169
      %p171 = scmp.lt.s32.totalorder %s14, 1
      %s172 = scalar_select %p171, %s14, 1
      %s173 = smul.addr %s172, 8
      %s174 = scalar_lea.vmem %s0, %s173
      %p175 = scmp.lt.s32.totalorder %s14, 1
      %s176 = scalar_select %p175, %s14, 1
      %s177 = smul.addr %s176, 8
      %s178 = scalar_lea.vmem %s1, %s177
      %p179 = scmp.lt.s32.totalorder %s14, 1
      %s180 = scalar_select %p179, %s14, 1
      %s181 = smul.addr %s180, 8
      %s182 = scalar_lea.vmem %s3, %s181
      %v183 = vld [vmem:[%s174] sm:$0xff]
      %v184 = vld [vmem:[%s2] sm:$0x1]
      %v185 = vlaneseq
      %v186 = vshrl.u32 %v185, 7
      %v187 = vsub.s32 0, %v186
      %v188 = vrot.slane %v184, %v187
      %v189 = vmul.f32 %v183, %v188
      %v190 = vld [vmem:[%s2 + $0x1] sm:$0x1]
      %v191 = vlaneseq
      %v192 = vshrl.u32 %v191, 7
      %v193 = vsub.s32 0, %v192
      %v194 = vrot.slane %v190, %v193
      %v195 = vadd.f32 %v189, %v194
      %v196 = vld [vmem:[%s178] sm:$0xff]
      %v197 = vld [vmem:[%s2 + $0x2] sm:$0x1]
      %v198 = vlaneseq
      %v199 = vshrl.u32 %v198, 7
      %v200 = vsub.s32 0, %v199
      %v201 = vrot.slane %v197, %v200
      %v202 = vmul.f32 %v196, %v201
      %v203 = vadd.f32 %v195, %v202
      %v204 = vld [vmem:[%s2 + $0x3] sm:$0x1]
      %v205 = vlaneseq
      %v206 = vshrl.u32 %v205, 7
      %v207 = vsub.s32 0, %v206
      %v208 = vrot.slane %v204, %v207
      %v209 = vadd.f32 %v203, %v208
      %v210 = vmax.f32 %v209, 0.0
      %211 = vst [vmem:[%s182] sm:$0xff] %v210
      %p212 = scmp.lt.s32.totalorder %s14, 1
      %s213 = scalar_select %p212, %s14, 1
      %s214 = smul.addr %s213, 8
      %s215 = scalar_lea.vmem %s3, %s214
      // Predicated region
      $region33: #{costblock_forward.11} parent=31 // pred_check
        %p216 = pneg %p105
      $region34: #{costblock_forward.11} parent=31 // pred_check_branch
        %218 = sbr.rel (%p216) target = $region36
      $region35: #{costblock_forward.11} parent=31 // pred_region
        _
      $region36: #{costblock_forward.11} parent=31 // pred_fallthru
        _
    $region32: #{costblock_forward.11} parent=5 // pred_fallthru
      _
    %p219 = scmp.le.s32.totalorder 2, %s9
    // Predicated region
    $region37: #{costblock_forward.11} parent=5 // pred_check
      %p220 = pneg %p219
    $region38: #{costblock_forward.11} parent=5 // pred_check_branch
      %222 = sbr.rel (%p220) target = $region40
    $region39: #{costblock_forward.11} parent=5 // pred_region
      %s223 = ssub.s32 %s9, 2
      // Predicated region
      $region41: #{costblock_forward.11} parent=39 // pred_check
        %p224 = pneg %p111
      $region42: #{costblock_forward.11} parent=39 // pred_check_branch
        %226 = sbr.rel (%p224) target = $region44
      $region43: #{costblock_forward.11} parent=39 // pred_region
        %p227 = scmp.lt.s32.totalorder %s15, 1
        %s228 = scalar_select %p227, %s15, 1
        %s229 = smul.addr %s228, 8
        %s230 = scalar_lea.vmem %s3, %s229
      $region44: #{costblock_forward.11} parent=39 // pred_fallthru
        _
    $region40: #{costblock_forward.11} parent=5 // pred_fallthru
      _
  $region6: #{costblock_forward.11} parent=0 // loop_footer
    %s13 = sadd.s32 1, %s9
  $region7: #{costblock_forward.11} parent=0 // loop_footer_branch
    %8 = sbr.rel target = $region3
  $region8: #{costblock_forward.11} parent=0 // loop_exit
    _

// kernel: costblock_forward.10
$region0: #{costblock_forward.10}
  #allocation0 [shape = 'u32[]', space=smem, size = 0x4, offset = 0x4, fixed_abs, tag = 'smem constant byte address 0x4 - core index']
  #allocation1 [shape = 'u32[144,128]{1,0:T(1,128)}', space=vmem, size = 0x12000, scoped, tag = 'internal scratch']
  %s0 = inlined_call_operand.vmem [shape: f32[2,64,4], index: 0, kind: input, shape index: {}]
  %s1 = inlined_call_operand.vmem [shape: f32[2,64,4], index: 1, kind: input, shape index: {}]
  %s2 = inlined_call_operand.vmem [shape: f32[2,64,4], index: 2, kind: input, shape index: {}]
  %s3 = inlined_call_operand.vmem [shape: f32[6,4], index: 3, kind: input, shape index: {}]
  %s4 = inlined_call_operand.vmem [shape: f32[2,3,4], index: 4, kind: input, shape index: {}]
  %s5 = inlined_call_operand.vmem [shape: f32[4,16], index: 5, kind: input, shape index: {}]
  %s6 = inlined_call_operand.vmem [shape: f32[1,16], index: 6, kind: input, shape index: {}]
  %s7 = inlined_call_operand.vmem [shape: f32[2,64,16], index: 7, kind: output, shape index: {0}]
  %s8 = inlined_call_operand.vmem [shape: f32[2,2,2,16], index: 8, kind: output, shape index: {1}]
  %9 = xla_tuple %s7, %s8
  %s10 = sld [smem:[#allocation0]]
  $region69: #{costblock_forward.10} parent=0
    _
  %s12 = ssub.s32 1, %s10
  %s13 = scalar_select 0, %s12, %s10
  loop: start=0, step=1, limit=6
  $region2: #{costblock_forward.10} parent=0 // loop_pre_header
    _
  $region3: #{costblock_forward.10} parent=0 // loop_header
    %s15 = sphi 0, %s19
    %p16 = scmp.ge.s32.totalorder %s15, 6
    %s22 = sphi 0, %s34
    %s23 = sphi 0, %s30
    %s24 = sphi 0, %s22
    %s25 = sphi 0, %s23
    %s26 = sphi 0, %s24
    %s27 = sphi 0, %s25
    %s39 = sphi 0, %s41
    %s42 = sphi 0, %s39
    %s43 = sphi 0, %s42
    %s59 = sphi 0, %s43
    %s67 = sphi 0, %s69
    %s70 = sphi 0, %s67
    %s71 = sphi 0, %s70
    %s87 = sphi 0, %s71
    %s95 = sphi 0, %s97
    %s98 = sphi 0, %s95
    %s99 = sphi 0, %s98
    %s115 = sphi 0, %s99
    %s119 = sphi 0, %s119
    %s121 = sphi 0, %s119
    %s122 = sphi 0, %s121
    %s136 = sphi 0, %s122
    %s142 = sphi 0, %s144
    %s145 = sphi 0, %s142
    %s146 = sphi 0, %s145
    %s162 = sphi 0, %s146
    %s166 = sphi 0, %s166
    %s168 = sphi 0, %s166
    %s169 = sphi 0, %s168
    %s183 = sphi 0, %s169
    %s187 = sphi 0, %s187
    %s189 = sphi 0, %s187
    %s190 = sphi 0, %s189
    %s204 = sphi 0, %s190
    %s212 = sphi 0, %s214
    %s215 = sphi 0, %s212
    %s216 = sphi 0, %s215
    %s232 = sphi 0, %s216
    %s240 = sphi 0, %s242
    %s243 = sphi 0, %s240
    %s244 = sphi 0, %s243
    %s260 = sphi 0, %s244
  $region4: #{costblock_forward.10} parent=0 // loop_header_branch
    %18 = sbr.rel (%p16) target = $region8
  $region5: #{costblock_forward.10} parent=0 // loop_body
    %s20 = ssub.s32 %s15, 1
    %s21 = ssub.s32 %s15, 2
    %s28 = sadd.s32 1, %s23
    %p29 = scmp.ge.s32.totalorder %s28, 2
    %s30 = scalar_select %p29, 0, %s28
    %s31 = sadd.s32 1, %s22
    %s32 = scalar_select %p29, %s31, %s22
    %p33 = scmp.ge.s32.totalorder %s32, 2
    %s34 = scalar_select %p33, 0, %s32
    %s35 = ssub.s32 %s22, %s34
    %s36 = ssub.s32 %s23, %s30
    %s37 = sor.u32 %s35, %s36
    %p38 = scmp.eq.s32.totalorder %s37, 0
    %s40 = sadd.s32 %s39, 1
    %s41 = scalar_select %p38, %s39, %s40
    %p44 = pneg %p38
    %p45 = scmp.eq.s32.totalorder %s15, 3
    %p46 = por %p44, %p45
    %p47 = scmp.ne.s32.totalorder %s39, %s42
    %p48 = scmp.eq.s32.totalorder %s15, 0
    %p49 = por %p47, %p48
    %p50 = scmp.ne.s32.totalorder %s39, %s42
    %p51 = scmp.eq.s32.totalorder %s20, 3
    %p52 = por %p50, %p51
    %p53 = scmp.ne.s32.totalorder %s42, %s43
    %p54 = scmp.eq.s32.totalorder %s20, 0
    %p55 = por %p53, %p54
    %p56 = scmp.ne.s32.totalorder %s42, %s43
    %p57 = scmp.eq.s32.totalorder %s21, 3
    %p58 = por %p56, %p57
    %p60 = scmp.ne.s32.totalorder %s43, %s59
    %p61 = scmp.eq.s32.totalorder %s21, 0
    %p62 = por %p60, %p61
    %s63 = ssub.s32 %s22, %s34
    %s64 = ssub.s32 %s23, %s30
    %s65 = sor.u32 %s63, %s64
    %p66 = scmp.eq.s32.totalorder %s65, 0
    %s68 = sadd.s32 %s67, 1
    %s69 = scalar_select %p66, %s67, %s68
    %p72 = pneg %p66
    %p73 = scmp.eq.s32.totalorder %s15, 3
    %p74 = por %p72, %p73
    %p75 = scmp.ne.s32.totalorder %s67, %s70
    %p76 = scmp.eq.s32.totalorder %s15, 0
    %p77 = por %p75, %p76
    %p78 = scmp.ne.s32.totalorder %s67, %s70
    %p79 = scmp.eq.s32.totalorder %s20, 3
    %p80 = por %p78, %p79
    %p81 = scmp.ne.s32.totalorder %s70, %s71
    %p82 = scmp.eq.s32.totalorder %s20, 0
    %p83 = por %p81, %p82
    %p84 = scmp.ne.s32.totalorder %s70, %s71
    %p85 = scmp.eq.s32.totalorder %s21, 3
    %p86 = por %p84, %p85
    %p88 = scmp.ne.s32.totalorder %s71, %s87
    %p89 = scmp.eq.s32.totalorder %s21, 0
    %p90 = por %p88, %p89
    %s91 = ssub.s32 %s22, %s34
    %s92 = ssub.s32 %s23, %s30
    %s93 = sor.u32 %s91, %s92
    %p94 = scmp.eq.s32.totalorder %s93, 0
    %s96 = sadd.s32 %s95, 1
    %s97 = scalar_select %p94, %s95, %s96
    %p100 = pneg %p94
    %p101 = scmp.eq.s32.totalorder %s15, 3
    %p102 = por %p100, %p101
    %p103 = scmp.ne.s32.totalorder %s95, %s98
    %p104 = scmp.eq.s32.totalorder %s15, 0
    %p105 = por %p103, %p104
    %p106 = scmp.ne.s32.totalorder %s95, %s98
    %p107 = scmp.eq.s32.totalorder %s20, 3
    %p108 = por %p106, %p107
    %p109 = scmp.ne.s32.totalorder %s98, %s99
    %p110 = scmp.eq.s32.totalorder %s20, 0
    %p111 = por %p109, %p110
    %p112 = scmp.ne.s32.totalorder %s98, %s99
    %p113 = scmp.eq.s32.totalorder %s21, 3
    %p114 = por %p112, %p113
    %p116 = scmp.ne.s32.totalorder %s99, %s115
    %p117 = scmp.eq.s32.totalorder %s21, 0
    %p118 = por %p116, %p117
    %s120 = sadd.s32 %s119, 1
    %p123 = scmp.eq.s32.totalorder %s15, 3
    %p124 = scmp.ne.s32.totalorder %s119, %s121
    %p125 = scmp.eq.s32.totalorder %s15, 0
    %p126 = por %p124, %p125
    %p127 = scmp.ne.s32.totalorder %s119, %s121
    %p128 = scmp.eq.s32.totalorder %s20, 3
    %p129 = por %p127, %p128
    %p130 = scmp.ne.s32.totalorder %s121, %s122
    %p131 = scmp.eq.s32.totalorder %s20, 0
    %p132 = por %p130, %p131
    %p133 = scmp.ne.s32.totalorder %s121, %s122
    %p134 = scmp.eq.s32.totalorder %s21, 3
    %p135 = por %p133, %p134
    %p137 = scmp.ne.s32.totalorder %s122, %s136
    %p138 = scmp.eq.s32.totalorder %s21, 0
    %p139 = por %p137, %p138
    %s140 = ssub.s32 %s22, %s34
    %p141 = scmp.eq.s32.totalorder %s140, 0
    %s143 = sadd.s32 %s142, 1
    %s144 = scalar_select %p141, %s142, %s143
    %p147 = pneg %p141
    %p148 = scmp.eq.s32.totalorder %s15, 3
    %p149 = por %p147, %p148
    %p150 = scmp.ne.s32.totalorder %s142, %s145
    %p151 = scmp.eq.s32.totalorder %s15, 0
    %p152 = por %p150, %p151
    %p153 = scmp.ne.s32.totalorder %s142, %s145
    %p154 = scmp.eq.s32.totalorder %s20, 3
    %p155 = por %p153, %p154
    %p156 = scmp.ne.s32.totalorder %s145, %s146
    %p157 = scmp.eq.s32.totalorder %s20, 0
    %p158 = por %p156, %p157
    %p159 = scmp.ne.s32.totalorder %s145, %s146
    %p160 = scmp.eq.s32.totalorder %s21, 3
    %p161 = por %p159, %p160
    %p163 = scmp.ne.s32.totalorder %s146, %s162
    %p164 = scmp.eq.s32.totalorder %s21, 0
    %p165 = por %p163, %p164
    %s167 = sadd.s32 %s166, 1
    %p170 = scmp.eq.s32.totalorder %s15, 3
    %p171 = scmp.ne.s32.totalorder %s166, %s168
    %p172 = scmp.eq.s32.totalorder %s15, 0
    %p173 = por %p171, %p172
    %p174 = scmp.ne.s32.totalorder %s166, %s168
    %p175 = scmp.eq.s32.totalorder %s20, 3
    %p176 = por %p174, %p175
    %p177 = scmp.ne.s32.totalorder %s168, %s169
    %p178 = scmp.eq.s32.totalorder %s20, 0
    %p179 = por %p177, %p178
    %p180 = scmp.ne.s32.totalorder %s168, %s169
    %p181 = scmp.eq.s32.totalorder %s21, 3
    %p182 = por %p180, %p181
    %p184 = scmp.ne.s32.totalorder %s169, %s183
    %p185 = scmp.eq.s32.totalorder %s21, 0
    %p186 = por %p184, %p185
    %s188 = sadd.s32 %s187, 1
    %p191 = scmp.eq.s32.totalorder %s15, 3
    %p192 = scmp.ne.s32.totalorder %s187, %s189
    %p193 = scmp.eq.s32.totalorder %s15, 0
    %p194 = por %p192, %p193
    %p195 = scmp.ne.s32.totalorder %s187, %s189
    %p196 = scmp.eq.s32.totalorder %s20, 3
    %p197 = por %p195, %p196
    %p198 = scmp.ne.s32.totalorder %s189, %s190
    %p199 = scmp.eq.s32.totalorder %s20, 0
    %p200 = por %p198, %p199
    %p201 = scmp.ne.s32.totalorder %s189, %s190
    %p202 = scmp.eq.s32.totalorder %s21, 3
    %p203 = por %p201, %p202
    %p205 = scmp.ne.s32.totalorder %s190, %s204
    %p206 = scmp.eq.s32.totalorder %s21, 0
    %p207 = por %p205, %p206
    %s208 = ssub.s32 %s22, %s34
    %s209 = ssub.s32 %s23, %s30
    %s210 = sor.u32 %s208, %s209
    %p211 = scmp.eq.s32.totalorder %s210, 0
    %s213 = sadd.s32 %s212, 1
    %s214 = scalar_select %p211, %s212, %s213
    %p217 = pneg %p211
    %p218 = scmp.eq.s32.totalorder %s15, 3
    %p219 = por %p217, %p218
    %p220 = scmp.ne.s32.totalorder %s212, %s215
    %p221 = scmp.eq.s32.totalorder %s15, 0
    %p222 = por %p220, %p221
    %p223 = scmp.ne.s32.totalorder %s212, %s215
    %p224 = scmp.eq.s32.totalorder %s20, 3
    %p225 = por %p223, %p224
    %p226 = scmp.ne.s32.totalorder %s215, %s216
    %p227 = scmp.eq.s32.totalorder %s20, 0
    %p228 = por %p226, %p227
    %p229 = scmp.ne.s32.totalorder %s215, %s216
    %p230 = scmp.eq.s32.totalorder %s21, 3
    %p231 = por %p229, %p230
    %p233 = scmp.ne.s32.totalorder %s216, %s232
    %p234 = scmp.eq.s32.totalorder %s21, 0
    %p235 = por %p233, %p234
    %s236 = ssub.s32 %s22, %s34
    %s237 = ssub.s32 %s23, %s30
    %s238 = sor.u32 %s236, %s237
    %p239 = scmp.eq.s32.totalorder %s238, 0
    %s241 = sadd.s32 %s240, 1
    %s242 = scalar_select %p239, %s240, %s241
    %p245 = pneg %p239
    %p246 = scmp.eq.s32.totalorder %s15, 3
    %p247 = por %p245, %p246
    %p248 = scmp.ne.s32.totalorder %s240, %s243
    %p249 = scmp.eq.s32.totalorder %s15, 0
    %p250 = por %p248, %p249
    %p251 = scmp.ne.s32.totalorder %s240, %s243
    %p252 = scmp.eq.s32.totalorder %s20, 3
    %p253 = por %p251, %p252
    %p254 = scmp.ne.s32.totalorder %s243, %s244
    %p255 = scmp.eq.s32.totalorder %s20, 0
    %p256 = por %p254, %p255
    %p257 = scmp.ne.s32.totalorder %s243, %s244
    %p258 = scmp.eq.s32.totalorder %s21, 3
    %p259 = por %p257, %p258
    %p261 = scmp.ne.s32.totalorder %s244, %s260
    %p262 = scmp.eq.s32.totalorder %s21, 0
    %p263 = por %p261, %p262
    %p264 = scmp.le.s32.totalorder 1, %s15
    %p265 = scmp.lt.s32.totalorder %s15, 5
    %p266 = pnand %p264, %p265
    %p267 = pneg %p266
    // Predicated region
    $region9: #{costblock_forward.10} parent=5 // pred_check
      _
    $region10: #{costblock_forward.10} parent=5 // pred_check_branch
      %269 = sbr.rel (%p266) target = $region12
    $region11: #{costblock_forward.10} parent=5 // pred_region
      %s270 = ssub.s32 %s15, 1
      // Predicated region
      $region13: #{costblock_forward.10} parent=11 // pred_check
        %p271 = pneg %p132
      $region14: #{costblock_forward.10} parent=11 // pred_check_branch
        %273 = sbr.rel (%p271) target = $region16
      $region15: #{costblock_forward.10} parent=11 // pred_region
        _
      $region16: #{costblock_forward.10} parent=11 // pred_fallthru
        _
      // Predicated region
      $region17: #{costblock_forward.10} parent=11 // pred_check
        %p274 = pneg %p179
      $region18: #{costblock_forward.10} parent=11 // pred_check_branch
        %276 = sbr.rel (%p274) target = $region20
      $region19: #{costblock_forward.10} parent=11 // pred_region
        _
      $region20: #{costblock_forward.10} parent=11 // pred_fallthru
        _
      // Predicated region
      $region21: #{costblock_forward.10} parent=11 // pred_check
        %p277 = pneg %p200
      $region22: #{costblock_forward.10} parent=11 // pred_check_branch
        %279 = sbr.rel (%p277) target = $region24
      $region23: #{costblock_forward.10} parent=11 // pred_region
        _
      $region24: #{costblock_forward.10} parent=11 // pred_fallthru
        _
    $region12: #{costblock_forward.10} parent=5 // pred_fallthru
      _
    %p280 = scmp.lt.s32.totalorder %s15, 4
    // Predicated region
    $region25: #{costblock_forward.10} parent=5 // pred_check
      %p281 = pneg %p280
    $region26: #{costblock_forward.10} parent=5 // pred_check_branch
      %283 = sbr.rel (%p281) target = $region28
    $region27: #{costblock_forward.10} parent=5 // pred_region
      // Predicated region
      $region29: #{costblock_forward.10} parent=27 // pred_check
        %p284 = pneg %p49
      $region30: #{costblock_forward.10} parent=27 // pred_check_branch
        %286 = sbr.rel (%p284) target = $region32
      $region31: #{costblock_forward.10} parent=27 // pred_region
        %s287 = smul.u32 4, %s23
        %p288 = scmp.lt.s32.totalorder %s22, 1
        %s289 = scalar_select %p288, %s22, 1
        %p290 = scmp.lt.s32.totalorder %s287, 7
        %s291 = scalar_select %p290, %s287, 7
        %s292 = smul.addr %s289, 8
        %s293 = sadd.s32 %s291, %s292
        %s294 = smul.addr %s293, 8
        %s295 = scalar_lea.vmem %s0, %s294
        %s296 = smul.u32 4, %s23
      $region32: #{costblock_forward.10} parent=27 // pred_fallthru
        _
      // Predicated region
      $region33: #{costblock_forward.10} parent=27 // pred_check
        %p297 = pneg %p77
      $region34: #{costblock_forward.10} parent=27 // pred_check_branch
        %299 = sbr.rel (%p297) target = $region36
      $region35: #{costblock_forward.10} parent=27 // pred_region
        %s300 = smul.u32 4, %s23
        %p301 = scmp.lt.s32.totalorder %s22, 1
        %s302 = scalar_select %p301, %s22, 1
        %p303 = scmp.lt.s32.totalorder %s300, 7
        %s304 = scalar_select %p303, %s300, 7
        %s305 = smul.addr %s302, 8
        %s306 = sadd.s32 %s304, %s305
        %s307 = smul.addr %s306, 8
        %s308 = scalar_lea.vmem %s1, %s307
        %s309 = smul.u32 4, %s23
      $region36: #{costblock_forward.10} parent=27 // pred_fallthru
        _
      // Predicated region
      $region37: #{costblock_forward.10} parent=27 // pred_check
        %p310 = pneg %p105
      $region38: #{costblock_forward.10} parent=27 // pred_check_branch
        %312 = sbr.rel (%p310) target = $region40
      $region39: #{costblock_forward.10} parent=27 // pred_region
        %s313 = smul.u32 4, %s23
        %p314 = scmp.lt.s32.totalorder %s22, 1
        %s315 = scalar_select %p314, %s22, 1
        %p316 = scmp.lt.s32.totalorder %s313, 7
        %s317 = scalar_select %p316, %s313, 7
        %s318 = smul.addr %s315, 8
        %s319 = sadd.s32 %s317, %s318
        %s320 = smul.addr %s319, 8
        %s321 = scalar_lea.vmem %s2, %s320
        %s322 = smul.u32 4, %s23
      $region40: #{costblock_forward.10} parent=27 // pred_fallthru
        _
      // Predicated region
      $region41: #{costblock_forward.10} parent=27 // pred_check
        %p323 = pneg %p152
      $region42: #{costblock_forward.10} parent=27 // pred_check_branch
        %325 = sbr.rel (%p323) target = $region44
      $region43: #{costblock_forward.10} parent=27 // pred_region
        %p326 = scmp.lt.s32.totalorder %s22, 1
        %s327 = scalar_select %p326, %s22, 1
        %s328 = smul.addr %s327, 4
        %s329 = scalar_lea.vmem %s4, %s328
      $region44: #{costblock_forward.10} parent=27 // pred_fallthru
        _
    $region28: #{costblock_forward.10} parent=5 // pred_fallthru
      _
    %p330 = scmp.le.s32.totalorder 1, %s15
    %p331 = scmp.lt.s32.totalorder %s15, 5
    %p332 = pnand %p330, %p331
    %p333 = pneg %p332
    // Predicated region
    $region45: #{costblock_forward.10} parent=5 // pred_check
      _
    $region46: #{costblock_forward.10} parent=5 // pred_check_branch
      %335 = sbr.rel (%p332) target = $region48
    $region47: #{costblock_forward.10} parent=5 // pred_region
      %s336 = ssub.s32 %s15, 1
      %s337 = smul.u32 4, %s25
      %p338 = scmp.lt.s32.totalorder %s24, 1
      %s339 = scalar_select %p338, %s24, 1
      %p340 = scmp.lt.s32.totalorder %s337, 7
      %s341 = scalar_select %p340, %s337, 7
      %s342 = smul.addr %s339, 8
      %s343 = sadd.s32 %s341, %s342
      %s344 = smul.addr %s343, 8
      %s345 = scalar_lea.vmem %s0, %s344
      %p346 = pneg %p55
      %p347 = pneg %p52
      %s348 = smul.u32 4, %s25
      %p349 = scmp.lt.s32.totalorder %s24, 1
      %s350 = scalar_select %p349, %s24, 1
      %p351 = scmp.lt.s32.totalorder %s348, 7
      %s352 = scalar_select %p351, %s348, 7
      %s353 = smul.addr %s350, 8
      %s354 = sadd.s32 %s352, %s353
      %s355 = smul.addr %s354, 8
      %s356 = scalar_lea.vmem %s1, %s355
      %p357 = pneg %p83
      %p358 = pneg %p80
      %s359 = smul.u32 4, %s25
      %p360 = scmp.lt.s32.totalorder %s24, 1
      %s361 = scalar_select %p360, %s24, 1
      %p362 = scmp.lt.s32.totalorder %s359, 7
      %s363 = scalar_select %p362, %s359, 7
      %s364 = smul.addr %s361, 8
      %s365 = sadd.s32 %s363, %s364
      %s366 = smul.addr %s365, 8
      %s367 = scalar_lea.vmem %s2, %s366
      %p368 = pneg %p111
      %p369 = pneg %p108
      %p370 = pneg %p132
      %p371 = pneg %p129
      %p372 = scmp.lt.s32.totalorder %s24, 1
      %s373 = scalar_select %p372, %s24, 1
      %s374 = smul.addr %s373, 4
      %s375 = scalar_lea.vmem %s4, %s374
      %p376 = pneg %p158
      %p377 = pneg %p155
      %p378 = pneg %p179
      %p379 = pneg %p176
      %p380 = pneg %p200
      %p381 = pneg %p197
      %p382 = pneg %p228
      %p383 = pneg %p225
      %s384 = smul.u32 4, %s25
      %p385 = scmp.lt.s32.totalorder %s24, 1
      %s386 = scalar_select %p385, %s24, 1
      %p387 = scmp.lt.s32.totalorder %s384, 7
      %s388 = scalar_select %p387, %s384, 7
      %s389 = smul.addr %s386, 8
      %s390 = sadd.s32 %s388, %s389
      %s391 = smul.addr %s390, 8
      %s392 = scalar_lea.vmem %s7, %s391
      %p393 = pneg %p256
      %p394 = pneg %p253
      %p395 = scmp.lt.s32.totalorder %s24, 1
      %s396 = scalar_select %p395, %s24, 1
      %p397 = scmp.lt.s32.totalorder %s25, 1
      %s398 = scalar_select %p397, %s25, 1
      %s399 = smul.addr %s396, 2
      %s400 = sadd.s32 %s398, %s399
      %s401 = smul.addr %s400, 2
      %s402 = scalar_lea.vmem %s8, %s401
      %s403 = smul.u32 4, %s25
      %p404 = scmp.lt.s32.totalorder %s24, 1
      %s405 = scalar_select %p404, %s24, 1
      %p406 = scmp.lt.s32.totalorder %s403, 7
      %s407 = scalar_select %p406, %s403, 7
      %s408 = smul.addr %s405, 8
      %s409 = sadd.s32 %s407, %s408
      %s410 = smul.addr %s409, 8
      %s411 = scalar_lea.vmem %s0, %s410
      %s412 = smul.u32 4, %s25
      %s413 = smul.u32 4, %s25
      %p414 = scmp.lt.s32.totalorder %s24, 1
      %s415 = scalar_select %p414, %s24, 1
      %p416 = scmp.lt.s32.totalorder %s413, 7
      %s417 = scalar_select %p416, %s413, 7
      %s418 = smul.addr %s415, 8
      %s419 = sadd.s32 %s417, %s418
      %s420 = smul.addr %s419, 8
      %s421 = scalar_lea.vmem %s1, %s420
      %s422 = smul.u32 4, %s25
      %s423 = smul.u32 4, %s25
      %p424 = scmp.lt.s32.totalorder %s24, 1
      %s425 = scalar_select %p424, %s24, 1
      %p426 = scmp.lt.s32.totalorder %s423, 7
      %s427 = scalar_select %p426, %s423, 7
      %s428 = smul.addr %s425, 8
      %s429 = sadd.s32 %s427, %s428
      %s430 = smul.addr %s429, 8
      %s431 = scalar_lea.vmem %s2, %s430
      %s432 = smul.u32 4, %s25
      %p433 = scmp.lt.s32.totalorder %s24, 1
      %s434 = scalar_select %p433, %s24, 1
      %s435 = smul.addr %s434, 4
      %s436 = scalar_lea.vmem %s4, %s435
      %s437 = smul.u32 4, %s25
      %p438 = scmp.lt.s32.totalorder %s24, 1
      %s439 = scalar_select %p438, %s24, 1
      %p440 = scmp.lt.s32.totalorder %s437, 7
      %s441 = scalar_select %p440, %s437, 7
      %s442 = smul.addr %s439, 8
      %s443 = sadd.s32 %s441, %s442
      %s444 = smul.addr %s443, 8
      %s445 = scalar_lea.vmem %s7, %s444
      %s446 = smul.u32 4, %s25
      %p447 = scmp.lt.s32.totalorder %s24, 1
      %s448 = scalar_select %p447, %s24, 1
      %p449 = scmp.lt.s32.totalorder %s25, 1
      %s450 = scalar_select %p449, %s25, 1
      %s451 = smul.addr %s448, 2
      %s452 = sadd.s32 %s450, %s451
      %s453 = smul.addr %s452, 2
      %s454 = scalar_lea.vmem %s8, %s453
      %v455 = vld [vmem:[%s411] sm:$0xff]
      %v456 = vld [vmem:[%s411 + $0x8] sm:$0xff]
      %v457 = vld [vmem:[%s411 + $0x10] sm:$0xff]
      %v458 = vld [vmem:[%s411 + $0x18] sm:$0xff]
      %v459 = vld [vmem:[%s3] sm:$0x1]
      %v460 = vlaneseq
      %v461 = vshrl.u32 %v460, 7
      %v462 = vsub.s32 0, %v461
      %v463 = vrot.slane %v459, %v462
      %v464 = vmul.f32 %v455, %v463
      %v465 = vmul.f32 %v456, %v463
      %v466 = vmul.f32 %v457, %v463
      %v467 = vmul.f32 %v458, %v463
      %v468 = vld [vmem:[%s3 + $0x1] sm:$0x1]
      %v469 = vlaneseq
      %v470 = vshrl.u32 %v469, 7
      %v471 = vsub.s32 0, %v470
      %v472 = vrot.slane %v468, %v471
      %v473 = vadd.f32 %v464, %v472
      %v474 = vadd.f32 %v465, %v472
      %v475 = vadd.f32 %v466, %v472
      %v476 = vadd.f32 %v467, %v472
      %v477 = vmax.f32 %v473, 0.0
      %v478 = vmax.f32 %v474, 0.0
      %v479 = vmax.f32 %v475, 0.0
      %v480 = vmax.f32 %v476, 0.0
      %v481 = vld [vmem:[%s436] sm:$0x1]
      %v482 = vlaneseq
      %v483 = vshrl.u32 %v482, 7
      %v484 = vsub.s32 0, %v483
      %v485 = vrot.slane %v481, %v484
      %v486 = vmul.f32 %v477, %v485
      %v487 = vmul.f32 %v478, %v485
      %v488 = vmul.f32 %v479, %v485
      %v489 = vmul.f32 %v480, %v485
      %v490 = vld [vmem:[%s421] sm:$0xff]
      %v491 = vld [vmem:[%s421 + $0x8] sm:$0xff]
      %v492 = vld [vmem:[%s421 + $0x10] sm:$0xff]
      %v493 = vld [vmem:[%s421 + $0x18] sm:$0xff]
      %v494 = vld [vmem:[%s3 + $0x2] sm:$0x1]
      %v495 = vlaneseq
      %v496 = vshrl.u32 %v495, 7
      %v497 = vsub.s32 0, %v496
      %v498 = vrot.slane %v494, %v497
      %v499 = vmul.f32 %v490, %v498
      %v500 = vmul.f32 %v491, %v498
      %v501 = vmul.f32 %v492, %v498
      %v502 = vmul.f32 %v493, %v498
      %v503 = vld [vmem:[%s3 + $0x3] sm:$0x1]
      %v504 = vlaneseq
      %v505 = vshrl.u32 %v504, 7
      %v506 = vsub.s32 0, %v505
      %v507 = vrot.slane %v503, %v506
      %v508 = vadd.f32 %v499, %v507
      %v509 = vadd.f32 %v500, %v507
      %v510 = vadd.f32 %v501, %v507
      %v511 = vadd.f32 %v502, %v507
      %v512 = vmax.f32 %v508, 0.0
      %v513 = vmax.f32 %v509, 0.0
      %v514 = vmax.f32 %v510, 0.0
      %v515 = vmax.f32 %v511, 0.0
      %v516 = vld [vmem:[%s436 + $0x1] sm:$0x1]
      %v517 = vlaneseq
      %v518 = vshrl.u32 %v517, 7
      %v519 = vsub.s32 0, %v518
      %v520 = vrot.slane %v516, %v519
      %v521 = vmul.f32 %v512, %v520
      %v522 = vmul.f32 %v513, %v520
      %v523 = vmul.f32 %v514, %v520
      %v524 = vmul.f32 %v515, %v520
      %v525 = vadd.f32 %v486, %v521
      %v526 = vadd.f32 %v487, %v522
      %v527 = vadd.f32 %v488, %v523
      %v528 = vadd.f32 %v489, %v524
      %v529 = vld [vmem:[%s431] sm:$0xff]
      %v530 = vld [vmem:[%s431 + $0x8] sm:$0xff]
      %v531 = vld [vmem:[%s431 + $0x10] sm:$0xff]
      %v532 = vld [vmem:[%s431 + $0x18] sm:$0xff]
      %v533 = vld [vmem:[%s3 + $0x4] sm:$0x1]
      %v534 = vlaneseq
      %v535 = vshrl.u32 %v534, 7
      %v536 = vsub.s32 0, %v535
      %v537 = vrot.slane %v533, %v536
      %v538 = vmul.f32 %v529, %v537
      %v539 = vmul.f32 %v530, %v537
      %v540 = vmul.f32 %v531, %v537
      %v541 = vmul.f32 %v532, %v537
      %v542 = vld [vmem:[%s3 + $0x5] sm:$0x1]
      %v543 = vlaneseq
      %v544 = vshrl.u32 %v543, 7
      %v545 = vsub.s32 0, %v544
      %v546 = vrot.slane %v542, %v545
      %v547 = vadd.f32 %v538, %v546
      %v548 = vadd.f32 %v539, %v546
      %v549 = vadd.f32 %v540, %v546
      %v550 = vadd.f32 %v541, %v546
      %v551 = vmax.f32 %v547, 0.0
      %v552 = vmax.f32 %v548, 0.0
      %v553 = vmax.f32 %v549, 0.0
      %v554 = vmax.f32 %v550, 0.0
      %v555 = vld [vmem:[%s436 + $0x2] sm:$0x1]
      %v556 = vlaneseq
      %v557 = vshrl.u32 %v556, 7
      %v558 = vsub.s32 0, %v557
      %v559 = vrot.slane %v555, %v558
      %v560 = vmul.f32 %v551, %v559
      %v561 = vmul.f32 %v552, %v559
      %v562 = vmul.f32 %v553, %v559
      %v563 = vmul.f32 %v554, %v559
      %v564 = vadd.f32 %v525, %v560
      %v565 = vadd.f32 %v526, %v561
      %v566 = vadd.f32 %v527, %v562
      %v567 = vadd.f32 %v528, %v563
      %v568 = vld [vmem:[%s5] sm:$0xf]
      %v569 = vld [vmem:[%s6] sm:$0x1]
      %v571 = vlaneseq
      %v572 = vshrl.u32 %v571, 7
      %v573 = vsub.s32 0, %v572
      %v574 = vrot.slane %v569, %v573
      %vm576 = vcmask 31744
      %v578 = vsel %vm576, %v564, 0
      %v581 = vsel %vm576, %v565, 0
      %v584 = vsel %vm576, %v566, 0
      %v587 = vsel %vm576, %v567, 0
      %vm589 = vcmask 1043456
      %v591 = vsel %vm589, %v568, 0
      %593 = vmatprep.subr.mxu0 0.0
      %594 = vmatpush1.msra.mxu0 %v591
      %595 = vmatprep.subr.mxu0 0.0
      %596 = vmatpush1.msra.mxu0 0.0
      %597 = vmatprep.subr.mxu0 0.0
      %598 = vmatpush1.msra.mxu0 0.0
      %599 = vmatprep.subr.mxu0 0.0
      %600 = vmatpush1.msra.mxu0 0.0
      %601 = vmatprep.subr.mxu0 0.0
      %602 = vmatpush1.msra.mxu0 0.0
      %603 = vmatprep.subr.mxu0 0.0
      %604 = vmatpush1.msra.mxu0 0.0
      %605 = vmatprep.subr.mxu0 0.0
      %606 = vmatpush1.msra.mxu0 0.0
      %607 = vmatprep.subr.mxu0 0.0
      %608 = vmatpush1.msra.mxu0 0.0
      %609 = vmatprep.subr.mxu0 0.0
      %610 = vmatpush1.msra.mxu0 0.0
      %611 = vmatprep.subr.mxu0 0.0
      %612 = vmatpush1.msra.mxu0 0.0
      %613 = vmatprep.subr.mxu0 0.0
      %614 = vmatpush1.msra.mxu0 0.0
      %615 = vmatprep.subr.mxu0 0.0
      %616 = vmatpush1.msra.mxu0 0.0
      %617 = vmatprep.subr.mxu0 0.0
      %618 = vmatpush1.msra.mxu0 0.0
      %619 = vmatprep.subr.mxu0 0.0
      %620 = vmatpush1.msra.mxu0 0.0
      %621 = vmatprep.subr.mxu0 0.0
      %622 = vmatpush1.msra.mxu0 0.0
      %623 = vmatprep.subr.mxu0 0.0
      %624 = vmatpush1.msra.mxu0 0.0
      %625 = vmatprep.subr.mxu0 0.0
      %626 = vmatpush1.msra.mxu0 0.0
      %627 = vmatprep.subr.mxu0 0.0
      %628 = vmatpush1.msra.mxu0 0.0
      %629 = vmatprep.subr.mxu0 0.0
      %630 = vmatpush1.msra.mxu0 0.0
      %631 = vmatprep.subr.mxu0 0.0
      %632 = vmatpush1.msra.mxu0 0.0
      %633 = vmatprep.subr.mxu0 0.0
      %634 = vmatpush1.msra.mxu0 0.0
      %635 = vmatprep.subr.mxu0 0.0
      %636 = vmatpush1.msra.mxu0 0.0
      %637 = vmatprep.subr.mxu0 0.0
      %638 = vmatpush1.msra.mxu0 0.0
      %639 = vmatprep.subr.mxu0 0.0
      %640 = vmatpush1.msra.mxu0 0.0
      %641 = vmatprep.subr.mxu0 0.0
      %642 = vmatpush1.msra.mxu0 0.0
      %643 = vmatprep.subr.mxu0 0.0
      %644 = vmatpush1.msra.mxu0 0.0
      %645 = vmatprep.subr.mxu0 0.0
      %646 = vmatpush1.msra.mxu0 0.0
      %647 = vmatprep.subr.mxu0 0.0
      %648 = vmatpush1.msra.mxu0 0.0
      %649 = vmatprep.subr.mxu0 0.0
      %650 = vmatpush1.msra.mxu0 0.0
      %651 = vmatprep.subr.mxu0 0.0
      %652 = vmatpush1.msra.mxu0 0.0
      %653 = vmatprep.subr.mxu0 0.0
      %654 = vmatpush1.msra.mxu0 0.0
      %655 = vmatprep.subr.mxu0 0.0
      %656 = vmatpush1.msra.mxu0 0.0
      %657 = vmatprep.mubr.f32.mxu0 0.0
      %658 = vmatmul.mubr.f32.gmra.mrb[0].mxu0 %v578
      %v659 = vpop.f32.mrb[0].mxu0
      %v660 = vadd.f32 %v574, %v659
      %v661 = vpop.f32.mrb[0].mxu0
      %662 = vmatprep.mubr.f32.mxu0 0.0
      %663 = vmatmul.mubr.f32.gmra.mrb[0].mxu0 %v581
      %v664 = vpop.f32.mrb[0].mxu0
      %v665 = vadd.f32 %v574, %v664
      %v666 = vpop.f32.mrb[0].mxu0
      %667 = vmatprep.mubr.f32.mxu0 0.0
      %668 = vmatmul.mubr.f32.gmra.mrb[0].mxu0 %v584
      %v669 = vpop.f32.mrb[0].mxu0
      %v670 = vadd.f32 %v574, %v669
      %v671 = vpop.f32.mrb[0].mxu0
      %672 = vmatprep.mubr.f32.mxu0 0.0
      %673 = vmatmul.mubr.f32.gmra.mrb[0].mxu0 %v587
      %v674 = vpop.f32.mrb[0].mxu0
      %v675 = vadd.f32 %v574, %v674
      %v676 = vpop.f32.mrb[0].mxu0
      %677 = vdwg.mxu0
      %vm678 = vcmask 130048
      %679 = vst.msk [vmem:[%s445] sm:$0xff] %vm678, %v660
      %680 = vst.msk [vmem:[%s445 + $0x8] sm:$0xff] %vm678, %v665
      %681 = vst.msk [vmem:[%s445 + $0x10] sm:$0xff] %vm678, %v670
      %682 = vst.msk [vmem:[%s445 + $0x18] sm:$0xff] %vm678, %v675
      %v683 = vsel %vm678, %v660, 0.0
      %v684 = vsel %vm678, %v665, 0.0
      %v685 = vadd.f32 %v683, %v684
      %v686 = vsel %vm678, %v670, 0.0
      %v687 = vadd.f32 %v685, %v686
      %v688 = vsel %vm678, %v675, 0.0
      %v689 = vadd.f32 %v687, %v688
      %v690 = vrot.slane %v689, 4
      %v691 = vadd.f32 %v689, %v690
      %v692 = vrot.slane %v691, 2
      %v693 = vadd.f32 %v691, %v692
      %v694 = vrot.slane %v693, 1
      %v695 = vadd.f32 %v693, %v694
      %vm696 = vcmask 122880
      %697 = vst.msk [vmem:[%s454] sm:$0x1] %vm696, %v695
      %v698 = vmul.f32 %v660, %v660
      %v699 = vmul.f32 %v665, %v665
      %v700 = vmul.f32 %v670, %v670
      %v701 = vmul.f32 %v675, %v675
      %v702 = vsel %vm678, %v698, 0.0
      %v703 = vsel %vm678, %v699, 0.0
      %v704 = vadd.f32 %v702, %v703
      %v705 = vsel %vm678, %v700, 0.0
      %v706 = vadd.f32 %v704, %v705
      %v707 = vsel %vm678, %v701, 0.0
      %v708 = vadd.f32 %v706, %v707
      %v709 = vrot.slane %v708, 4
      %v710 = vadd.f32 %v708, %v709
      %v711 = vrot.slane %v710, 2
      %v712 = vadd.f32 %v710, %v711
      %v713 = vrot.slane %v712, 1
      %v714 = vadd.f32 %v712, %v713
      %715 = vst.msk [vmem:[%s454 + $0x1] sm:$0x1] %vm696, %v714
      %s716 = smul.u32 4, %s25
      %p717 = scmp.lt.s32.totalorder %s24, 1
      %s718 = scalar_select %p717, %s24, 1
      %p719 = scmp.lt.s32.totalorder %s716, 7
      %s720 = scalar_select %p719, %s716, 7
      %s721 = smul.addr %s718, 8
      %s722 = sadd.s32 %s720, %s721
      %s723 = smul.addr %s722, 8
      %s724 = scalar_lea.vmem %s7, %s723
      %p725 = scmp.lt.s32.totalorder %s24, 1
      %s726 = scalar_select %p725, %s24, 1
      %p727 = scmp.lt.s32.totalorder %s25, 1
      %s728 = scalar_select %p727, %s25, 1
      %s729 = smul.addr %s726, 2
      %s730 = sadd.s32 %s728, %s729
      %s731 = smul.addr %s730, 2
      %s732 = scalar_lea.vmem %s8, %s731
      // Predicated region
      $region49: #{costblock_forward.10} parent=47 // pred_check
        %p733 = pneg %p225
      $region50: #{costblock_forward.10} parent=47 // pred_check_branch
        %735 = sbr.rel (%p733) target = $region52
      $region51: #{costblock_forward.10} parent=47 // pred_region
        %s736 = smul.u32 4, %s25
      $region52: #{costblock_forward.10} parent=47 // pred_fallthru
        _
      // Predicated region
      $region53: #{costblock_forward.10} parent=47 // pred_check
        %p737 = pneg %p253
      $region54: #{costblock_forward.10} parent=47 // pred_check_branch
        %739 = sbr.rel (%p737) target = $region56
      $region55: #{costblock_forward.10} parent=47 // pred_region
        _
      $region56: #{costblock_forward.10} parent=47 // pred_fallthru
        _
    $region48: #{costblock_forward.10} parent=5 // pred_fallthru
      _
    %p740 = scmp.le.s32.totalorder 2, %s15
    // Predicated region
    $region57: #{costblock_forward.10} parent=5 // pred_check
      %p741 = pneg %p740
    $region58: #{costblock_forward.10} parent=5 // pred_check_branch
      %743 = sbr.rel (%p741) target = $region60
    $region59: #{costblock_forward.10} parent=5 // pred_region
      %s744 = ssub.s32 %s15, 2
      // Predicated region
      $region61: #{costblock_forward.10} parent=59 // pred_check
        %p745 = pneg %p231
      $region62: #{costblock_forward.10} parent=59 // pred_check_branch
        %747 = sbr.rel (%p745) target = $region64
      $region63: #{costblock_forward.10} parent=59 // pred_region
        %s748 = smul.u32 4, %s27
        %p749 = scmp.lt.s32.totalorder %s26, 1
        %s750 = scalar_select %p749, %s26, 1
        %p751 = scmp.lt.s32.totalorder %s748, 7
        %s752 = scalar_select %p751, %s748, 7
        %s753 = smul.addr %s750, 8
        %s754 = sadd.s32 %s752, %s753
        %s755 = smul.addr %s754, 8
        %s756 = scalar_lea.vmem %s7, %s755
      $region64: #{costblock_forward.10} parent=59 // pred_fallthru
        _
      // Predicated region
      $region65: #{costblock_forward.10} parent=59 // pred_check
        %p757 = pneg %p259
      $region66: #{costblock_forward.10} parent=59 // pred_check_branch
        %759 = sbr.rel (%p757) target = $region68
      $region67: #{costblock_forward.10} parent=59 // pred_region
        %p760 = scmp.lt.s32.totalorder %s26, 1
        %s761 = scalar_select %p760, %s26, 1
        %p762 = scmp.lt.s32.totalorder %s27, 1
        %s763 = scalar_select %p762, %s27, 1
        %s764 = smul.addr %s761, 2
        %s765 = sadd.s32 %s763, %s764
        %s766 = smul.addr %s765, 2
        %s767 = scalar_lea.vmem %s8, %s766
      $region68: #{costblock_forward.10} parent=59 // pred_fallthru
        _
    $region60: #{costblock_forward.10} parent=5 // pred_fallthru
      _
  $region6: #{costblock_forward.10} parent=0 // loop_footer
    %s19 = sadd.s32 1, %s15
  $region7: #{costblock_forward.10} parent=0 // loop_footer_branch
    %14 = sbr.rel target = $region3
  $region8: #{costblock_forward.10} parent=0 // loop_exit
    _

// kernel: costblock_forward.9
$region0: #{costblock_forward.9}
  #allocation0 [shape = 'u32[]', space=smem, size = 0x4, offset = 0x4, fixed_abs, tag = 'smem constant byte address 0x4 - core index']
  #allocation1 [shape = 'u32[144,128]{1,0:T(1,128)}', space=vmem, size = 0x12000, scoped, tag = 'internal scratch']
  #allocation2 [shape = 'f32[6,18,4]{2,1,0:T(8,128)}', space=vmem, size = 0x12000, scoped, tag = 'scratch operand']
  %s0 = inlined_call_operand.vmem [shape: f32[2,4,16,4], index: 0, kind: input, shape index: {}, may-alias: {0,1,2}]
  %s1 = inlined_call_operand.vmem [shape: f32[2,4,16,4], index: 1, kind: input, shape index: {}, may-alias: {0,1,2}]
  %s2 = inlined_call_operand.vmem [shape: f32[2,4,16,4], index: 2, kind: input, shape index: {}, may-alias: {0,1,2}]
  %s3 = inlined_call_operand.vmem [shape: f32[2,4], index: 3, kind: input, shape index: {}]
  %s4 = inlined_call_operand.vmem [shape: f32[36,4], index: 4, kind: input, shape index: {}]
  %s5 = inlined_call_operand.vmem [shape: f32[1,4], index: 5, kind: input, shape index: {}]
  %s6 = inlined_call_operand.vmem [shape: f32[2,64,4], index: 6, kind: output, shape index: {0}]
  %s7 = inlined_call_operand.vmem [shape: f32[2,1,4,4], index: 7, kind: output, shape index: {1}]
  %8 = xla_tuple %s6, %s7
  %s9 = sld [smem:[#allocation0]]
  $region73: #{costblock_forward.9} parent=0
    _
  %s11 = ssub.s32 1, %s9
  %s12 = scalar_select 0, %s11, %s9
  loop: start=0, step=1, limit=4
  $region2: #{costblock_forward.9} parent=0 // loop_pre_header
    _
  $region3: #{costblock_forward.9} parent=0 // loop_header
    %s14 = sphi 0, %s18
    %p15 = scmp.ge.s32.totalorder %s14, 4
    %s21 = sphi 0, %s33
    %s22 = sphi 0, %s29
    %s23 = sphi 0, %s21
    %s24 = sphi 0, %s22
    %s25 = sphi 0, %s23
    %s26 = sphi 0, %s24
    %s46 = sphi 0, %s48
    %s49 = sphi 0, %s46
    %s50 = sphi 0, %s49
    %s66 = sphi 0, %s50
    %s74 = sphi 0, %s76
    %s77 = sphi 0, %s74
    %s78 = sphi 0, %s77
    %s94 = sphi 0, %s78
    %s110 = sphi 0, %s112
    %s113 = sphi 0, %s110
    %s114 = sphi 0, %s113
    %s130 = sphi 0, %s114
    %s134 = sphi 0, %s134
    %s136 = sphi 0, %s134
    %s137 = sphi 0, %s136
    %s151 = sphi 0, %s137
    %s155 = sphi 0, %s155
    %s157 = sphi 0, %s155
    %s158 = sphi 0, %s157
    %s172 = sphi 0, %s158
    %s176 = sphi 0, %s176
    %s178 = sphi 0, %s176
    %s179 = sphi 0, %s178
    %s193 = sphi 0, %s179
    %s201 = sphi 0, %s203
    %s204 = sphi 0, %s201
    %s205 = sphi 0, %s204
    %s221 = sphi 0, %s205
    %s229 = sphi 0, %s231
    %s232 = sphi 0, %s229
    %s233 = sphi 0, %s232
    %s249 = sphi 0, %s233
  $region4: #{costblock_forward.9} parent=0 // loop_header_branch
    %17 = sbr.rel (%p15) target = $region8
  $region5: #{costblock_forward.9} parent=0 // loop_body
    %s19 = ssub.s32 %s14, 1
    %s20 = ssub.s32 %s14, 2
    %s27 = sadd.s32 1, %s22
    %p28 = scmp.ge.s32.totalorder %s27, 1
    %s29 = scalar_select %p28, 0, %s27
    %s30 = sadd.s32 1, %s21
    %s31 = scalar_select %p28, %s30, %s21
    %p32 = scmp.ge.s32.totalorder %s31, 2
    %s33 = scalar_select %p32, 0, %s31
    %s34 = smul.u32 %s22, 4
    %s35 = ssub.s32 %s34, 1
    %p36 = scmp.gt.s32.totalorder %s35, 0
    %s37 = scalar_select %p36, %s35, 0
    %s38 = smul.u32 %s29, 4
    %s39 = ssub.s32 %s38, 1
    %p40 = scmp.gt.s32.totalorder %s39, 0
    %s41 = scalar_select %p40, %s39, 0
    %s42 = ssub.s32 %s21, %s33
    %s43 = ssub.s32 %s37, %s41
    %s44 = sor.u32 %s42, %s43
    %p45 = scmp.eq.s32.totalorder %s44, 0
    %s47 = sadd.s32 %s46, 1
    %s48 = scalar_select %p45, %s46, %s47
    %p51 = pneg %p45
    %p52 = scmp.eq.s32.totalorder %s14, 1
    %p53 = por %p51, %p52
    %p54 = scmp.ne.s32.totalorder %s46, %s49
    %p55 = scmp.eq.s32.totalorder %s14, 0
    %p56 = por %p54, %p55
    %p57 = scmp.ne.s32.totalorder %s46, %s49
    %p58 = scmp.eq.s32.totalorder %s19, 1
    %p59 = por %p57, %p58
    %p60 = scmp.ne.s32.totalorder %s49, %s50
    %p61 = scmp.eq.s32.totalorder %s19, 0
    %p62 = por %p60, %p61
    %p63 = scmp.ne.s32.totalorder %s49, %s50
    %p64 = scmp.eq.s32.totalorder %s20, 1
    %p65 = por %p63, %p64
    %p67 = scmp.ne.s32.totalorder %s50, %s66
    %p68 = scmp.eq.s32.totalorder %s20, 0
    %p69 = por %p67, %p68
    %s70 = ssub.s32 %s21, %s33
    %s71 = ssub.s32 %s22, %s29
    %s72 = sor.u32 %s70, %s71
    %p73 = scmp.eq.s32.totalorder %s72, 0
    %s75 = sadd.s32 %s74, 1
    %s76 = scalar_select %p73, %s74, %s75
    %p79 = pneg %p73
    %p80 = scmp.eq.s32.totalorder %s14, 1
    %p81 = por %p79, %p80
    %p82 = scmp.ne.s32.totalorder %s74, %s77
    %p83 = scmp.eq.s32.totalorder %s14, 0
    %p84 = por %p82, %p83
    %p85 = scmp.ne.s32.totalorder %s74, %s77
    %p86 = scmp.eq.s32.totalorder %s19, 1
    %p87 = por %p85, %p86
    %p88 = scmp.ne.s32.totalorder %s77, %s78
    %p89 = scmp.eq.s32.totalorder %s19, 0
    %p90 = por %p88, %p89
    %p91 = scmp.ne.s32.totalorder %s77, %s78
    %p92 = scmp.eq.s32.totalorder %s20, 1
    %p93 = por %p91, %p92
    %p95 = scmp.ne.s32.totalorder %s78, %s94
    %p96 = scmp.eq.s32.totalorder %s20, 0
    %p97 = por %p95, %p96
    %s98 = smul.u32 %s22, 4
    %s99 = sadd.s32 %s98, 4
    %p100 = scmp.lt.s32.totalorder %s99, 3
    %s101 = scalar_select %p100, %s99, 3
    %s102 = smul.u32 %s29, 4
    %s103 = sadd.s32 %s102, 4
    %p104 = scmp.lt.s32.totalorder %s103, 3
    %s105 = scalar_select %p104, %s103, 3
    %s106 = ssub.s32 %s21, %s33
    %s107 = ssub.s32 %s101, %s105
    %s108 = sor.u32 %s106, %s107
    %p109 = scmp.eq.s32.totalorder %s108, 0
    %s111 = sadd.s32 %s110, 1
    %s112 = scalar_select %p109, %s110, %s111
    %p115 = pneg %p109
    %p116 = scmp.eq.s32.totalorder %s14, 1
    %p117 = por %p115, %p116
    %p118 = scmp.ne.s32.totalorder %s110, %s113
    %p119 = scmp.eq.s32.totalorder %s14, 0
    %p120 = por %p118, %p119
    %p121 = scmp.ne.s32.totalorder %s110, %s113
    %p122 = scmp.eq.s32.totalorder %s19, 1
    %p123 = por %p121, %p122
    %p124 = scmp.ne.s32.totalorder %s113, %s114
    %p125 = scmp.eq.s32.totalorder %s19, 0
    %p126 = por %p124, %p125
    %p127 = scmp.ne.s32.totalorder %s113, %s114
    %p128 = scmp.eq.s32.totalorder %s20, 1
    %p129 = por %p127, %p128
    %p131 = scmp.ne.s32.totalorder %s114, %s130
    %p132 = scmp.eq.s32.totalorder %s20, 0
    %p133 = por %p131, %p132
    %s135 = sadd.s32 %s134, 1
    %p138 = scmp.eq.s32.totalorder %s14, 1
    %p139 = scmp.ne.s32.totalorder %s134, %s136
    %p140 = scmp.eq.s32.totalorder %s14, 0
    %p141 = por %p139, %p140
    %p142 = scmp.ne.s32.totalorder %s134, %s136
    %p143 = scmp.eq.s32.totalorder %s19, 1
    %p144 = por %p142, %p143
    %p145 = scmp.ne.s32.totalorder %s136, %s137
    %p146 = scmp.eq.s32.totalorder %s19, 0
    %p147 = por %p145, %p146
    %p148 = scmp.ne.s32.totalorder %s136, %s137
    %p149 = scmp.eq.s32.totalorder %s20, 1
    %p150 = por %p148, %p149
    %p152 = scmp.ne.s32.totalorder %s137, %s151
    %p153 = scmp.eq.s32.totalorder %s20, 0
    %p154 = por %p152, %p153
    %s156 = sadd.s32 %s155, 1
    %p159 = scmp.eq.s32.totalorder %s14, 1
    %p160 = scmp.ne.s32.totalorder %s155, %s157
    %p161 = scmp.eq.s32.totalorder %s14, 0
    %p162 = por %p160, %p161
    %p163 = scmp.ne.s32.totalorder %s155, %s157
    %p164 = scmp.eq.s32.totalorder %s19, 1
    %p165 = por %p163, %p164
    %p166 = scmp.ne.s32.totalorder %s157, %s158
    %p167 = scmp.eq.s32.totalorder %s19, 0
    %p168 = por %p166, %p167
    %p169 = scmp.ne.s32.totalorder %s157, %s158
    %p170 = scmp.eq.s32.totalorder %s20, 1
    %p171 = por %p169, %p170
    %p173 = scmp.ne.s32.totalorder %s158, %s172
    %p174 = scmp.eq.s32.totalorder %s20, 0
    %p175 = por %p173, %p174
    %s177 = sadd.s32 %s176, 1
    %p180 = scmp.eq.s32.totalorder %s14, 1
    %p181 = scmp.ne.s32.totalorder %s176, %s178
    %p182 = scmp.eq.s32.totalorder %s14, 0
    %p183 = por %p181, %p182
    %p184 = scmp.ne.s32.totalorder %s176, %s178
    %p185 = scmp.eq.s32.totalorder %s19, 1
    %p186 = por %p184, %p185
    %p187 = scmp.ne.s32.totalorder %s178, %s179
    %p188 = scmp.eq.s32.totalorder %s19, 0
    %p189 = por %p187, %p188
    %p190 = scmp.ne.s32.totalorder %s178, %s179
    %p191 = scmp.eq.s32.totalorder %s20, 1
    %p192 = por %p190, %p191
    %p194 = scmp.ne.s32.totalorder %s179, %s193
    %p195 = scmp.eq.s32.totalorder %s20, 0
    %p196 = por %p194, %p195
    %s197 = ssub.s32 %s21, %s33
    %s198 = ssub.s32 %s22, %s29
    %s199 = sor.u32 %s197, %s198
    %p200 = scmp.eq.s32.totalorder %s199, 0
    %s202 = sadd.s32 %s201, 1
    %s203 = scalar_select %p200, %s201, %s202
    %p206 = pneg %p200
    %p207 = scmp.eq.s32.totalorder %s14, 1
    %p208 = por %p206, %p207
    %p209 = scmp.ne.s32.totalorder %s201, %s204
    %p210 = scmp.eq.s32.totalorder %s14, 0
    %p211 = por %p209, %p210
    %p212 = scmp.ne.s32.totalorder %s201, %s204
    %p213 = scmp.eq.s32.totalorder %s19, 1
    %p214 = por %p212, %p213
    %p215 = scmp.ne.s32.totalorder %s204, %s205
    %p216 = scmp.eq.s32.totalorder %s19, 0
    %p217 = por %p215, %p216
    %p218 = scmp.ne.s32.totalorder %s204, %s205
    %p219 = scmp.eq.s32.totalorder %s20, 1
    %p220 = por %p218, %p219
    %p222 = scmp.ne.s32.totalorder %s205, %s221
    %p223 = scmp.eq.s32.totalorder %s20, 0
    %p224 = por %p222, %p223
    %s225 = ssub.s32 %s21, %s33
    %s226 = ssub.s32 %s22, %s29
    %s227 = sor.u32 %s225, %s226
    %p228 = scmp.eq.s32.totalorder %s227, 0
    %s230 = sadd.s32 %s229, 1
    %s231 = scalar_select %p228, %s229, %s230
    %p234 = pneg %p228
    %p235 = scmp.eq.s32.totalorder %s14, 1
    %p236 = por %p234, %p235
    %p237 = scmp.ne.s32.totalorder %s229, %s232
    %p238 = scmp.eq.s32.totalorder %s14, 0
    %p239 = por %p237, %p238
    %p240 = scmp.ne.s32.totalorder %s229, %s232
    %p241 = scmp.eq.s32.totalorder %s19, 1
    %p242 = por %p240, %p241
    %p243 = scmp.ne.s32.totalorder %s232, %s233
    %p244 = scmp.eq.s32.totalorder %s19, 0
    %p245 = por %p243, %p244
    %p246 = scmp.ne.s32.totalorder %s232, %s233
    %p247 = scmp.eq.s32.totalorder %s20, 1
    %p248 = por %p246, %p247
    %p250 = scmp.ne.s32.totalorder %s233, %s249
    %p251 = scmp.eq.s32.totalorder %s20, 0
    %p252 = por %p250, %p251
    %p253 = scmp.le.s32.totalorder 1, %s14
    %p254 = scmp.lt.s32.totalorder %s14, 3
    %p255 = pnand %p253, %p254
    %p256 = pneg %p255
    // Predicated region
    $region9: #{costblock_forward.9} parent=5 // pred_check
      _
    $region10: #{costblock_forward.9} parent=5 // pred_check_branch
      %258 = sbr.rel (%p255) target = $region12
    $region11: #{costblock_forward.9} parent=5 // pred_region
      %s259 = ssub.s32 %s14, 1
      // Predicated region
      $region13: #{costblock_forward.9} parent=11 // pred_check
        %p260 = pneg %p147
      $region14: #{costblock_forward.9} parent=11 // pred_check_branch
        %262 = sbr.rel (%p260) target = $region16
      $region15: #{costblock_forward.9} parent=11 // pred_region
        _
      $region16: #{costblock_forward.9} parent=11 // pred_fallthru
        _
      // Predicated region
      $region17: #{costblock_forward.9} parent=11 // pred_check
        %p263 = pneg %p168
      $region18: #{costblock_forward.9} parent=11 // pred_check_branch
        %265 = sbr.rel (%p263) target = $region20
      $region19: #{costblock_forward.9} parent=11 // pred_region
        _
      $region20: #{costblock_forward.9} parent=11 // pred_fallthru
        _
      // Predicated region
      $region21: #{costblock_forward.9} parent=11 // pred_check
        %p266 = pneg %p189
      $region22: #{costblock_forward.9} parent=11 // pred_check_branch
        %268 = sbr.rel (%p266) target = $region24
      $region23: #{costblock_forward.9} parent=11 // pred_region
        _
      $region24: #{costblock_forward.9} parent=11 // pred_fallthru
        _
    $region12: #{costblock_forward.9} parent=5 // pred_fallthru
      _
    %p269 = scmp.lt.s32.totalorder %s14, 2
    // Predicated region
    $region25: #{costblock_forward.9} parent=5 // pred_check
      %p270 = pneg %p269
    $region26: #{costblock_forward.9} parent=5 // pred_check_branch
      %272 = sbr.rel (%p270) target = $region28
    $region27: #{costblock_forward.9} parent=5 // pred_region
      // Predicated region
      $region29: #{costblock_forward.9} parent=27 // pred_check
        %p273 = pneg %p56
      $region30: #{costblock_forward.9} parent=27 // pred_check_branch
        %275 = sbr.rel (%p273) target = $region32
      $region31: #{costblock_forward.9} parent=27 // pred_region
        %s276 = smul.u32 %s22, 4
        %s277 = ssub.s32 %s276, 1
        %p278 = scmp.gt.s32.totalorder %s277, 0
        %s279 = scalar_select %p278, %s277, 0
        %p280 = scmp.lt.s32.totalorder %s21, 1
        %s281 = scalar_select %p280, %s21, 1
        %p282 = scmp.lt.s32.totalorder %s279, 3
        %s283 = scalar_select %p282, %s279, 3
        %s284 = smul.addr %s283, 2
        %s285 = smul.addr %s281, 8
        %s286 = sadd.s32 %s284, %s285
        %s287 = smul.addr %s286, 8
        %s288 = scalar_lea.vmem %s0, %s287
        %s289 = smul.u32 %s22, 4
        %s290 = ssub.s32 %s289, 1
        %p291 = scmp.gt.s32.totalorder %s290, 0
        %s292 = scalar_select %p291, %s290, 0
      $region32: #{costblock_forward.9} parent=27 // pred_fallthru
        _
      // Predicated region
      $region33: #{costblock_forward.9} parent=27 // pred_check
        %p293 = pneg %p84
      $region34: #{costblock_forward.9} parent=27 // pred_check_branch
        %295 = sbr.rel (%p293) target = $region36
      $region35: #{costblock_forward.9} parent=27 // pred_region
        %s296 = smul.u32 4, %s22
        %p297 = scmp.lt.s32.totalorder %s21, 1
        %s298 = scalar_select %p297, %s21, 1
        %p299 = scmp.lt.s32.totalorder %s296, 3
        %s300 = scalar_select %p299, %s296, 3
        %s301 = smul.addr %s300, 2
        %s302 = smul.addr %s298, 8
        %s303 = sadd.s32 %s301, %s302
        %s304 = smul.addr %s303, 8
        %s305 = scalar_lea.vmem %s1, %s304
        %s306 = smul.u32 4, %s22
      $region36: #{costblock_forward.9} parent=27 // pred_fallthru
        _
      // Predicated region
      $region37: #{costblock_forward.9} parent=27 // pred_check
        %p307 = pneg %p120
      $region38: #{costblock_forward.9} parent=27 // pred_check_branch
        %309 = sbr.rel (%p307) target = $region40
      $region39: #{costblock_forward.9} parent=27 // pred_region
        %s310 = smul.u32 %s22, 4
        %s311 = sadd.s32 %s310, 4
        %p312 = scmp.lt.s32.totalorder %s311, 3
        %s313 = scalar_select %p312, %s311, 3
        %p314 = scmp.lt.s32.totalorder %s21, 1
        %s315 = scalar_select %p314, %s21, 1
        %p316 = scmp.lt.s32.totalorder %s313, 3
        %s317 = scalar_select %p316, %s313, 3
        %s318 = smul.addr %s317, 2
        %s319 = smul.addr %s315, 8
        %s320 = sadd.s32 %s318, %s319
        %s321 = smul.addr %s320, 8
        %s322 = scalar_lea.vmem %s2, %s321
        %s323 = smul.u32 %s22, 4
        %s324 = sadd.s32 %s323, 4
        %p325 = scmp.lt.s32.totalorder %s324, 3
        %s326 = scalar_select %p325, %s324, 3
      $region40: #{costblock_forward.9} parent=27 // pred_fallthru
        _
    $region28: #{costblock_forward.9} parent=5 // pred_fallthru
      _
    %p327 = scmp.le.s32.totalorder 1, %s14
    %p328 = scmp.lt.s32.totalorder %s14, 3
    %p329 = pnand %p327, %p328
    %p330 = pneg %p329
    // Predicated region
    $region41: #{costblock_forward.9} parent=5 // pred_check
      _
    $region42: #{costblock_forward.9} parent=5 // pred_check_branch
      %332 = sbr.rel (%p329) target = $region44
    $region43: #{costblock_forward.9} parent=5 // pred_region
      %s333 = ssub.s32 %s14, 1
      %s334 = smul.u32 %s24, 4
      %s335 = ssub.s32 %s334, 1
      %p336 = scmp.gt.s32.totalorder %s335, 0
      %s337 = scalar_select %p336, %s335, 0
      %p338 = scmp.lt.s32.totalorder %s23, 1
      %s339 = scalar_select %p338, %s23, 1
      %p340 = scmp.lt.s32.totalorder %s337, 3
      %s341 = scalar_select %p340, %s337, 3
      %s342 = smul.addr %s341, 2
      %s343 = smul.addr %s339, 8
      %s344 = sadd.s32 %s342, %s343
      %s345 = smul.addr %s344, 8
      %s346 = scalar_lea.vmem %s0, %s345
      %p347 = pneg %p62
      %p348 = pneg %p59
      %s349 = smul.u32 4, %s24
      %p350 = scmp.lt.s32.totalorder %s23, 1
      %s351 = scalar_select %p350, %s23, 1
      %p352 = scmp.lt.s32.totalorder %s349, 3
      %s353 = scalar_select %p352, %s349, 3
      %s354 = smul.addr %s353, 2
      %s355 = smul.addr %s351, 8
      %s356 = sadd.s32 %s354, %s355
      %s357 = smul.addr %s356, 8
      %s358 = scalar_lea.vmem %s1, %s357
      %p359 = pneg %p90
      %p360 = pneg %p87
      %s361 = smul.u32 %s24, 4
      %s362 = sadd.s32 %s361, 4
      %p363 = scmp.lt.s32.totalorder %s362, 3
      %s364 = scalar_select %p363, %s362, 3
      %p365 = scmp.lt.s32.totalorder %s23, 1
      %s366 = scalar_select %p365, %s23, 1
      %p367 = scmp.lt.s32.totalorder %s364, 3
      %s368 = scalar_select %p367, %s364, 3
      %s369 = smul.addr %s368, 2
      %s370 = smul.addr %s366, 8
      %s371 = sadd.s32 %s369, %s370
      %s372 = smul.addr %s371, 8
      %s373 = scalar_lea.vmem %s2, %s372
      %p374 = pneg %p126
      %p375 = pneg %p123
      %p376 = pneg %p147
      %p377 = pneg %p144
      %p378 = pneg %p168
      %p379 = pneg %p165
      %p380 = pneg %p189
      %p381 = pneg %p186
      %p382 = pneg %p217
      %p383 = pneg %p214
      %s384 = smul.u32 8, %s24
      %p385 = scmp.lt.s32.totalorder %s23, 1
      %s386 = scalar_select %p385, %s23, 1
      %p387 = scmp.lt.s32.totalorder %s384, 7
      %s388 = scalar_select %p387, %s384, 7
      %s389 = smul.addr %s386, 8
      %s390 = sadd.s32 %s388, %s389
      %s391 = smul.addr %s390, 8
      %s392 = scalar_lea.vmem %s6, %s391
      %p393 = pneg %p245
      %p394 = pneg %p242
      %p395 = scmp.lt.s32.totalorder %s23, 1
      %s396 = scalar_select %p395, %s23, 1
      %p397 = scmp.lt.s32.totalorder %s24, 0
      %s398 = scalar_select %p397, %s24, 0
      %s399 = sadd.s32 %s398, %s396
      %s400 = smul.addr %s399, 4
      %s401 = scalar_lea.vmem %s7, %s400
      %s402 = smul.u32 %s24, 4
      %s403 = ssub.s32 %s402, 1
      %p404 = scmp.gt.s32.totalorder %s403, 0
      %s405 = scalar_select %p404, %s403, 0
      %p406 = scmp.lt.s32.totalorder %s23, 1
      %s407 = scalar_select %p406, %s23, 1
      %p408 = scmp.lt.s32.totalorder %s405, 3
      %s409 = scalar_select %p408, %s405, 3
      %s410 = smul.addr %s409, 2
      %s411 = smul.addr %s407, 8
      %s412 = sadd.s32 %s410, %s411
      %s413 = smul.addr %s412, 8
      %s414 = scalar_lea.vmem %s0, %s413
      %s415 = smul.u32 %s24, 4
      %s416 = ssub.s32 %s415, 1
      %p417 = scmp.gt.s32.totalorder %s416, 0
      %s418 = scalar_select %p417, %s416, 0
      %s419 = smul.u32 4, %s24
      %p420 = scmp.lt.s32.totalorder %s23, 1
      %s421 = scalar_select %p420, %s23, 1
      %p422 = scmp.lt.s32.totalorder %s419, 3
      %s423 = scalar_select %p422, %s419, 3
      %s424 = smul.addr %s423, 2
      %s425 = smul.addr %s421, 8
      %s426 = sadd.s32 %s424, %s425
      %s427 = smul.addr %s426, 8
      %s428 = scalar_lea.vmem %s1, %s427
      %s429 = smul.u32 4, %s24
      %s430 = smul.u32 %s24, 4
      %s431 = sadd.s32 %s430, 4
      %p432 = scmp.lt.s32.totalorder %s431, 3
      %s433 = scalar_select %p432, %s431, 3
      %p434 = scmp.lt.s32.totalorder %s23, 1
      %s435 = scalar_select %p434, %s23, 1
      %p436 = scmp.lt.s32.totalorder %s433, 3
      %s437 = scalar_select %p436, %s433, 3
      %s438 = smul.addr %s437, 2
      %s439 = smul.addr %s435, 8
      %s440 = sadd.s32 %s438, %s439
      %s441 = smul.addr %s440, 8
      %s442 = scalar_lea.vmem %s2, %s441
      %s443 = smul.u32 %s24, 4
      %s444 = sadd.s32 %s443, 4
      %p445 = scmp.lt.s32.totalorder %s444, 3
      %s446 = scalar_select %p445, %s444, 3
      %s447 = smul.u32 8, %s24
      %p448 = scmp.lt.s32.totalorder %s23, 1
      %s449 = scalar_select %p448, %s23, 1
      %p450 = scmp.lt.s32.totalorder %s447, 7
      %s451 = scalar_select %p450, %s447, 7
      %s452 = smul.addr %s449, 8
      %s453 = sadd.s32 %s451, %s452
      %s454 = smul.addr %s453, 8
      %s455 = scalar_lea.vmem %s6, %s454
      %s456 = smul.u32 8, %s24
      %p457 = scmp.lt.s32.totalorder %s23, 1
      %s458 = scalar_select %p457, %s23, 1
      %p459 = scmp.lt.s32.totalorder %s24, 0
      %s460 = scalar_select %p459, %s24, 0
      %s461 = sadd.s32 %s460, %s458
      %s462 = smul.addr %s461, 4
      %s463 = scalar_lea.vmem %s7, %s462
      %v464 = vld [vmem:[%s3] sm:$0x1]
      %v465 = vld [vmem:[%s3 + $0x1] sm:$0x1]
      %vm466 = vcmask 31744
      %467 = vst.msk [vmem:[#allocation2] sm:$0xff] %vm466, 0.0
      %468 = vst.msk [vmem:[#allocation2 + $0x8] sm:$0xff] %vm466, 0.0
      %vm469 = vcmask 25600
      %470 = vst.msk [vmem:[#allocation2 + $0x10] sm:$0x3] %vm469, 0.0
      %471 = vst.msk [vmem:[#allocation2 + $0x18] sm:$0xff] %vm466, 0.0
      %472 = vst.msk [vmem:[#allocation2 + $0x20] sm:$0xff] %vm466, 0.0
      %473 = vst.msk [vmem:[#allocation2 + $0x28] sm:$0x3] %vm469, 0.0
      %474 = vst.msk [vmem:[#allocation2 + $0x30] sm:$0xff] %vm466, 0.0
      %475 = vst.msk [vmem:[#allocation2 + $0x38] sm:$0xff] %vm466, 0.0
      %476 = vst.msk [vmem:[#allocation2 + $0x40] sm:$0x3] %vm469, 0.0
      %477 = vst.msk [vmem:[#allocation2 + $0x48] sm:$0xff] %vm466, 0.0
      %478 = vst.msk [vmem:[#allocation2 + $0x50] sm:$0xff] %vm466, 0.0
      %479 = vst.msk [vmem:[#allocation2 + $0x58] sm:$0x3] %vm469, 0.0
      %480 = vst.msk [vmem:[#allocation2 + $0x60] sm:$0xff] %vm466, 0.0
      %481 = vst.msk [vmem:[#allocation2 + $0x68] sm:$0xff] %vm466, 0.0
      %482 = vst.msk [vmem:[#allocation2 + $0x70] sm:$0x3] %vm469, 0.0
      %483 = vst.msk [vmem:[#allocation2 + $0x78] sm:$0xff] %vm466, 0.0
      %484 = vst.msk [vmem:[#allocation2 + $0x80] sm:$0xff] %vm466, 0.0
      %485 = vst.msk [vmem:[#allocation2 + $0x88] sm:$0x3] %vm469, 0.0
      %v486 = vld [vmem:[%s428] sm:$0xff]
      %v487 = vld [vmem:[%s428 + $0x8] sm:$0xff]
      %v488 = vld [vmem:[%s428 + $0x10] sm:$0xff]
      %v489 = vld [vmem:[%s428 + $0x18] sm:$0xff]
      %v490 = vld [vmem:[%s428 + $0x20] sm:$0xff]
      %v491 = vld [vmem:[%s428 + $0x28] sm:$0xff]
      %v492 = vld [vmem:[%s428 + $0x30] sm:$0xff]
      %v493 = vld [vmem:[%s428 + $0x38] sm:$0xff]
      %v494 = vlaneseq
      %v495 = vshrl.u32 %v494, 7
      %v496 = vsub.s32 0, %v495
      %v497 = vrot.slane %v464, %v496
      %v498 = vmul.f32 %v486, %v497
      %v499 = vmul.f32 %v487, %v497
      %v500 = vmul.f32 %v488, %v497
      %v501 = vmul.f32 %v489, %v497
      %v502 = vmul.f32 %v490, %v497
      %v503 = vmul.f32 %v491, %v497
      %v504 = vmul.f32 %v492, %v497
      %v505 = vmul.f32 %v493, %v497
      %v506 = vlaneseq
      %v507 = vshrl.u32 %v506, 7
      %v508 = vsub.s32 0, %v507
      %v509 = vrot.slane %v465, %v508
      %v510 = vadd.f32 %v498, %v509
      %v511 = vadd.f32 %v499, %v509
      %v512 = vadd.f32 %v500, %v509
      %v513 = vadd.f32 %v501, %v509
      %v514 = vadd.f32 %v502, %v509
      %v515 = vadd.f32 %v503, %v509
      %v516 = vadd.f32 %v504, %v509
      %v517 = vadd.f32 %v505, %v509
      %v518 = vmax.f32 %v510, 0.0
      %v519 = vmax.f32 %v511, 0.0
      %v520 = vmax.f32 %v512, 0.0
      %v521 = vmax.f32 %v513, 0.0
      %v522 = vmax.f32 %v514, 0.0
      %v523 = vmax.f32 %v515, 0.0
      %v524 = vmax.f32 %v516, 0.0
      %v525 = vmax.f32 %v517, 0.0
      %s526 = scalar_lea.vmem [#allocation2], 24
      %527 = vst.msk [vmem:[%s526 + $0x1] sm:$0xff] %vm466, %v518
      %528 = vst.msk [vmem:[%s526 + $0x9] sm:$0xff] %vm466, %v519
      %529 = vst.msk [vmem:[%s526 + $0x19] sm:$0xff] %vm466, %v520
      %530 = vst.msk [vmem:[%s526 + $0x21] sm:$0xff] %vm466, %v521
      %531 = vst.msk [vmem:[%s526 + $0x31] sm:$0xff] %vm466, %v522
      %532 = vst.msk [vmem:[%s526 + $0x39] sm:$0xff] %vm466, %v523
      %533 = vst.msk [vmem:[%s526 + $0x49] sm:$0xff] %vm466, %v524
      %534 = vst.msk [vmem:[%s526 + $0x51] sm:$0xff] %vm466, %v525
      %p535 = scmp.gt.s32.totalorder %s24, 0
      // Predicated region
      $region45: #{costblock_forward.9} parent=43 // pred_check
        %p536 = pneg %p535
      $region46: #{costblock_forward.9} parent=43 // pred_check_branch
        %538 = sbr.rel (%p536) target = $region48
      $region47: #{costblock_forward.9} parent=43 // pred_region
        %v539 = vld [vmem:[%s414] sm:$0xff]
        %v540 = vld [vmem:[%s414 + $0x8] sm:$0xff]
        %v541 = vmul.f32 %v539, %v497
        %v542 = vmul.f32 %v540, %v497
        %v543 = vadd.f32 %v541, %v509
        %v544 = vadd.f32 %v542, %v509
        %v545 = vmax.f32 %v543, 0.0
        %v546 = vmax.f32 %v544, 0.0
        %547 = vst.msk [vmem:[#allocation2 + $0x1] sm:$0xff] %vm466, %v545
        %548 = vst.msk [vmem:[#allocation2 + $0x9] sm:$0xff] %vm466, %v546
      $region48: #{costblock_forward.9} parent=43 // pred_fallthru
        _
      %p549 = scmp.lt.s32.totalorder %s24, 0
      // Predicated region
      $region49: #{costblock_forward.9} parent=43 // pred_check
        %p550 = pneg %p549
      $region50: #{costblock_forward.9} parent=43 // pred_check_branch
        %552 = sbr.rel (%p550) target = $region52
      $region51: #{costblock_forward.9} parent=43 // pred_region
        %v553 = vld [vmem:[%s442] sm:$0xff]
        %v554 = vld [vmem:[%s442 + $0x8] sm:$0xff]
        %v555 = vmul.f32 %v553, %v497
        %v556 = vmul.f32 %v554, %v497
        %v557 = vadd.f32 %v555, %v509
        %v558 = vadd.f32 %v556, %v509
        %v559 = vmax.f32 %v557, 0.0
        %v560 = vmax.f32 %v558, 0.0
        %s561 = scalar_lea.vmem [#allocation2], 120
        %562 = vst.msk [vmem:[%s561 + $0x1] sm:$0xff] %vm466, %v559
        %563 = vst.msk [vmem:[%s561 + $0x9] sm:$0xff] %vm466, %v560
      $region52: #{costblock_forward.9} parent=43 // pred_fallthru
        _
      %v564 = vld [vmem:[#allocation2] sm:$0xff]
      %v565 = vld [vmem:[#allocation2 + $0x8] sm:$0xff]
      %v566 = vld [vmem:[#allocation2 + $0x10] sm:$0x3]
      %v567 = vld [vmem:[#allocation2 + $0x18] sm:$0xff]
      %v568 = vld [vmem:[#allocation2 + $0x20] sm:$0xff]
      %v569 = vld [vmem:[#allocation2 + $0x28] sm:$0x3]
      %v570 = vld [vmem:[#allocation2 + $0x30] sm:$0xff]
      %v571 = vld [vmem:[#allocation2 + $0x38] sm:$0xff]
      %v572 = vld [vmem:[#allocation2 + $0x40] sm:$0x3]
      %v573 = vld [vmem:[#allocation2 + $0x48] sm:$0xff]
      %v574 = vld [vmem:[#allocation2 + $0x50] sm:$0xff]
      %v575 = vld [vmem:[#allocation2 + $0x58] sm:$0x3]
      %v576 = vld [vmem:[#allocation2 + $0x60] sm:$0xff]
      %v577 = vld [vmem:[#allocation2 + $0x68] sm:$0xff]
      %v578 = vld [vmem:[#allocation2 + $0x70] sm:$0x3]
      %v579 = vld [vmem:[#allocation2 + $0x78] sm:$0xff]
      %v580 = vld [vmem:[#allocation2 + $0x80] sm:$0xff]
      %v581 = vld [vmem:[#allocation2 + $0x88] sm:$0x3]
      %v582 = vld [vmem:[%s4] sm:$0xf]
      %vm595 = vcmask 1046528
      %v596 = vrot.slane %v564, 1
      %v597 = vrot.slane %v565, 1
      %v598 = vsel %vm595, %v596, %v597
      %v599 = vrot.slane %v566, 1
      %v600 = vsel %vm595, %v597, %v599
      %v601 = vrot.slane %v567, 1
      %v602 = vrot.slane %v568, 1
      %v603 = vsel %vm595, %v601, %v602
      %v604 = vrot.slane %v569, 1
      %v605 = vsel %vm595, %v602, %v604
      %v606 = vrot.slane %v570, 1
      %v607 = vrot.slane %v571, 1
      %v608 = vsel %vm595, %v606, %v607
      %v609 = vrot.slane %v572, 1
      %v610 = vsel %vm595, %v607, %v609
      %v611 = vrot.slane %v573, 1
      %v612 = vrot.slane %v574, 1
      %v613 = vsel %vm595, %v611, %v612
      %v614 = vrot.slane %v575, 1
      %v615 = vsel %vm595, %v612, %v614
      %v616 = vld [vmem:[%s4 + $0x4] sm:$0xf]
      %v617 = vsel %vm466, %v598, 0
      %v619 = vsel %vm466, %v600, 0
      %v621 = vsel %vm466, %v603, 0
      %v623 = vsel %vm466, %v605, 0
      %v625 = vsel %vm466, %v608, 0
      %v627 = vsel %vm466, %v610, 0
      %v629 = vsel %vm466, %v613, 0
      %v631 = vsel %vm466, %v615, 0
      %vm633 = vcmask 1043456
      %v635 = vsel %vm633, %v616, 0
      %637 = vmatprep.subr.mxu0 0.0
      %638 = vmatpush1.msra.mxu0 %v635
      %639 = vmatprep.subr.mxu0 0.0
      %640 = vmatpush1.msra.mxu0 0.0
      %641 = vmatprep.subr.mxu0 0.0
      %642 = vmatpush1.msra.mxu0 0.0
      %643 = vmatprep.subr.mxu0 0.0
      %644 = vmatpush1.msra.mxu0 0.0
      %645 = vmatprep.subr.mxu0 0.0
      %646 = vmatpush1.msra.mxu0 0.0
      %647 = vmatprep.subr.mxu0 0.0
      %648 = vmatpush1.msra.mxu0 0.0
      %649 = vmatprep.subr.mxu0 0.0
      %650 = vmatpush1.msra.mxu0 0.0
      %651 = vmatprep.subr.mxu0 0.0
      %652 = vmatpush1.msra.mxu0 0.0
      %653 = vmatprep.subr.mxu0 0.0
      %654 = vmatpush1.msra.mxu0 0.0
      %655 = vmatprep.subr.mxu0 0.0
      %656 = vmatpush1.msra.mxu0 0.0
      %657 = vmatprep.subr.mxu0 0.0
      %658 = vmatpush1.msra.mxu0 0.0
      %659 = vmatprep.subr.mxu0 0.0
      %660 = vmatpush1.msra.mxu0 0.0
      %661 = vmatprep.subr.mxu0 0.0
      %662 = vmatpush1.msra.mxu0 0.0
      %663 = vmatprep.subr.mxu0 0.0
      %664 = vmatpush1.msra.mxu0 0.0
      %665 = vmatprep.subr.mxu0 0.0
      %666 = vmatpush1.msra.mxu0 0.0
      %667 = vmatprep.subr.mxu0 0.0
      %668 = vmatpush1.msra.mxu0 0.0
      %669 = vmatprep.subr.mxu0 0.0
      %670 = vmatpush1.msra.mxu0 0.0
      %671 = vmatprep.subr.mxu0 0.0
      %672 = vmatpush1.msra.mxu0 0.0
      %673 = vmatprep.subr.mxu0 0.0
      %674 = vmatpush1.msra.mxu0 0.0
      %675 = vmatprep.subr.mxu0 0.0
      %676 = vmatpush1.msra.mxu0 0.0
      %677 = vmatprep.subr.mxu0 0.0
      %678 = vmatpush1.msra.mxu0 0.0
      %679 = vmatprep.subr.mxu0 0.0
      %680 = vmatpush1.msra.mxu0 0.0
      %681 = vmatprep.subr.mxu0 0.0
      %682 = vmatpush1.msra.mxu0 0.0
      %683 = vmatprep.subr.mxu0 0.0
      %684 = vmatpush1.msra.mxu0 0.0
      %685 = vmatprep.subr.mxu0 0.0
      %686 = vmatpush1.msra.mxu0 0.0
      %687 = vmatprep.subr.mxu0 0.0
      %688 = vmatpush1.msra.mxu0 0.0
      %689 = vmatprep.subr.mxu0 0.0
      %690 = vmatpush1.msra.mxu0 0.0
      %691 = vmatprep.subr.mxu0 0.0
      %692 = vmatpush1.msra.mxu0 0.0
      %693 = vmatprep.subr.mxu0 0.0
      %694 = vmatpush1.msra.mxu0 0.0
      %695 = vmatprep.subr.mxu0 0.0
      %696 = vmatpush1.msra.mxu0 0.0
      %697 = vmatprep.subr.mxu0 0.0
      %698 = vmatpush1.msra.mxu0 0.0
      %699 = vmatprep.subr.mxu0 0.0
      %700 = vmatpush1.msra.mxu0 0.0
      %701 = vmatprep.mubr.f32.mxu0 0.0
      %702 = vmatmul.mubr.f32.gmra.mrb[0].mxu0 %v617
      %v703 = vpop.f32.mrb[0].mxu0
      %v704 = vadd.f32 0.0, %v703
      %v705 = vpop.f32.mrb[0].mxu0
      %706 = vmatprep.mubr.f32.mxu0 0.0
      %707 = vmatmul.mubr.f32.gmra.mrb[0].mxu0 %v619
      %v708 = vpop.f32.mrb[0].mxu0
      %v709 = vadd.f32 0.0, %v708
      %v710 = vpop.f32.mrb[0].mxu0
      %711 = vmatprep.mubr.f32.mxu0 0.0
      %712 = vmatmul.mubr.f32.gmra.mrb[0].mxu0 %v621
      %v713 = vpop.f32.mrb[0].mxu0
      %v714 = vadd.f32 0.0, %v713
      %v715 = vpop.f32.mrb[0].mxu0
      %716 = vmatprep.mubr.f32.mxu0 0.0
      %717 = vmatmul.mubr.f32.gmra.mrb[0].mxu0 %v623
      %v718 = vpop.f32.mrb[0].mxu0
      %v719 = vadd.f32 0.0, %v718
      %v720 = vpop.f32.mrb[0].mxu0
      %721 = vmatprep.mubr.f32.mxu0 0.0
      %722 = vmatmul.mubr.f32.gmra.mrb[0].mxu0 %v625
      %v723 = vpop.f32.mrb[0].mxu0
      %v724 = vadd.f32 0.0, %v723
      %v725 = vpop.f32.mrb[0].mxu0
      %726 = vmatprep.mubr.f32.mxu0 0.0
      %727 = vmatmul.mubr.f32.gmra.mrb[0].mxu0 %v627
      %v728 = vpop.f32.mrb[0].mxu0
      %v729 = vadd.f32 0.0, %v728
      %v730 = vpop.f32.mrb[0].mxu0
      %731 = vmatprep.mubr.f32.mxu0 0.0
      %732 = vmatmul.mubr.f32.gmra.mrb[0].mxu0 %v629
      %v733 = vpop.f32.mrb[0].mxu0
      %v734 = vadd.f32 0.0, %v733
      %v735 = vpop.f32.mrb[0].mxu0
      %736 = vmatprep.mubr.f32.mxu0 0.0
      %737 = vmatmul.mubr.f32.gmra.mrb[0].mxu0 %v631
      %v738 = vpop.f32.mrb[0].mxu0
      %v739 = vadd.f32 0.0, %v738
      %v740 = vpop.f32.mrb[0].mxu0
      %741 = vdwg.mxu0
      %v742 = vsel %vm466, %v564, 0
      %v744 = vsel %vm466, %v565, 0
      %v746 = vsel %vm466, %v567, 0
      %v748 = vsel %vm466, %v568, 0
      %v750 = vsel %vm466, %v570, 0
      %v752 = vsel %vm466, %v571, 0
      %v754 = vsel %vm466, %v573, 0
      %v756 = vsel %vm466, %v574, 0
      %v759 = vsel %vm633, %v582, 0
      %761 = vmatprep.subr.mxu0 0.0
      %762 = vmatpush1.msra.mxu0 %v759
      %763 = vmatprep.subr.mxu0 0.0
      %764 = vmatpush1.msra.mxu0 0.0
      %765 = vmatprep.subr.mxu0 0.0
      %766 = vmatpush1.msra.mxu0 0.0
      %767 = vmatprep.subr.mxu0 0.0
      %768 = vmatpush1.msra.mxu0 0.0
      %769 = vmatprep.subr.mxu0 0.0
      %770 = vmatpush1.msra.mxu0 0.0
      %771 = vmatprep.subr.mxu0 0.0
      %772 = vmatpush1.msra.mxu0 0.0
      %773 = vmatprep.subr.mxu0 0.0
      %774 = vmatpush1.msra.mxu0 0.0
      %775 = vmatprep.subr.mxu0 0.0
      %776 = vmatpush1.msra.mxu0 0.0
      %777 = vmatprep.subr.mxu0 0.0
      %778 = vmatpush1.msra.mxu0 0.0
      %779 = vmatprep.subr.mxu0 0.0
      %780 = vmatpush1.msra.mxu0 0.0
      %781 = vmatprep.subr.mxu0 0.0
      %782 = vmatpush1.msra.mxu0 0.0
      %783 = vmatprep.subr.mxu0 0.0
      %784 = vmatpush1.msra.mxu0 0.0
      %785 = vmatprep.subr.mxu0 0.0
      %786 = vmatpush1.msra.mxu0 0.0
      %787 = vmatprep.subr.mxu0 0.0
      %788 = vmatpush1.msra.mxu0 0.0
      %789 = vmatprep.subr.mxu0 0.0
      %790 = vmatpush1.msra.mxu0 0.0
      %791 = vmatprep.subr.mxu0 0.0
      %792 = vmatpush1.msra.mxu0 0.0
      %793 = vmatprep.subr.mxu0 0.0
      %794 = vmatpush1.msra.mxu0 0.0
      %795 = vmatprep.subr.mxu0 0.0
      %796 = vmatpush1.msra.mxu0 0.0
      %797 = vmatprep.subr.mxu0 0.0
      %798 = vmatpush1.msra.mxu0 0.0
      %799 = vmatprep.subr.mxu0 0.0
      %800 = vmatpush1.msra.mxu0 0.0
      %801 = vmatprep.subr.mxu0 0.0
      %802 = vmatpush1.msra.mxu0 0.0
      %803 = vmatprep.subr.mxu0 0.0
      %804 = vmatpush1.msra.mxu0 0.0
      %805 = vmatprep.subr.mxu0 0.0
      %806 = vmatpush1.msra.mxu0 0.0
      %807 = vmatprep.subr.mxu0 0.0
      %808 = vmatpush1.msra.mxu0 0.0
      %809 = vmatprep.subr.mxu0 0.0
      %810 = vmatpush1.msra.mxu0 0.0
      %811 = vmatprep.subr.mxu0 0.0
      %812 = vmatpush1.msra.mxu0 0.0
      %813 = vmatprep.subr.mxu0 0.0
      %814 = vmatpush1.msra.mxu0 0.0
      %815 = vmatprep.subr.mxu0 0.0
      %816 = vmatpush1.msra.mxu0 0.0
      %817 = vmatprep.subr.mxu0 0.0
      %818 = vmatpush1.msra.mxu0 0.0
      %819 = vmatprep.subr.mxu0 0.0
      %820 = vmatpush1.msra.mxu0 0.0
      %821 = vmatprep.subr.mxu0 0.0
      %822 = vmatpush1.msra.mxu0 0.0
      %823 = vmatprep.subr.mxu0 0.0
      %824 = vmatpush1.msra.mxu0 0.0
      %825 = vmatprep.mubr.f32.mxu0 0.0
      %826 = vmatmul.mubr.f32.gmra.mrb[0].mxu0 %v742
      %v827 = vpop.f32.mrb[0].mxu0
      %v828 = vadd.f32 %v704, %v827
      %v829 = vpop.f32.mrb[0].mxu0
      %830 = vmatprep.mubr.f32.mxu0 0.0
      %831 = vmatmul.mubr.f32.gmra.mrb[0].mxu0 %v744
      %v832 = vpop.f32.mrb[0].mxu0
      %v833 = vadd.f32 %v709, %v832
      %v834 = vpop.f32.mrb[0].mxu0
      %835 = vmatprep.mubr.f32.mxu0 0.0
      %836 = vmatmul.mubr.f32.gmra.mrb[0].mxu0 %v746
      %v837 = vpop.f32.mrb[0].mxu0
      %v838 = vadd.f32 %v714, %v837
      %v839 = vpop.f32.mrb[0].mxu0
      %840 = vmatprep.mubr.f32.mxu0 0.0
      %841 = vmatmul.mubr.f32.gmra.mrb[0].mxu0 %v748
      %v842 = vpop.f32.mrb[0].mxu0
      %v843 = vadd.f32 %v719, %v842
      %v844 = vpop.f32.mrb[0].mxu0
      %845 = vmatprep.mubr.f32.mxu0 0.0
      %846 = vmatmul.mubr.f32.gmra.mrb[0].mxu0 %v750
      %v847 = vpop.f32.mrb[0].mxu0
      %v848 = vadd.f32 %v724, %v847
      %v849 = vpop.f32.mrb[0].mxu0
      %850 = vmatprep.mubr.f32.mxu0 0.0
      %851 = vmatmul.mubr.f32.gmra.mrb[0].mxu0 %v752
      %v852 = vpop.f32.mrb[0].mxu0
      %v853 = vadd.f32 %v729, %v852
      %v854 = vpop.f32.mrb[0].mxu0
      %855 = vmatprep.mubr.f32.mxu0 0.0
      %856 = vmatmul.mubr.f32.gmra.mrb[0].mxu0 %v754
      %v857 = vpop.f32.mrb[0].mxu0
      %v858 = vadd.f32 %v734, %v857
      %v859 = vpop.f32.mrb[0].mxu0
      %860 = vmatprep.mubr.f32.mxu0 0.0
      %861 = vmatmul.mubr.f32.gmra.mrb[0].mxu0 %v756
      %v862 = vpop.f32.mrb[0].mxu0
      %v863 = vadd.f32 %v739, %v862
      %v864 = vpop.f32.mrb[0].mxu0
      %865 = vdwg.mxu0
      %vm866 = vcmask 1045504
      %v867 = vrot.slane %v564, 2
      %v868 = vrot.slane %v565, 2
      %v869 = vsel %vm866, %v867, %v868
      %v870 = vrot.slane %v566, 2
      %v871 = vsel %vm866, %v868, %v870
      %v872 = vrot.slane %v567, 2
      %v873 = vrot.slane %v568, 2
      %v874 = vsel %vm866, %v872, %v873
      %v875 = vrot.slane %v569, 2
      %v876 = vsel %vm866, %v873, %v875
      %v877 = vrot.slane %v570, 2
      %v878 = vrot.slane %v571, 2
      %v879 = vsel %vm866, %v877, %v878
      %v880 = vrot.slane %v572, 2
      %v881 = vsel %vm866, %v878, %v880
      %v882 = vrot.slane %v573, 2
      %v883 = vrot.slane %v574, 2
      %v884 = vsel %vm866, %v882, %v883
      %v885 = vrot.slane %v575, 2
      %v886 = vsel %vm866, %v883, %v885
      %v887 = vld [vmem:[%s4 + $0x8] sm:$0xf]
      %v888 = vsel %vm466, %v869, 0
      %v890 = vsel %vm466, %v871, 0
      %v892 = vsel %vm466, %v874, 0
      %v894 = vsel %vm466, %v876, 0
      %v896 = vsel %vm466, %v879, 0
      %v898 = vsel %vm466, %v881, 0
      %v900 = vsel %vm466, %v884, 0
      %v902 = vsel %vm466, %v886, 0
      %v905 = vsel %vm633, %v887, 0
      %907 = vmatprep.subr.mxu0 0.0
      %908 = vmatpush1.msra.mxu0 %v905
      %909 = vmatprep.subr.mxu0 0.0
      %910 = vmatpush1.msra.mxu0 0.0
      %911 = vmatprep.subr.mxu0 0.0
      %912 = vmatpush1.msra.mxu0 0.0
      %913 = vmatprep.subr.mxu0 0.0
      %914 = vmatpush1.msra.mxu0 0.0
      %915 = vmatprep.subr.mxu0 0.0
      %916 = vmatpush1.msra.mxu0 0.0
      %917 = vmatprep.subr.mxu0 0.0
      %918 = vmatpush1.msra.mxu0 0.0
      %919 = vmatprep.subr.mxu0 0.0
      %920 = vmatpush1.msra.mxu0 0.0
      %921 = vmatprep.subr.mxu0 0.0
      %922 = vmatpush1.msra.mxu0 0.0
      %923 = vmatprep.subr.mxu0 0.0
      %924 = vmatpush1.msra.mxu0 0.0
      %925 = vmatprep.subr.mxu0 0.0
      %926 = vmatpush1.msra.mxu0 0.0
      %927 = vmatprep.subr.mxu0 0.0
      %928 = vmatpush1.msra.mxu0 0.0
      %929 = vmatprep.subr.mxu0 0.0
      %930 = vmatpush1.msra.mxu0 0.0
      %931 = vmatprep.subr.mxu0 0.0
      %932 = vmatpush1.msra.mxu0 0.0
      %933 = vmatprep.subr.mxu0 0.0
      %934 = vmatpush1.msra.mxu0 0.0
      %935 = vmatprep.subr.mxu0 0.0
      %936 = vmatpush1.msra.mxu0 0.0
      %937 = vmatprep.subr.mxu0 0.0
      %938 = vmatpush1.msra.mxu0 0.0
      %939 = vmatprep.subr.mxu0 0.0
      %940 = vmatpush1.msra.mxu0 0.0
      %941 = vmatprep.subr.mxu0 0.0
      %942 = vmatpush1.msra.mxu0 0.0
      %943 = vmatprep.subr.mxu0 0.0
      %944 = vmatpush1.msra.mxu0 0.0
      %945 = vmatprep.subr.mxu0 0.0
      %946 = vmatpush1.msra.mxu0 0.0
      %947 = vmatprep.subr.mxu0 0.0
      %948 = vmatpush1.msra.mxu0 0.0
      %949 = vmatprep.subr.mxu0 0.0
      %950 = vmatpush1.msra.mxu0 0.0
      %951 = vmatprep.subr.mxu0 0.0
      %952 = vmatpush1.msra.mxu0 0.0
      %953 = vmatprep.subr.mxu0 0.0
      %954 = vmatpush1.msra.mxu0 0.0
      %955 = vmatprep.subr.mxu0 0.0
      %956 = vmatpush1.msra.mxu0 0.0
      %957 = vmatprep.subr.mxu0 0.0
      %958 = vmatpush1.msra.mxu0 0.0
      %959 = vmatprep.subr.mxu0 0.0
      %960 = vmatpush1.msra.mxu0 0.0
      %961 = vmatprep.subr.mxu0 0.0
      %962 = vmatpush1.msra.mxu0 0.0
      %963 = vmatprep.subr.mxu0 0.0
      %964 = vmatpush1.msra.mxu0 0.0
      %965 = vmatprep.subr.mxu0 0.0
      %966 = vmatpush1.msra.mxu0 0.0
      %967 = vmatprep.subr.mxu0 0.0
      %968 = vmatpush1.msra.mxu0 0.0
      %969 = vmatprep.subr.mxu0 0.0
      %970 = vmatpush1.msra.mxu0 0.0
      %971 = vmatprep.mubr.f32.mxu0 0.0
      %972 = vmatmul.mubr.f32.gmra.mrb[0].mxu0 %v888
      %v973 = vpop.f32.mrb[0].mxu0
      %v974 = vadd.f32 0.0, %v973
      %v975 = vpop.f32.mrb[0].mxu0
      %976 = vmatprep.mubr.f32.mxu0 0.0
      %977 = vmatmul.mubr.f32.gmra.mrb[0].mxu0 %v890
      %v978 = vpop.f32.mrb[0].mxu0
      %v979 = vadd.f32 0.0, %v978
      %v980 = vpop.f32.mrb[0].mxu0
      %981 = vmatprep.mubr.f32.mxu0 0.0
      %982 = vmatmul.mubr.f32.gmra.mrb[0].mxu0 %v892
      %v983 = vpop.f32.mrb[0].mxu0
      %v984 = vadd.f32 0.0, %v983
      %v985 = vpop.f32.mrb[0].mxu0
      %986 = vmatprep.mubr.f32.mxu0 0.0
      %987 = vmatmul.mubr.f32.gmra.mrb[0].mxu0 %v894
      %v988 = vpop.f32.mrb[0].mxu0
      %v989 = vadd.f32 0.0, %v988
      %v990 = vpop.f32.mrb[0].mxu0
      %991 = vmatprep.mubr.f32.mxu0 0.0
      %992 = vmatmul.mubr.f32.gmra.mrb[0].mxu0 %v896
      %v993 = vpop.f32.mrb[0].mxu0
      %v994 = vadd.f32 0.0, %v993
      %v995 = vpop.f32.mrb[0].mxu0
      %996 = vmatprep.mubr.f32.mxu0 0.0
      %997 = vmatmul.mubr.f32.gmra.mrb[0].mxu0 %v898
      %v998 = vpop.f32.mrb[0].mxu0
      %v999 = vadd.f32 0.0, %v998
      %v1000 = vpop.f32.mrb[0].mxu0
      %1001 = vmatprep.mubr.f32.mxu0 0.0
      %1002 = vmatmul.mubr.f32.gmra.mrb[0].mxu0 %v900
      %v1003 = vpop.f32.mrb[0].mxu0
      %v1004 = vadd.f32 0.0, %v1003
      %v1005 = vpop.f32.mrb[0].mxu0
      %1006 = vmatprep.mubr.f32.mxu0 0.0
      %1007 = vmatmul.mubr.f32.gmra.mrb[0].mxu0 %v902
      %v1008 = vpop.f32.mrb[0].mxu0
      %v1009 = vadd.f32 0.0, %v1008
      %v1010 = vpop.f32.mrb[0].mxu0
      %1011 = vdwg.mxu0
      %v1012 = vadd.f32 %v828, %v974
      %v1013 = vadd.f32 %v833, %v979
      %v1014 = vadd.f32 %v838, %v984
      %v1015 = vadd.f32 %v843, %v989
      %v1016 = vadd.f32 %v848, %v994
      %v1017 = vadd.f32 %v853, %v999
      %v1018 = vadd.f32 %v858, %v1004
      %v1019 = vadd.f32 %v863, %v1009
      %v1020 = vld [vmem:[%s4 + $0xc] sm:$0xf]
      %v1022 = vsel %vm466, %v576, 0
      %v1025 = vsel %vm466, %v577, 0
      %v1028 = vsel %vm633, %v1020, 0
      %1030 = vmatprep.subr.mxu0 0.0
      %1031 = vmatpush1.msra.mxu0 %v1028
      %1032 = vmatprep.subr.mxu0 0.0
      %1033 = vmatpush1.msra.mxu0 0.0
      %1034 = vmatprep.subr.mxu0 0.0
      %1035 = vmatpush1.msra.mxu0 0.0
      %1036 = vmatprep.subr.mxu0 0.0
      %1037 = vmatpush1.msra.mxu0 0.0
      %1038 = vmatprep.subr.mxu0 0.0
      %1039 = vmatpush1.msra.mxu0 0.0
      %1040 = vmatprep.subr.mxu0 0.0
      %1041 = vmatpush1.msra.mxu0 0.0
      %1042 = vmatprep.subr.mxu0 0.0
      %1043 = vmatpush1.msra.mxu0 0.0
      %1044 = vmatprep.subr.mxu0 0.0
      %1045 = vmatpush1.msra.mxu0 0.0
      %1046 = vmatprep.subr.mxu0 0.0
      %1047 = vmatpush1.msra.mxu0 0.0
      %1048 = vmatprep.subr.mxu0 0.0
      %1049 = vmatpush1.msra.mxu0 0.0
      %1050 = vmatprep.subr.mxu0 0.0
      %1051 = vmatpush1.msra.mxu0 0.0
      %1052 = vmatprep.subr.mxu0 0.0
      %1053 = vmatpush1.msra.mxu0 0.0
      %1054 = vmatprep.subr.mxu0 0.0
      %1055 = vmatpush1.msra.mxu0 0.0
      %1056 = vmatprep.subr.mxu0 0.0
      %1057 = vmatpush1.msra.mxu0 0.0
      %1058 = vmatprep.subr.mxu0 0.0
      %1059 = vmatpush1.msra.mxu0 0.0
      %1060 = vmatprep.subr.mxu0 0.0
      %1061 = vmatpush1.msra.mxu0 0.0
      %1062 = vmatprep.subr.mxu0 0.0
      %1063 = vmatpush1.msra.mxu0 0.0
      %1064 = vmatprep.subr.mxu0 0.0
      %1065 = vmatpush1.msra.mxu0 0.0
      %1066 = vmatprep.subr.mxu0 0.0
      %1067 = vmatpush1.msra.mxu0 0.0
      %1068 = vmatprep.subr.mxu0 0.0
      %1069 = vmatpush1.msra.mxu0 0.0
      %1070 = vmatprep.subr.mxu0 0.0
      %1071 = vmatpush1.msra.mxu0 0.0
      %1072 = vmatprep.subr.mxu0 0.0
      %1073 = vmatpush1.msra.mxu0 0.0
      %1074 = vmatprep.subr.mxu0 0.0
      %1075 = vmatpush1.msra.mxu0 0.0
      %1076 = vmatprep.subr.mxu0 0.0
      %1077 = vmatpush1.msra.mxu0 0.0
      %1078 = vmatprep.subr.mxu0 0.0
      %1079 = vmatpush1.msra.mxu0 0.0
      %1080 = vmatprep.subr.mxu0 0.0
      %1081 = vmatpush1.msra.mxu0 0.0
      %1082 = vmatprep.subr.mxu0 0.0
      %1083 = vmatpush1.msra.mxu0 0.0
      %1084 = vmatprep.subr.mxu0 0.0
      %1085 = vmatpush1.msra.mxu0 0.0
      %1086 = vmatprep.subr.mxu0 0.0
      %1087 = vmatpush1.msra.mxu0 0.0
      %1088 = vmatprep.subr.mxu0 0.0
      %1089 = vmatpush1.msra.mxu0 0.0
      %1090 = vmatprep.subr.mxu0 0.0
      %1091 = vmatpush1.msra.mxu0 0.0
      %1092 = vmatprep.subr.mxu0 0.0
      %1093 = vmatpush1.msra.mxu0 0.0
      %1094 = vmatprep.mubr.f32.mxu0 0.0
      %1095 = vmatmul.mubr.f32.gmra.mrb[0].mxu0 %v746
      %v1096 = vpop.f32.mrb[0].mxu0
      %v1097 = vadd.f32 0.0, %v1096
      %v1098 = vpop.f32.mrb[0].mxu0
      %1099 = vmatprep.mubr.f32.mxu0 0.0
      %1100 = vmatmul.mubr.f32.gmra.mrb[0].mxu0 %v748
      %v1101 = vpop.f32.mrb[0].mxu0
      %v1102 = vadd.f32 0.0, %v1101
      %v1103 = vpop.f32.mrb[0].mxu0
      %1104 = vmatprep.mubr.f32.mxu0 0.0
      %1105 = vmatmul.mubr.f32.gmra.mrb[0].mxu0 %v750
      %v1106 = vpop.f32.mrb[0].mxu0
      %v1107 = vadd.f32 0.0, %v1106
      %v1108 = vpop.f32.mrb[0].mxu0
      %1109 = vmatprep.mubr.f32.mxu0 0.0
      %1110 = vmatmul.mubr.f32.gmra.mrb[0].mxu0 %v752
      %v1111 = vpop.f32.mrb[0].mxu0
      %v1112 = vadd.f32 0.0, %v1111
      %v1113 = vpop.f32.mrb[0].mxu0
      %1114 = vmatprep.mubr.f32.mxu0 0.0
      %1115 = vmatmul.mubr.f32.gmra.mrb[0].mxu0 %v754
      %v1116 = vpop.f32.mrb[0].mxu0
      %v1117 = vadd.f32 0.0, %v1116
      %v1118 = vpop.f32.mrb[0].mxu0
      %1119 = vmatprep.mubr.f32.mxu0 0.0
      %1120 = vmatmul.mubr.f32.gmra.mrb[0].mxu0 %v756
      %v1121 = vpop.f32.mrb[0].mxu0
      %v1122 = vadd.f32 0.0, %v1121
      %v1123 = vpop.f32.mrb[0].mxu0
      %1124 = vmatprep.mubr.f32.mxu0 0.0
      %1125 = vmatmul.mubr.f32.gmra.mrb[0].mxu0 %v1022
      %v1126 = vpop.f32.mrb[0].mxu0
      %v1127 = vadd.f32 0.0, %v1126
      %v1128 = vpop.f32.mrb[0].mxu0
      %1129 = vmatprep.mubr.f32.mxu0 0.0
      %1130 = vmatmul.mubr.f32.gmra.mrb[0].mxu0 %v1025
      %v1131 = vpop.f32.mrb[0].mxu0
      %v1132 = vadd.f32 0.0, %v1131
      %v1133 = vpop.f32.mrb[0].mxu0
      %1134 = vdwg.mxu0
      %v1135 = vadd.f32 %v1012, %v1097
      %v1136 = vadd.f32 %v1013, %v1102
      %v1137 = vadd.f32 %v1014, %v1107
      %v1138 = vadd.f32 %v1015, %v1112
      %v1139 = vadd.f32 %v1016, %v1117
      %v1140 = vadd.f32 %v1017, %v1122
      %v1141 = vadd.f32 %v1018, %v1127
      %v1142 = vadd.f32 %v1019, %v1132
      %v1144 = vrot.slane %v576, 1
      %v1145 = vrot.slane %v577, 1
      %v1146 = vsel %vm595, %v1144, %v1145
      %v1147 = vrot.slane %v578, 1
      %v1148 = vsel %vm595, %v1145, %v1147
      %v1149 = vld [vmem:[%s4 + $0x10] sm:$0xf]
      %v1150 = vsel %vm466, %v1146, 0
      %v1152 = vsel %vm466, %v1148, 0
      %v1155 = vsel %vm633, %v1149, 0
      %1157 = vmatprep.subr.mxu0 0.0
      %1158 = vmatpush1.msra.mxu0 %v1155
      %1159 = vmatprep.subr.mxu0 0.0
      %1160 = vmatpush1.msra.mxu0 0.0
      %1161 = vmatprep.subr.mxu0 0.0
      %1162 = vmatpush1.msra.mxu0 0.0
      %1163 = vmatprep.subr.mxu0 0.0
      %1164 = vmatpush1.msra.mxu0 0.0
      %1165 = vmatprep.subr.mxu0 0.0
      %1166 = vmatpush1.msra.mxu0 0.0
      %1167 = vmatprep.subr.mxu0 0.0
      %1168 = vmatpush1.msra.mxu0 0.0
      %1169 = vmatprep.subr.mxu0 0.0
      %1170 = vmatpush1.msra.mxu0 0.0
      %1171 = vmatprep.subr.mxu0 0.0
      %1172 = vmatpush1.msra.mxu0 0.0
      %1173 = vmatprep.subr.mxu0 0.0
      %1174 = vmatpush1.msra.mxu0 0.0
      %1175 = vmatprep.subr.mxu0 0.0
      %1176 = vmatpush1.msra.mxu0 0.0
      %1177 = vmatprep.subr.mxu0 0.0
      %1178 = vmatpush1.msra.mxu0 0.0
      %1179 = vmatprep.subr.mxu0 0.0
      %1180 = vmatpush1.msra.mxu0 0.0
      %1181 = vmatprep.subr.mxu0 0.0
      %1182 = vmatpush1.msra.mxu0 0.0
      %1183 = vmatprep.subr.mxu0 0.0
      %1184 = vmatpush1.msra.mxu0 0.0
      %1185 = vmatprep.subr.mxu0 0.0
      %1186 = vmatpush1.msra.mxu0 0.0
      %1187 = vmatprep.subr.mxu0 0.0
      %1188 = vmatpush1.msra.mxu0 0.0
      %1189 = vmatprep.subr.mxu0 0.0
      %1190 = vmatpush1.msra.mxu0 0.0
      %1191 = vmatprep.subr.mxu0 0.0
      %1192 = vmatpush1.msra.mxu0 0.0
      %1193 = vmatprep.subr.mxu0 0.0
      %1194 = vmatpush1.msra.mxu0 0.0
      %1195 = vmatprep.subr.mxu0 0.0
      %1196 = vmatpush1.msra.mxu0 0.0
      %1197 = vmatprep.subr.mxu0 0.0
      %1198 = vmatpush1.msra.mxu0 0.0
      %1199 = vmatprep.subr.mxu0 0.0
      %1200 = vmatpush1.msra.mxu0 0.0
      %1201 = vmatprep.subr.mxu0 0.0
      %1202 = vmatpush1.msra.mxu0 0.0
      %1203 = vmatprep.subr.mxu0 0.0
      %1204 = vmatpush1.msra.mxu0 0.0
      %1205 = vmatprep.subr.mxu0 0.0
      %1206 = vmatpush1.msra.mxu0 0.0
      %1207 = vmatprep.subr.mxu0 0.0
      %1208 = vmatpush1.msra.mxu0 0.0
      %1209 = vmatprep.subr.mxu0 0.0
      %1210 = vmatpush1.msra.mxu0 0.0
      %1211 = vmatprep.subr.mxu0 0.0
      %1212 = vmatpush1.msra.mxu0 0.0
      %1213 = vmatprep.subr.mxu0 0.0
      %1214 = vmatpush1.msra.mxu0 0.0
      %1215 = vmatprep.subr.mxu0 0.0
      %1216 = vmatpush1.msra.mxu0 0.0
      %1217 = vmatprep.subr.mxu0 0.0
      %1218 = vmatpush1.msra.mxu0 0.0
      %1219 = vmatprep.subr.mxu0 0.0
      %1220 = vmatpush1.msra.mxu0 0.0
      %1221 = vmatprep.mubr.f32.mxu0 0.0
      %1222 = vmatmul.mubr.f32.gmra.mrb[0].mxu0 %v621
      %v1223 = vpop.f32.mrb[0].mxu0
      %v1224 = vadd.f32 0.0, %v1223
      %v1225 = vpop.f32.mrb[0].mxu0
      %1226 = vmatprep.mubr.f32.mxu0 0.0
      %1227 = vmatmul.mubr.f32.gmra.mrb[0].mxu0 %v623
      %v1228 = vpop.f32.mrb[0].mxu0
      %v1229 = vadd.f32 0.0, %v1228
      %v1230 = vpop.f32.mrb[0].mxu0
      %1231 = vmatprep.mubr.f32.mxu0 0.0
      %1232 = vmatmul.mubr.f32.gmra.mrb[0].mxu0 %v625
      %v1233 = vpop.f32.mrb[0].mxu0
      %v1234 = vadd.f32 0.0, %v1233
      %v1235 = vpop.f32.mrb[0].mxu0
      %1236 = vmatprep.mubr.f32.mxu0 0.0
      %1237 = vmatmul.mubr.f32.gmra.mrb[0].mxu0 %v627
      %v1238 = vpop.f32.mrb[0].mxu0
      %v1239 = vadd.f32 0.0, %v1238
      %v1240 = vpop.f32.mrb[0].mxu0
      %1241 = vmatprep.mubr.f32.mxu0 0.0
      %1242 = vmatmul.mubr.f32.gmra.mrb[0].mxu0 %v629
      %v1243 = vpop.f32.mrb[0].mxu0
      %v1244 = vadd.f32 0.0, %v1243
      %v1245 = vpop.f32.mrb[0].mxu0
      %1246 = vmatprep.mubr.f32.mxu0 0.0
      %1247 = vmatmul.mubr.f32.gmra.mrb[0].mxu0 %v631
      %v1248 = vpop.f32.mrb[0].mxu0
      %v1249 = vadd.f32 0.0, %v1248
      %v1250 = vpop.f32.mrb[0].mxu0
      %1251 = vmatprep.mubr.f32.mxu0 0.0
      %1252 = vmatmul.mubr.f32.gmra.mrb[0].mxu0 %v1150
      %v1253 = vpop.f32.mrb[0].mxu0
      %v1254 = vadd.f32 0.0, %v1253
      %v1255 = vpop.f32.mrb[0].mxu0
      %1256 = vmatprep.mubr.f32.mxu0 0.0
      %1257 = vmatmul.mubr.f32.gmra.mrb[0].mxu0 %v1152
      %v1258 = vpop.f32.mrb[0].mxu0
      %v1259 = vadd.f32 0.0, %v1258
      %v1260 = vpop.f32.mrb[0].mxu0
      %1261 = vdwg.mxu0
      %v1262 = vadd.f32 %v1135, %v1224
      %v1263 = vadd.f32 %v1136, %v1229
      %v1264 = vadd.f32 %v1137, %v1234
      %v1265 = vadd.f32 %v1138, %v1239
      %v1266 = vadd.f32 %v1139, %v1244
      %v1267 = vadd.f32 %v1140, %v1249
      %v1268 = vadd.f32 %v1141, %v1254
      %v1269 = vadd.f32 %v1142, %v1259
      %v1270 = vrot.slane %v576, 2
      %v1271 = vrot.slane %v577, 2
      %v1272 = vsel %vm866, %v1270, %v1271
      %v1273 = vrot.slane %v578, 2
      %v1274 = vsel %vm866, %v1271, %v1273
      %v1275 = vld [vmem:[%s4 + $0x14] sm:$0xf]
      %v1276 = vsel %vm466, %v1272, 0
      %v1278 = vsel %vm466, %v1274, 0
      %v1281 = vsel %vm633, %v1275, 0
      %1283 = vmatprep.subr.mxu0 0.0
      %1284 = vmatpush1.msra.mxu0 %v1281
      %1285 = vmatprep.subr.mxu0 0.0
      %1286 = vmatpush1.msra.mxu0 0.0
      %1287 = vmatprep.subr.mxu0 0.0
      %1288 = vmatpush1.msra.mxu0 0.0
      %1289 = vmatprep.subr.mxu0 0.0
      %1290 = vmatpush1.msra.mxu0 0.0
      %1291 = vmatprep.subr.mxu0 0.0
      %1292 = vmatpush1.msra.mxu0 0.0
      %1293 = vmatprep.subr.mxu0 0.0
      %1294 = vmatpush1.msra.mxu0 0.0
      %1295 = vmatprep.subr.mxu0 0.0
      %1296 = vmatpush1.msra.mxu0 0.0
      %1297 = vmatprep.subr.mxu0 0.0
      %1298 = vmatpush1.msra.mxu0 0.0
      %1299 = vmatprep.subr.mxu0 0.0
      %1300 = vmatpush1.msra.mxu0 0.0
      %1301 = vmatprep.subr.mxu0 0.0
      %1302 = vmatpush1.msra.mxu0 0.0
      %1303 = vmatprep.subr.mxu0 0.0
      %1304 = vmatpush1.msra.mxu0 0.0
      %1305 = vmatprep.subr.mxu0 0.0
      %1306 = vmatpush1.msra.mxu0 0.0
      %1307 = vmatprep.subr.mxu0 0.0
      %1308 = vmatpush1.msra.mxu0 0.0
      %1309 = vmatprep.subr.mxu0 0.0
      %1310 = vmatpush1.msra.mxu0 0.0
      %1311 = vmatprep.subr.mxu0 0.0
      %1312 = vmatpush1.msra.mxu0 0.0
      %1313 = vmatprep.subr.mxu0 0.0
      %1314 = vmatpush1.msra.mxu0 0.0
      %1315 = vmatprep.subr.mxu0 0.0
      %1316 = vmatpush1.msra.mxu0 0.0
      %1317 = vmatprep.subr.mxu0 0.0
      %1318 = vmatpush1.msra.mxu0 0.0
      %1319 = vmatprep.subr.mxu0 0.0
      %1320 = vmatpush1.msra.mxu0 0.0
      %1321 = vmatprep.subr.mxu0 0.0
      %1322 = vmatpush1.msra.mxu0 0.0
      %1323 = vmatprep.subr.mxu0 0.0
      %1324 = vmatpush1.msra.mxu0 0.0
      %1325 = vmatprep.subr.mxu0 0.0
      %1326 = vmatpush1.msra.mxu0 0.0
      %1327 = vmatprep.subr.mxu0 0.0
      %1328 = vmatpush1.msra.mxu0 0.0
      %1329 = vmatprep.subr.mxu0 0.0
      %1330 = vmatpush1.msra.mxu0 0.0
      %1331 = vmatprep.subr.mxu0 0.0
      %1332 = vmatpush1.msra.mxu0 0.0
      %1333 = vmatprep.subr.mxu0 0.0
      %1334 = vmatpush1.msra.mxu0 0.0
      %1335 = vmatprep.subr.mxu0 0.0
      %1336 = vmatpush1.msra.mxu0 0.0
      %1337 = vmatprep.subr.mxu0 0.0
      %1338 = vmatpush1.msra.mxu0 0.0
      %1339 = vmatprep.subr.mxu0 0.0
      %1340 = vmatpush1.msra.mxu0 0.0
      %1341 = vmatprep.subr.mxu0 0.0
      %1342 = vmatpush1.msra.mxu0 0.0
      %1343 = vmatprep.subr.mxu0 0.0
      %1344 = vmatpush1.msra.mxu0 0.0
      %1345 = vmatprep.subr.mxu0 0.0
      %1346 = vmatpush1.msra.mxu0 0.0
      %1347 = vmatprep.mubr.f32.mxu0 0.0
      %1348 = vmatmul.mubr.f32.gmra.mrb[0].mxu0 %v892
      %v1349 = vpop.f32.mrb[0].mxu0
      %v1350 = vadd.f32 0.0, %v1349
      %v1351 = vpop.f32.mrb[0].mxu0
      %1352 = vmatprep.mubr.f32.mxu0 0.0
      %1353 = vmatmul.mubr.f32.gmra.mrb[0].mxu0 %v894
      %v1354 = vpop.f32.mrb[0].mxu0
      %v1355 = vadd.f32 0.0, %v1354
      %v1356 = vpop.f32.mrb[0].mxu0
      %1357 = vmatprep.mubr.f32.mxu0 0.0
      %1358 = vmatmul.mubr.f32.gmra.mrb[0].mxu0 %v896
      %v1359 = vpop.f32.mrb[0].mxu0
      %v1360 = vadd.f32 0.0, %v1359
      %v1361 = vpop.f32.mrb[0].mxu0
      %1362 = vmatprep.mubr.f32.mxu0 0.0
      %1363 = vmatmul.mubr.f32.gmra.mrb[0].mxu0 %v898
      %v1364 = vpop.f32.mrb[0].mxu0
      %v1365 = vadd.f32 0.0, %v1364
      %v1366 = vpop.f32.mrb[0].mxu0
      %1367 = vmatprep.mubr.f32.mxu0 0.0
      %1368 = vmatmul.mubr.f32.gmra.mrb[0].mxu0 %v900
      %v1369 = vpop.f32.mrb[0].mxu0
      %v1370 = vadd.f32 0.0, %v1369
      %v1371 = vpop.f32.mrb[0].mxu0
      %1372 = vmatprep.mubr.f32.mxu0 0.0
      %1373 = vmatmul.mubr.f32.gmra.mrb[0].mxu0 %v902
      %v1374 = vpop.f32.mrb[0].mxu0
      %v1375 = vadd.f32 0.0, %v1374
      %v1376 = vpop.f32.mrb[0].mxu0
      %1377 = vmatprep.mubr.f32.mxu0 0.0
      %1378 = vmatmul.mubr.f32.gmra.mrb[0].mxu0 %v1276
      %v1379 = vpop.f32.mrb[0].mxu0
      %v1380 = vadd.f32 0.0, %v1379
      %v1381 = vpop.f32.mrb[0].mxu0
      %1382 = vmatprep.mubr.f32.mxu0 0.0
      %1383 = vmatmul.mubr.f32.gmra.mrb[0].mxu0 %v1278
      %v1384 = vpop.f32.mrb[0].mxu0
      %v1385 = vadd.f32 0.0, %v1384
      %v1386 = vpop.f32.mrb[0].mxu0
      %1387 = vdwg.mxu0
      %v1388 = vadd.f32 %v1262, %v1350
      %v1389 = vadd.f32 %v1263, %v1355
      %v1390 = vadd.f32 %v1264, %v1360
      %v1391 = vadd.f32 %v1265, %v1365
      %v1392 = vadd.f32 %v1266, %v1370
      %v1393 = vadd.f32 %v1267, %v1375
      %v1394 = vadd.f32 %v1268, %v1380
      %v1395 = vadd.f32 %v1269, %v1385
      %v1396 = vld [vmem:[%s4 + $0x18] sm:$0xf]
      %v1398 = vsel %vm466, %v579, 0
      %v1401 = vsel %vm466, %v580, 0
      %v1404 = vsel %vm633, %v1396, 0
      %1406 = vmatprep.subr.mxu0 0.0
      %1407 = vmatpush1.msra.mxu0 %v1404
      %1408 = vmatprep.subr.mxu0 0.0
      %1409 = vmatpush1.msra.mxu0 0.0
      %1410 = vmatprep.subr.mxu0 0.0
      %1411 = vmatpush1.msra.mxu0 0.0
      %1412 = vmatprep.subr.mxu0 0.0
      %1413 = vmatpush1.msra.mxu0 0.0
      %1414 = vmatprep.subr.mxu0 0.0
      %1415 = vmatpush1.msra.mxu0 0.0
      %1416 = vmatprep.subr.mxu0 0.0
      %1417 = vmatpush1.msra.mxu0 0.0
      %1418 = vmatprep.subr.mxu0 0.0
      %1419 = vmatpush1.msra.mxu0 0.0
      %1420 = vmatprep.subr.mxu0 0.0
      %1421 = vmatpush1.msra.mxu0 0.0
      %1422 = vmatprep.subr.mxu0 0.0
      %1423 = vmatpush1.msra.mxu0 0.0
      %1424 = vmatprep.subr.mxu0 0.0
      %1425 = vmatpush1.msra.mxu0 0.0
      %1426 = vmatprep.subr.mxu0 0.0
      %1427 = vmatpush1.msra.mxu0 0.0
      %1428 = vmatprep.subr.mxu0 0.0
      %1429 = vmatpush1.msra.mxu0 0.0
      %1430 = vmatprep.subr.mxu0 0.0
      %1431 = vmatpush1.msra.mxu0 0.0
      %1432 = vmatprep.subr.mxu0 0.0
      %1433 = vmatpush1.msra.mxu0 0.0
      %1434 = vmatprep.subr.mxu0 0.0
      %1435 = vmatpush1.msra.mxu0 0.0
      %1436 = vmatprep.subr.mxu0 0.0
      %1437 = vmatpush1.msra.mxu0 0.0
      %1438 = vmatprep.subr.mxu0 0.0
      %1439 = vmatpush1.msra.mxu0 0.0
      %1440 = vmatprep.subr.mxu0 0.0
      %1441 = vmatpush1.msra.mxu0 0.0
      %1442 = vmatprep.subr.mxu0 0.0
      %1443 = vmatpush1.msra.mxu0 0.0
      %1444 = vmatprep.subr.mxu0 0.0
      %1445 = vmatpush1.msra.mxu0 0.0
      %1446 = vmatprep.subr.mxu0 0.0
      %1447 = vmatpush1.msra.mxu0 0.0
      %1448 = vmatprep.subr.mxu0 0.0
      %1449 = vmatpush1.msra.mxu0 0.0
      %1450 = vmatprep.subr.mxu0 0.0
      %1451 = vmatpush1.msra.mxu0 0.0
      %1452 = vmatprep.subr.mxu0 0.0
      %1453 = vmatpush1.msra.mxu0 0.0
      %1454 = vmatprep.subr.mxu0 0.0
      %1455 = vmatpush1.msra.mxu0 0.0
      %1456 = vmatprep.subr.mxu0 0.0
      %1457 = vmatpush1.msra.mxu0 0.0
      %1458 = vmatprep.subr.mxu0 0.0
      %1459 = vmatpush1.msra.mxu0 0.0
      %1460 = vmatprep.subr.mxu0 0.0
      %1461 = vmatpush1.msra.mxu0 0.0
      %1462 = vmatprep.subr.mxu0 0.0
      %1463 = vmatpush1.msra.mxu0 0.0
      %1464 = vmatprep.subr.mxu0 0.0
      %1465 = vmatpush1.msra.mxu0 0.0
      %1466 = vmatprep.subr.mxu0 0.0
      %1467 = vmatpush1.msra.mxu0 0.0
      %1468 = vmatprep.subr.mxu0 0.0
      %1469 = vmatpush1.msra.mxu0 0.0
      %1470 = vmatprep.mubr.f32.mxu0 0.0
      %1471 = vmatmul.mubr.f32.gmra.mrb[0].mxu0 %v750
      %v1472 = vpop.f32.mrb[0].mxu0
      %v1473 = vadd.f32 0.0, %v1472
      %v1474 = vpop.f32.mrb[0].mxu0
      %1475 = vmatprep.mubr.f32.mxu0 0.0
      %1476 = vmatmul.mubr.f32.gmra.mrb[0].mxu0 %v752
      %v1477 = vpop.f32.mrb[0].mxu0
      %v1478 = vadd.f32 0.0, %v1477
      %v1479 = vpop.f32.mrb[0].mxu0
      %1480 = vmatprep.mubr.f32.mxu0 0.0
      %1481 = vmatmul.mubr.f32.gmra.mrb[0].mxu0 %v754
      %v1482 = vpop.f32.mrb[0].mxu0
      %v1483 = vadd.f32 0.0, %v1482
      %v1484 = vpop.f32.mrb[0].mxu0
      %1485 = vmatprep.mubr.f32.mxu0 0.0
      %1486 = vmatmul.mubr.f32.gmra.mrb[0].mxu0 %v756
      %v1487 = vpop.f32.mrb[0].mxu0
      %v1488 = vadd.f32 0.0, %v1487
      %v1489 = vpop.f32.mrb[0].mxu0
      %1490 = vmatprep.mubr.f32.mxu0 0.0
      %1491 = vmatmul.mubr.f32.gmra.mrb[0].mxu0 %v1022
      %v1492 = vpop.f32.mrb[0].mxu0
      %v1493 = vadd.f32 0.0, %v1492
      %v1494 = vpop.f32.mrb[0].mxu0
      %1495 = vmatprep.mubr.f32.mxu0 0.0
      %1496 = vmatmul.mubr.f32.gmra.mrb[0].mxu0 %v1025
      %v1497 = vpop.f32.mrb[0].mxu0
      %v1498 = vadd.f32 0.0, %v1497
      %v1499 = vpop.f32.mrb[0].mxu0
      %1500 = vmatprep.mubr.f32.mxu0 0.0
      %1501 = vmatmul.mubr.f32.gmra.mrb[0].mxu0 %v1398
      %v1502 = vpop.f32.mrb[0].mxu0
      %v1503 = vadd.f32 0.0, %v1502
      %v1504 = vpop.f32.mrb[0].mxu0
      %1505 = vmatprep.mubr.f32.mxu0 0.0
      %1506 = vmatmul.mubr.f32.gmra.mrb[0].mxu0 %v1401
      %v1507 = vpop.f32.mrb[0].mxu0
      %v1508 = vadd.f32 0.0, %v1507
      %v1509 = vpop.f32.mrb[0].mxu0
      %1510 = vdwg.mxu0
      %v1511 = vadd.f32 %v1388, %v1473
      %v1512 = vadd.f32 %v1389, %v1478
      %v1513 = vadd.f32 %v1390, %v1483
      %v1514 = vadd.f32 %v1391, %v1488
      %v1515 = vadd.f32 %v1392, %v1493
      %v1516 = vadd.f32 %v1393, %v1498
      %v1517 = vadd.f32 %v1394, %v1503
      %v1518 = vadd.f32 %v1395, %v1508
      %v1520 = vrot.slane %v579, 1
      %v1521 = vrot.slane %v580, 1
      %v1522 = vsel %vm595, %v1520, %v1521
      %v1523 = vrot.slane %v581, 1
      %v1524 = vsel %vm595, %v1521, %v1523
      %v1525 = vld [vmem:[%s4 + $0x1c] sm:$0xf]
      %v1526 = vsel %vm466, %v1522, 0
      %v1528 = vsel %vm466, %v1524, 0
      %v1531 = vsel %vm633, %v1525, 0
      %1533 = vmatprep.subr.mxu0 0.0
      %1534 = vmatpush1.msra.mxu0 %v1531
      %1535 = vmatprep.subr.mxu0 0.0
      %1536 = vmatpush1.msra.mxu0 0.0
      %1537 = vmatprep.subr.mxu0 0.0
      %1538 = vmatpush1.msra.mxu0 0.0
      %1539 = vmatprep.subr.mxu0 0.0
      %1540 = vmatpush1.msra.mxu0 0.0
      %1541 = vmatprep.subr.mxu0 0.0
      %1542 = vmatpush1.msra.mxu0 0.0
      %1543 = vmatprep.subr.mxu0 0.0
      %1544 = vmatpush1.msra.mxu0 0.0
      %1545 = vmatprep.subr.mxu0 0.0
      %1546 = vmatpush1.msra.mxu0 0.0
      %1547 = vmatprep.subr.mxu0 0.0
      %1548 = vmatpush1.msra.mxu0 0.0
      %1549 = vmatprep.subr.mxu0 0.0
      %1550 = vmatpush1.msra.mxu0 0.0
      %1551 = vmatprep.subr.mxu0 0.0
      %1552 = vmatpush1.msra.mxu0 0.0
      %1553 = vmatprep.subr.mxu0 0.0
      %1554 = vmatpush1.msra.mxu0 0.0
      %1555 = vmatprep.subr.mxu0 0.0
      %1556 = vmatpush1.msra.mxu0 0.0
      %1557 = vmatprep.subr.mxu0 0.0
      %1558 = vmatpush1.msra.mxu0 0.0
      %1559 = vmatprep.subr.mxu0 0.0
      %1560 = vmatpush1.msra.mxu0 0.0
      %1561 = vmatprep.subr.mxu0 0.0
      %1562 = vmatpush1.msra.mxu0 0.0
      %1563 = vmatprep.subr.mxu0 0.0
      %1564 = vmatpush1.msra.mxu0 0.0
      %1565 = vmatprep.subr.mxu0 0.0
      %1566 = vmatpush1.msra.mxu0 0.0
      %1567 = vmatprep.subr.mxu0 0.0
      %1568 = vmatpush1.msra.mxu0 0.0
      %1569 = vmatprep.subr.mxu0 0.0
      %1570 = vmatpush1.msra.mxu0 0.0
      %1571 = vmatprep.subr.mxu0 0.0
      %1572 = vmatpush1.msra.mxu0 0.0
      %1573 = vmatprep.subr.mxu0 0.0
      %1574 = vmatpush1.msra.mxu0 0.0
      %1575 = vmatprep.subr.mxu0 0.0
      %1576 = vmatpush1.msra.mxu0 0.0
      %1577 = vmatprep.subr.mxu0 0.0
      %1578 = vmatpush1.msra.mxu0 0.0
      %1579 = vmatprep.subr.mxu0 0.0
      %1580 = vmatpush1.msra.mxu0 0.0
      %1581 = vmatprep.subr.mxu0 0.0
      %1582 = vmatpush1.msra.mxu0 0.0
      %1583 = vmatprep.subr.mxu0 0.0
      %1584 = vmatpush1.msra.mxu0 0.0
      %1585 = vmatprep.subr.mxu0 0.0
      %1586 = vmatpush1.msra.mxu0 0.0
      %1587 = vmatprep.subr.mxu0 0.0
      %1588 = vmatpush1.msra.mxu0 0.0
      %1589 = vmatprep.subr.mxu0 0.0
      %1590 = vmatpush1.msra.mxu0 0.0
      %1591 = vmatprep.subr.mxu0 0.0
      %1592 = vmatpush1.msra.mxu0 0.0
      %1593 = vmatprep.subr.mxu0 0.0
      %1594 = vmatpush1.msra.mxu0 0.0
      %1595 = vmatprep.subr.mxu0 0.0
      %1596 = vmatpush1.msra.mxu0 0.0
      %1597 = vmatprep.mubr.f32.mxu0 0.0
      %1598 = vmatmul.mubr.f32.gmra.mrb[0].mxu0 %v625
      %v1599 = vpop.f32.mrb[0].mxu0
      %v1600 = vadd.f32 0.0, %v1599
      %v1601 = vpop.f32.mrb[0].mxu0
      %1602 = vmatprep.mubr.f32.mxu0 0.0
      %1603 = vmatmul.mubr.f32.gmra.mrb[0].mxu0 %v627
      %v1604 = vpop.f32.mrb[0].mxu0
      %v1605 = vadd.f32 0.0, %v1604
      %v1606 = vpop.f32.mrb[0].mxu0
      %1607 = vmatprep.mubr.f32.mxu0 0.0
      %1608 = vmatmul.mubr.f32.gmra.mrb[0].mxu0 %v629
      %v1609 = vpop.f32.mrb[0].mxu0
      %v1610 = vadd.f32 0.0, %v1609
      %v1611 = vpop.f32.mrb[0].mxu0
      %1612 = vmatprep.mubr.f32.mxu0 0.0
      %1613 = vmatmul.mubr.f32.gmra.mrb[0].mxu0 %v631
      %v1614 = vpop.f32.mrb[0].mxu0
      %v1615 = vadd.f32 0.0, %v1614
      %v1616 = vpop.f32.mrb[0].mxu0
      %1617 = vmatprep.mubr.f32.mxu0 0.0
      %1618 = vmatmul.mubr.f32.gmra.mrb[0].mxu0 %v1150
      %v1619 = vpop.f32.mrb[0].mxu0
      %v1620 = vadd.f32 0.0, %v1619
      %v1621 = vpop.f32.mrb[0].mxu0
      %1622 = vmatprep.mubr.f32.mxu0 0.0
      %1623 = vmatmul.mubr.f32.gmra.mrb[0].mxu0 %v1152
      %v1624 = vpop.f32.mrb[0].mxu0
      %v1625 = vadd.f32 0.0, %v1624
      %v1626 = vpop.f32.mrb[0].mxu0
      %1627 = vmatprep.mubr.f32.mxu0 0.0
      %1628 = vmatmul.mubr.f32.gmra.mrb[0].mxu0 %v1526
      %v1629 = vpop.f32.mrb[0].mxu0
      %v1630 = vadd.f32 0.0, %v1629
      %v1631 = vpop.f32.mrb[0].mxu0
      %1632 = vmatprep.mubr.f32.mxu0 0.0
      %1633 = vmatmul.mubr.f32.gmra.mrb[0].mxu0 %v1528
      %v1634 = vpop.f32.mrb[0].mxu0
      %v1635 = vadd.f32 0.0, %v1634
      %v1636 = vpop.f32.mrb[0].mxu0
      %1637 = vdwg.mxu0
      %v1638 = vadd.f32 %v1511, %v1600
      %v1639 = vadd.f32 %v1512, %v1605
      %v1640 = vadd.f32 %v1513, %v1610
      %v1641 = vadd.f32 %v1514, %v1615
      %v1642 = vadd.f32 %v1515, %v1620
      %v1643 = vadd.f32 %v1516, %v1625
      %v1644 = vadd.f32 %v1517, %v1630
      %v1645 = vadd.f32 %v1518, %v1635
      %v1646 = vrot.slane %v579, 2
      %v1647 = vrot.slane %v580, 2
      %v1648 = vsel %vm866, %v1646, %v1647
      %v1649 = vrot.slane %v581, 2
      %v1650 = vsel %vm866, %v1647, %v1649
      %v1651 = vld [vmem:[%s4 + $0x20] sm:$0xf]
      %v1652 = vsel %vm466, %v1648, 0
      %v1654 = vsel %vm466, %v1650, 0
      %v1657 = vsel %vm633, %v1651, 0
      %1659 = vmatprep.subr.mxu0 0.0
      %1660 = vmatpush1.msra.mxu0 %v1657
      %1661 = vmatprep.subr.mxu0 0.0
      %1662 = vmatpush1.msra.mxu0 0.0
      %1663 = vmatprep.subr.mxu0 0.0
      %1664 = vmatpush1.msra.mxu0 0.0
      %1665 = vmatprep.subr.mxu0 0.0
      %1666 = vmatpush1.msra.mxu0 0.0
      %1667 = vmatprep.subr.mxu0 0.0
      %1668 = vmatpush1.msra.mxu0 0.0
      %1669 = vmatprep.subr.mxu0 0.0
      %1670 = vmatpush1.msra.mxu0 0.0
      %1671 = vmatprep.subr.mxu0 0.0
      %1672 = vmatpush1.msra.mxu0 0.0
      %1673 = vmatprep.subr.mxu0 0.0
      %1674 = vmatpush1.msra.mxu0 0.0
      %1675 = vmatprep.subr.mxu0 0.0
      %1676 = vmatpush1.msra.mxu0 0.0
      %1677 = vmatprep.subr.mxu0 0.0
      %1678 = vmatpush1.msra.mxu0 0.0
      %1679 = vmatprep.subr.mxu0 0.0
      %1680 = vmatpush1.msra.mxu0 0.0
      %1681 = vmatprep.subr.mxu0 0.0
      %1682 = vmatpush1.msra.mxu0 0.0
      %1683 = vmatprep.subr.mxu0 0.0
      %1684 = vmatpush1.msra.mxu0 0.0
      %1685 = vmatprep.subr.mxu0 0.0
      %1686 = vmatpush1.msra.mxu0 0.0
      %1687 = vmatprep.subr.mxu0 0.0
      %1688 = vmatpush1.msra.mxu0 0.0
      %1689 = vmatprep.subr.mxu0 0.0
      %1690 = vmatpush1.msra.mxu0 0.0
      %1691 = vmatprep.subr.mxu0 0.0
      %1692 = vmatpush1.msra.mxu0 0.0
      %1693 = vmatprep.subr.mxu0 0.0
      %1694 = vmatpush1.msra.mxu0 0.0
      %1695 = vmatprep.subr.mxu0 0.0
      %1696 = vmatpush1.msra.mxu0 0.0
      %1697 = vmatprep.subr.mxu0 0.0
      %1698 = vmatpush1.msra.mxu0 0.0
      %1699 = vmatprep.subr.mxu0 0.0
      %1700 = vmatpush1.msra.mxu0 0.0
      %1701 = vmatprep.subr.mxu0 0.0
      %1702 = vmatpush1.msra.mxu0 0.0
      %1703 = vmatprep.subr.mxu0 0.0
      %1704 = vmatpush1.msra.mxu0 0.0
      %1705 = vmatprep.subr.mxu0 0.0
      %1706 = vmatpush1.msra.mxu0 0.0
      %1707 = vmatprep.subr.mxu0 0.0
      %1708 = vmatpush1.msra.mxu0 0.0
      %1709 = vmatprep.subr.mxu0 0.0
      %1710 = vmatpush1.msra.mxu0 0.0
      %1711 = vmatprep.subr.mxu0 0.0
      %1712 = vmatpush1.msra.mxu0 0.0
      %1713 = vmatprep.subr.mxu0 0.0
      %1714 = vmatpush1.msra.mxu0 0.0
      %1715 = vmatprep.subr.mxu0 0.0
      %1716 = vmatpush1.msra.mxu0 0.0
      %1717 = vmatprep.subr.mxu0 0.0
      %1718 = vmatpush1.msra.mxu0 0.0
      %1719 = vmatprep.subr.mxu0 0.0
      %1720 = vmatpush1.msra.mxu0 0.0
      %1721 = vmatprep.subr.mxu0 0.0
      %1722 = vmatpush1.msra.mxu0 0.0
      %1723 = vmatprep.mubr.f32.mxu0 0.0
      %1724 = vmatmul.mubr.f32.gmra.mrb[0].mxu0 %v896
      %v1725 = vpop.f32.mrb[0].mxu0
      %v1726 = vadd.f32 0.0, %v1725
      %v1727 = vpop.f32.mrb[0].mxu0
      %1728 = vmatprep.mubr.f32.mxu0 0.0
      %1729 = vmatmul.mubr.f32.gmra.mrb[0].mxu0 %v898
      %v1730 = vpop.f32.mrb[0].mxu0
      %v1731 = vadd.f32 0.0, %v1730
      %v1732 = vpop.f32.mrb[0].mxu0
      %1733 = vmatprep.mubr.f32.mxu0 0.0
      %1734 = vmatmul.mubr.f32.gmra.mrb[0].mxu0 %v900
      %v1735 = vpop.f32.mrb[0].mxu0
      %v1736 = vadd.f32 0.0, %v1735
      %v1737 = vpop.f32.mrb[0].mxu0
      %1738 = vmatprep.mubr.f32.mxu0 0.0
      %1739 = vmatmul.mubr.f32.gmra.mrb[0].mxu0 %v902
      %v1740 = vpop.f32.mrb[0].mxu0
      %v1741 = vadd.f32 0.0, %v1740
      %v1742 = vpop.f32.mrb[0].mxu0
      %1743 = vmatprep.mubr.f32.mxu0 0.0
      %1744 = vmatmul.mubr.f32.gmra.mrb[0].mxu0 %v1276
      %v1745 = vpop.f32.mrb[0].mxu0
      %v1746 = vadd.f32 0.0, %v1745
      %v1747 = vpop.f32.mrb[0].mxu0
      %1748 = vmatprep.mubr.f32.mxu0 0.0
      %1749 = vmatmul.mubr.f32.gmra.mrb[0].mxu0 %v1278
      %v1750 = vpop.f32.mrb[0].mxu0
      %v1751 = vadd.f32 0.0, %v1750
      %v1752 = vpop.f32.mrb[0].mxu0
      %1753 = vmatprep.mubr.f32.mxu0 0.0
      %1754 = vmatmul.mubr.f32.gmra.mrb[0].mxu0 %v1652
      %v1755 = vpop.f32.mrb[0].mxu0
      %v1756 = vadd.f32 0.0, %v1755
      %v1757 = vpop.f32.mrb[0].mxu0
      %1758 = vmatprep.mubr.f32.mxu0 0.0
      %1759 = vmatmul.mubr.f32.gmra.mrb[0].mxu0 %v1654
      %v1760 = vpop.f32.mrb[0].mxu0
      %v1761 = vadd.f32 0.0, %v1760
      %v1762 = vpop.f32.mrb[0].mxu0
      %1763 = vdwg.mxu0
      %v1764 = vadd.f32 %v1638, %v1726
      %v1765 = vadd.f32 %v1639, %v1731
      %v1766 = vadd.f32 %v1640, %v1736
      %v1767 = vadd.f32 %v1641, %v1741
      %v1768 = vadd.f32 %v1642, %v1746
      %v1769 = vadd.f32 %v1643, %v1751
      %v1770 = vadd.f32 %v1644, %v1756
      %v1771 = vadd.f32 %v1645, %v1761
      %v1772 = vld [vmem:[%s5] sm:$0x1]
      %v1774 = vlaneseq
      %v1775 = vshrl.u32 %v1774, 7
      %v1776 = vsub.s32 0, %v1775
      %v1777 = vrot.slane %v1772, %v1776
      %v1779 = vadd.f32 %v1764, %v1777
      %v1780 = vadd.f32 %v1765, %v1777
      %v1781 = vadd.f32 %v1766, %v1777
      %v1782 = vadd.f32 %v1767, %v1777
      %v1783 = vadd.f32 %v1768, %v1777
      %v1784 = vadd.f32 %v1769, %v1777
      %v1785 = vadd.f32 %v1770, %v1777
      %v1786 = vadd.f32 %v1771, %v1777
      %1787 = vst.msk [vmem:[%s455] sm:$0xff] %vm466, %v1779
      %1788 = vst.msk [vmem:[%s455 + $0x8] sm:$0xff] %vm466, %v1780
      %1789 = vst.msk [vmem:[%s455 + $0x10] sm:$0xff] %vm466, %v1781
      %1790 = vst.msk [vmem:[%s455 + $0x18] sm:$0xff] %vm466, %v1782
      %1791 = vst.msk [vmem:[%s455 + $0x20] sm:$0xff] %vm466, %v1783
      %1792 = vst.msk [vmem:[%s455 + $0x28] sm:$0xff] %vm466, %v1784
      %1793 = vst.msk [vmem:[%s455 + $0x30] sm:$0xff] %vm466, %v1785
      %1794 = vst.msk [vmem:[%s455 + $0x38] sm:$0xff] %vm466, %v1786
      %v1795 = vsel %vm466, %v1779, 0.0
      %v1796 = vsel %vm466, %v1780, 0.0
      %v1797 = vadd.f32 %v1795, %v1796
      %v1798 = vsel %vm466, %v1781, 0.0
      %v1799 = vadd.f32 %v1797, %v1798
      %v1800 = vsel %vm466, %v1782, 0.0
      %v1801 = vadd.f32 %v1799, %v1800
      %v1802 = vsel %vm466, %v1783, 0.0
      %v1803 = vadd.f32 %v1801, %v1802
      %v1804 = vsel %vm466, %v1784, 0.0
      %v1805 = vadd.f32 %v1803, %v1804
      %v1806 = vsel %vm466, %v1785, 0.0
      %v1807 = vadd.f32 %v1805, %v1806
      %v1808 = vsel %vm466, %v1786, 0.0
      %v1809 = vadd.f32 %v1807, %v1808
      %v1810 = vrot.slane %v1809, 4
      %v1811 = vadd.f32 %v1809, %v1810
      %v1812 = vrot.slane %v1811, 2
      %v1813 = vadd.f32 %v1811, %v1812
      %v1814 = vrot.slane %v1813, 1
      %v1815 = vadd.f32 %v1813, %v1814
      %vm1816 = vcmask 24576
      %1817 = vst.msk [vmem:[%s463] sm:$0x1] %vm1816, %v1815
      %v1818 = vmul.f32 %v1779, %v1779
      %v1819 = vmul.f32 %v1780, %v1780
      %v1820 = vmul.f32 %v1781, %v1781
      %v1821 = vmul.f32 %v1782, %v1782
      %v1822 = vmul.f32 %v1783, %v1783
      %v1823 = vmul.f32 %v1784, %v1784
      %v1824 = vmul.f32 %v1785, %v1785
      %v1825 = vmul.f32 %v1786, %v1786
      %v1826 = vsel %vm466, %v1818, 0.0
      %v1827 = vsel %vm466, %v1819, 0.0
      %v1828 = vadd.f32 %v1826, %v1827
      %v1829 = vsel %vm466, %v1820, 0.0
      %v1830 = vadd.f32 %v1828, %v1829
      %v1831 = vsel %vm466, %v1821, 0.0
      %v1832 = vadd.f32 %v1830, %v1831
      %v1833 = vsel %vm466, %v1822, 0.0
      %v1834 = vadd.f32 %v1832, %v1833
      %v1835 = vsel %vm466, %v1823, 0.0
      %v1836 = vadd.f32 %v1834, %v1835
      %v1837 = vsel %vm466, %v1824, 0.0
      %v1838 = vadd.f32 %v1836, %v1837
      %v1839 = vsel %vm466, %v1825, 0.0
      %v1840 = vadd.f32 %v1838, %v1839
      %v1841 = vrot.slane %v1840, 4
      %v1842 = vadd.f32 %v1840, %v1841
      %v1843 = vrot.slane %v1842, 2
      %v1844 = vadd.f32 %v1842, %v1843
      %v1845 = vrot.slane %v1844, 1
      %v1846 = vadd.f32 %v1844, %v1845
      %1847 = vst.msk [vmem:[%s463 + $0x1] sm:$0x1] %vm1816, %v1846
      %v1848 = vsel %vm466, %v1779, -inf
      %v1849 = vsel %vm466, %v1780, -inf
      %v1850 = vsel %vm466, %v1781, -inf
      %v1851 = vsel %vm466, %v1782, -inf
      %v1852 = vsel %vm466, %v1783, -inf
      %v1853 = vmax.f32 %v1848, %v1852
      %v1854 = vsel %vm466, %v1784, -inf
      %v1855 = vmax.f32 %v1849, %v1854
      %v1856 = vsel %vm466, %v1785, -inf
      %v1857 = vmax.f32 %v1850, %v1856
      %v1858 = vsel %vm466, %v1786, -inf
      %v1859 = vmax.f32 %v1851, %v1858
      %v1860 = vmax.f32 %v1853, %v1855
      %v1861 = vmax.f32 %v1857, %v1859
      %v1862 = vmax.f32 %v1860, %v1861
      %v1863 = vrot.slane %v1862, 4
      %v1864 = vmax.f32 %v1862, %v1863
      %v1865 = vrot.slane %v1864, 2
      %v1866 = vmax.f32 %v1864, %v1865
      %v1867 = vrot.slane %v1866, 1
      %v1868 = vmax.f32 %v1866, %v1867
      %1869 = vst.msk [vmem:[%s463 + $0x2] sm:$0x1] %vm1816, %v1868
      %v1870 = vsel %vm466, %v1779, inf
      %v1871 = vsel %vm466, %v1780, inf
      %v1872 = vsel %vm466, %v1781, inf
      %v1873 = vsel %vm466, %v1782, inf
      %v1874 = vsel %vm466, %v1783, inf
      %v1875 = vmin.f32 %v1870, %v1874
      %v1876 = vsel %vm466, %v1784, inf
      %v1877 = vmin.f32 %v1871, %v1876
      %v1878 = vsel %vm466, %v1785, inf
      %v1879 = vmin.f32 %v1872, %v1878
      %v1880 = vsel %vm466, %v1786, inf
      %v1881 = vmin.f32 %v1873, %v1880
      %v1882 = vmin.f32 %v1875, %v1877
      %v1883 = vmin.f32 %v1879, %v1881
      %v1884 = vmin.f32 %v1882, %v1883
      %v1885 = vrot.slane %v1884, 4
      %v1886 = vmin.f32 %v1884, %v1885
      %v1887 = vrot.slane %v1886, 2
      %v1888 = vmin.f32 %v1886, %v1887
      %v1889 = vrot.slane %v1888, 1
      %v1890 = vmin.f32 %v1888, %v1889
      %1891 = vst.msk [vmem:[%s463 + $0x3] sm:$0x1] %vm1816, %v1890
      %s1892 = smul.u32 8, %s24
      %p1893 = scmp.lt.s32.totalorder %s23, 1
      %s1894 = scalar_select %p1893, %s23, 1
      %p1895 = scmp.lt.s32.totalorder %s1892, 7
      %s1896 = scalar_select %p1895, %s1892, 7
      %s1897 = smul.addr %s1894, 8
      %s1898 = sadd.s32 %s1896, %s1897
      %s1899 = smul.addr %s1898, 8
      %s1900 = scalar_lea.vmem %s6, %s1899
      %p1901 = scmp.lt.s32.totalorder %s23, 1
      %s1902 = scalar_select %p1901, %s23, 1
      %p1903 = scmp.lt.s32.totalorder %s24, 0
      %s1904 = scalar_select %p1903, %s24, 0
      %s1905 = sadd.s32 %s1904, %s1902
      %s1906 = smul.addr %s1905, 4
      %s1907 = scalar_lea.vmem %s7, %s1906
      // Predicated region
      $region53: #{costblock_forward.9} parent=43 // pred_check
        %p1908 = pneg %p214
      $region54: #{costblock_forward.9} parent=43 // pred_check_branch
        %1910 = sbr.rel (%p1908) target = $region56
      $region55: #{costblock_forward.9} parent=43 // pred_region
        %s1911 = smul.u32 8, %s24
      $region56: #{costblock_forward.9} parent=43 // pred_fallthru
        _
      // Predicated region
      $region57: #{costblock_forward.9} parent=43 // pred_check
        %p1912 = pneg %p242
      $region58: #{costblock_forward.9} parent=43 // pred_check_branch
        %1914 = sbr.rel (%p1912) target = $region60
      $region59: #{costblock_forward.9} parent=43 // pred_region
        _
      $region60: #{costblock_forward.9} parent=43 // pred_fallthru
        _
    $region44: #{costblock_forward.9} parent=5 // pred_fallthru
      _
    %p1915 = scmp.le.s32.totalorder 2, %s14
    // Predicated region
    $region61: #{costblock_forward.9} parent=5 // pred_check
      %p1916 = pneg %p1915
    $region62: #{costblock_forward.9} parent=5 // pred_check_branch
      %1918 = sbr.rel (%p1916) target = $region64
    $region63: #{costblock_forward.9} parent=5 // pred_region
      %s1919 = ssub.s32 %s14, 2
      // Predicated region
      $region65: #{costblock_forward.9} parent=63 // pred_check
        %p1920 = pneg %p220
      $region66: #{costblock_forward.9} parent=63 // pred_check_branch
        %1922 = sbr.rel (%p1920) target = $region68
      $region67: #{costblock_forward.9} parent=63 // pred_region
        %s1923 = smul.u32 8, %s26
        %p1924 = scmp.lt.s32.totalorder %s25, 1
        %s1925 = scalar_select %p1924, %s25, 1
        %p1926 = scmp.lt.s32.totalorder %s1923, 7
        %s1927 = scalar_select %p1926, %s1923, 7
        %s1928 = smul.addr %s1925, 8
        %s1929 = sadd.s32 %s1927, %s1928
        %s1930 = smul.addr %s1929, 8
        %s1931 = scalar_lea.vmem %s6, %s1930
      $region68: #{costblock_forward.9} parent=63 // pred_fallthru
        _
      // Predicated region
      $region69: #{costblock_forward.9} parent=63 // pred_check
        %p1932 = pneg %p248
      $region70: #{costblock_forward.9} parent=63 // pred_check_branch
        %1934 = sbr.rel (%p1932) target = $region72
      $region71: #{costblock_forward.9} parent=63 // pred_region
        %p1935 = scmp.lt.s32.totalorder %s25, 1
        %s1936 = scalar_select %p1935, %s25, 1
        %p1937 = scmp.lt.s32.totalorder %s26, 0
        %s1938 = scalar_select %p1937, %s26, 0
        %s1939 = sadd.s32 %s1938, %s1936
        %s1940 = smul.addr %s1939, 4
        %s1941 = scalar_lea.vmem %s7, %s1940
      $region72: #{costblock_forward.9} parent=63 // pred_fallthru
        _
    $region64: #{costblock_forward.9} parent=5 // pred_fallthru
      _
  $region6: #{costblock_forward.9} parent=0 // loop_footer
    %s18 = sadd.s32 1, %s14
  $region7: #{costblock_forward.9} parent=0 // loop_footer_branch
    %13 = sbr.rel target = $region3
  $region8: #{costblock_forward.9} parent=0 // loop_exit
    _

</llo_original>
